<compile_context>
chip_gen: v6e
topology: v6e:2x2x1
jax: 0.10.0
libtpu: 0.0.40
codegen_flags: <defaults>
</compile_context>

<pallas_src>
import jax
import jax.numpy as jnp
from jax.experimental import pallas as pl
from jax.experimental.pallas import tpu as pltpu


# For each output phase (even/odd output row x even/odd output col) the 3x3 conv on the
# nearest-x2-upsampled, reflect-padded image collapses to 4 taps on the ORIGINAL image.
# Sources: {a,m,b} = row above / this row / row below; {l,c,r} = col left / this col /
# col right (reflect padding == clamp at the image border for nearest-x2).  Tap order
# must match the combined-weight layout built in `_phase_weights`.
_PHASE_TAPS = (
    ("al", "ac", "ml", "mc"),   # even row, even col
    ("ac", "ar", "mc", "mr"),   # even row, odd col
    ("ml", "mc", "bl", "bc"),   # odd row,  even col
    ("mc", "mr", "bc", "br"),   # odd row,  odd col
)


def _upsample_kernel(xm_ref, xt_ref, xb_ref, r_ref, w_ref, s_ref, o_ref):
    # xm_ref: (1, C, THH, W)   original-resolution rows of this tile
    # xt_ref: (1, C, THH, W)   previous row-block (supplies the 1-row top halo)
    # xb_ref: (1, C, THH, W)   next row-block (supplies the 1-row bottom halo)
    # r_ref : (1, Co, TH, Wo)  skip tensor tile, copied to output channels [Co, C)
    # w_ref : (4*4*Co*C,) f32 SMEM -- per-phase combined conv weights (BN scale folded in)
    # s_ref : (Co,)       f32 SMEM -- per-channel shift (conv bias + BN folded in)
    # o_ref : (1, C, TH, Wo)
    C = xm_ref.shape[1]
    THH = xm_ref.shape[2]
    W = xm_ref.shape[3]
    Co = r_ref.shape[1]
    TH = 2 * THH
    Wo = 2 * W

    t = pl.program_id(1)
    n_ht = pl.num_programs(1)
    at_top = t == 0
    at_bot = t == n_ht - 1

    # 0/1 interleave matrices built from iota; the interleave runs on the idle MXU.
    ji = jax.lax.broadcasted_iota(jnp.int32, (W, Wo), 0)
    jo = jax.lax.broadcasted_iota(jnp.int32, (W, Wo), 1)
    col_even = (jo == 2 * ji).astype(jnp.float32)        # orig col j -> out col 2j
    col_odd = (jo == 2 * ji + 1).astype(jnp.float32)     # orig col j -> out col 2j+1
    ui = jax.lax.broadcasted_iota(jnp.int32, (TH, THH), 0)
    uo = jax.lax.broadcasted_iota(jnp.int32, (TH, THH), 1)
    row_even = (ui == 2 * uo).astype(jnp.float32)        # orig row i -> out row 2i
    row_odd = (ui == 2 * uo + 1).astype(jnp.float32)     # orig row i -> out row 2i+1

    # acc[co][phase]: (THH, W) phase image -- a handful of vregs (bounded, no spills).
    acc = [[jnp.zeros((THH, W), jnp.float32) for _ in range(4)] for _ in range(Co)]

    for ci in range(C):
        xm = xm_ref[0, ci]                                         # (THH, W)
        # halo rows: reflect padding of the upsampled image maps the out-of-range padded
        # row back to original row 0 (top) / H-1 (bottom).
        top = jnp.where(at_top, xm[0:1, :], xt_ref[0, ci, THH - 1:THH, :])
        bot = jnp.where(at_bot, xm[THH - 1:THH, :], xb_ref[0, ci, 0:1, :])
        xa = jnp.concatenate([top, xm[:THH - 1, :]], axis=0)       # row i-1
        xb = jnp.concatenate([xm[1:, :], bot], axis=0)             # row i+1
        src = {}
        for tag, arr in (("a", xa), ("m", xm), ("b", xb)):
            src[tag + "c"] = arr
            src[tag + "l"] = jnp.concatenate([arr[:, 0:1], arr[:, :W - 1]], axis=1)
            src[tag + "r"] = jnp.concatenate([arr[:, 1:], arr[:, W - 1:W]], axis=1)
        for co in range(Co):
            for ph in range(4):
                a = acc[co][ph]
                for tp, name in enumerate(_PHASE_TAPS[ph]):
                    a = a + w_ref[((ph * 4 + tp) * Co + co) * C + ci] * src[name]
                acc[co][ph] = a

    for co in range(Co):
        ee, eo, oe, oo = acc[co]
        even_rows = (jnp.dot(ee, col_even, preferred_element_type=jnp.float32)
                     + jnp.dot(eo, col_odd, preferred_element_type=jnp.float32))
        odd_rows = (jnp.dot(oe, col_even, preferred_element_type=jnp.float32)
                    + jnp.dot(oo, col_odd, preferred_element_type=jnp.float32))
        y = (jnp.dot(row_even, even_rows, preferred_element_type=jnp.float32)
             + jnp.dot(row_odd, odd_rows, preferred_element_type=jnp.float32))
        y = y + s_ref[co]                                          # fused conv bias + BN
        y = jnp.where(y >= 0.0, y, 0.01 * y)                       # LeakyReLU(0.01)
        o_ref[0, co] = y.astype(o_ref.dtype)

    # fused torch.cat((out, r), dim=1)
    o_ref[0, Co:] = r_ref[0].astype(o_ref.dtype)


def _phase_weights(k):
    # k: (Co, C, 3, 3) conv weights with the BatchNorm scale already folded in.
    k00, k01, k02 = k[..., 0, 0], k[..., 0, 1], k[..., 0, 2]
    k10, k11, k12 = k[..., 1, 0], k[..., 1, 1], k[..., 1, 2]
    k20, k21, k22 = k[..., 2, 0], k[..., 2, 1], k[..., 2, 2]
    wph = jnp.stack([
        jnp.stack([k00, k01 + k02, k10 + k20, k11 + k12 + k21 + k22]),       # ee
        jnp.stack([k00 + k01, k02, k10 + k11 + k20 + k21, k12 + k22]),       # eo
        jnp.stack([k00 + k10, k01 + k02 + k11 + k12, k20, k21 + k22]),       # oe
        jnp.stack([k00 + k01 + k10 + k11, k02 + k12, k20 + k21, k22]),       # oo
    ])                                                                        # (4,4,Co,C)
    return wph.reshape(-1)


def upsample_forward(x, r, params):
    """x: (N, C, H, W); r: (N, C//2, 2H, 2W).  Returns (N, C, 2H, 2W) = [conv_out ; r]."""
    w, b, gamma, beta, run_mean, run_var = params
    N, C, H, W = x.shape
    Co = C // 2
    Ho, Wo = 2 * H, 2 * W

    eps = 1e-5
    scale = (gamma / jnp.sqrt(run_var + eps)).astype(jnp.float32)            # (Co,)
    shift = ((b - run_mean) * scale + beta).astype(jnp.float32)              # (Co,)
    k = w.astype(jnp.float32) * scale[:, None, None, None]                   # BN folded
    wph = _phase_weights(k).astype(jnp.float32)                              # (4*4*Co*C,)

    # Row tiling: THH original rows -> TH = 2*THH output rows per grid step.
    THH = 8 if H % 8 == 0 else H          # tune larger on v5e/v6e (128 MiB VMEM)
    n_ht = H // THH
    TH = 2 * THH

    out = pl.pallas_call(
        _upsample_kernel,
        out_shape=jax.ShapeDtypeStruct((N, C, Ho, Wo), jnp.float32),
        grid_spec=pltpu.PrefetchScalarGridSpec(
            num_scalar_prefetch=0,
            grid=(N, n_ht),
            in_specs=[
                # this tile's original rows + neighbouring row-blocks (1-row halo source)
                pl.BlockSpec((1, C, THH, W), lambda n, t: (n, 0, t, 0)),
                pl.BlockSpec((1, C, THH, W),
                             lambda n, t: (n, 0, jnp.maximum(t - 1, 0), 0)),
                pl.BlockSpec((1, C, THH, W),
                             lambda n, t: (n, 0, jnp.minimum(t + 1, n_ht - 1), 0)),
                pl.BlockSpec((1, Co, TH, Wo), lambda n, t: (n, 0, t, 0)),
                pl.BlockSpec(memory_space=pltpu.MemorySpace.SMEM),   # phase weights
                pl.BlockSpec(memory_space=pltpu.MemorySpace.SMEM),   # per-channel shift
            ],
            out_specs=pl.BlockSpec((1, C, TH, Wo), lambda n, t: (n, 0, t, 0)),
        ),
        compiler_params=pltpu.CompilerParams(
            dimension_semantics=("parallel", "parallel"),
            vmem_limit_bytes=32 * 1024 * 1024,   # tiles sized well under v7x's 64 MiB VMEM
        ),
    )(x.astype(jnp.float32), x.astype(jnp.float32), x.astype(jnp.float32),
      r.astype(jnp.float32), wph, shift)
    return out


def _reference(x, r, params):
    """Pure-JAX reference of the PyTorch module (eval-mode BatchNorm)."""
    w, b, gamma, beta, run_mean, run_var = params
    up = jnp.repeat(jnp.repeat(x, 2, axis=2), 2, axis=3)
    xp = jnp.pad(up, ((0, 0), (0, 0), (1, 1), (1, 1)), mode="reflect")
    y = jax.lax.conv_general_dilated(
        xp, w, window_strides=(1, 1), padding="VALID",
        dimension_numbers=("NCHW", "OIHW", "NCHW"),
        precision=jax.lax.Precision.HIGHEST)
    y = y + b[None, :, None, None]
    eps = 1e-5
    y = (y - run_mean[None, :, None, None]) / jnp.sqrt(run_var[None, :, None, None] + eps)
    y = y * gamma[None, :, None, None] + beta[None, :, None, None]
    y = jnp.where(y >= 0.0, y, 0.01 * y)
    return jnp.concatenate([y, r], axis=1)


def make_params(c, key):
    """Deterministic parameters matching nn.Conv2d(c, c//2, 3) + nn.BatchNorm2d(c//2)."""
    co = c // 2
    k_w, k_b, k_rm, k_rv = jax.random.split(key, 4)
    w = jax.random.normal(k_w, (co, c, 3, 3), jnp.float32) * 0.1   # OIHW
    b = jax.random.normal(k_b, (co,), jnp.float32) * 0.1
    gamma = jnp.ones((co,), jnp.float32)
    beta = jnp.zeros((co,), jnp.float32)
    run_mean = jax.random.normal(k_rm, (co,), jnp.float32) * 0.05
    run_var = jnp.abs(jax.random.normal(k_rv, (co,), jnp.float32)) * 0.1 + 1.0
    return (w, b, gamma, beta, run_mean, run_var)


if __name__ == "__main__":
    key = jax.random.PRNGKey(0)
    k_x, k_r, k_p = jax.random.split(key, 3)

    N, C, H, W = 2, 4, 16, 16
    x = jax.random.normal(k_x, (N, C, H, W), jnp.float32)
    r = jax.random.normal(k_r, (N, C // 2, 2 * H, 2 * W), jnp.float32)
    params = make_params(C, k_p)

    out = jax.jit(upsample_forward)(x, r, params)
    jax.block_until_ready(out)
    assert out.shape == (N, C, 2 * H, 2 * W), out.shape

    ref = _reference(x, r, params)
    max_err = float(jnp.max(jnp.abs(out - ref)))
    assert max_err < 2e-2, f"kernel/reference mismatch, max abs err = {max_err}"
    print("KERNEL_OK")
</pallas_src>

<mosaic_0001>
module attributes {stable_mosaic.version = 11 : i64} {
  func.func @_upsample_kernel(%arg0: i32, %arg1: i32, %arg2: memref<1x4x8x16xf32, #tpu.memory_space<vmem>>, %arg3: memref<1x4x8x16xf32, #tpu.memory_space<vmem>>, %arg4: memref<1x4x8x16xf32, #tpu.memory_space<vmem>>, %arg5: memref<1x2x16x32xf32, #tpu.memory_space<vmem>>, %arg6: memref<128xf32, #tpu.memory_space<smem>>, %arg7: memref<2xf32, #tpu.memory_space<smem>>, %arg8: memref<1x4x16x32xf32, #tpu.memory_space<vmem>>) attributes {dimension_semantics = [#tpu.dimension_semantics<parallel>, #tpu.dimension_semantics<parallel>], iteration_bounds = array<i64: 2, 2>, scalar_prefetch = 0 : i64, scratch_operands = 0 : i64, tpu.core_type = #tpu.core_type<tc>, window_params = [{transform_indices = @transform_0, window_bounds = array<i64: 1, 4, 8, 16>}, {transform_indices = @transform_1, window_bounds = array<i64: 1, 4, 8, 16>}, {transform_indices = @transform_2, window_bounds = array<i64: 1, 4, 8, 16>}, {transform_indices = @transform_3, window_bounds = array<i64: 1, 2, 16, 32>}, {transform_indices = @transform_4, window_bounds = array<i64: 128>}, {transform_indices = @transform_5, window_bounds = array<i64: 2>}, {transform_indices = @transform_6, window_bounds = array<i64: 1, 4, 16, 32>}]} {
    %c0_i32 = arith.constant 0 : i32
    %0 = arith.cmpi eq, %arg1, %c0_i32 : i32
    %c1_i32 = arith.constant 1 : i32
    %1 = arith.cmpi eq, %arg1, %c1_i32 : i32
    %2 = tpu.iota {dimensions = array<i32: 0>} : vector<16x32xi32>
    %3 = tpu.iota {dimensions = array<i32: 1>} : vector<16x32xi32>
    %c2_i32 = arith.constant 2 : i32
    %4 = vector.broadcast %c2_i32 : i32 to vector<16x32xi32>
    %5 = arith.muli %4, %2 : vector<16x32xi32>
    %6 = arith.cmpi eq, %3, %5 : vector<16x32xi32>
    %7 = arith.extui %6 : vector<16x32xi1> to vector<16x32xi32>
    %8 = arith.sitofp %7 : vector<16x32xi32> to vector<16x32xf32>
    %c2_i32_0 = arith.constant 2 : i32
    %9 = vector.broadcast %c2_i32_0 : i32 to vector<16x32xi32>
    %10 = arith.muli %9, %2 : vector<16x32xi32>
    %c1_i32_1 = arith.constant 1 : i32
    %11 = vector.broadcast %c1_i32_1 : i32 to vector<16x32xi32>
    %12 = arith.addi %10, %11 : vector<16x32xi32>
    %13 = arith.cmpi eq, %3, %12 : vector<16x32xi32>
    %14 = arith.extui %13 : vector<16x32xi1> to vector<16x32xi32>
    %15 = arith.sitofp %14 : vector<16x32xi32> to vector<16x32xf32>
    %16 = tpu.iota {dimensions = array<i32: 0>} : vector<16x8xi32>
    %17 = tpu.iota {dimensions = array<i32: 1>} : vector<16x8xi32>
    %c2_i32_2 = arith.constant 2 : i32
    %18 = vector.broadcast %c2_i32_2 : i32 to vector<16x8xi32>
    %19 = arith.muli %18, %17 : vector<16x8xi32>
    %20 = arith.cmpi eq, %16, %19 : vector<16x8xi32>
    %21 = arith.extui %20 : vector<16x8xi1> to vector<16x8xi32>
    %22 = arith.sitofp %21 : vector<16x8xi32> to vector<16x8xf32>
    %c2_i32_3 = arith.constant 2 : i32
    %23 = vector.broadcast %c2_i32_3 : i32 to vector<16x8xi32>
    %24 = arith.muli %23, %17 : vector<16x8xi32>
    %c1_i32_4 = arith.constant 1 : i32
    %25 = vector.broadcast %c1_i32_4 : i32 to vector<16x8xi32>
    %26 = arith.addi %24, %25 : vector<16x8xi32>
    %27 = arith.cmpi eq, %16, %26 : vector<16x8xi32>
    %28 = arith.extui %27 : vector<16x8xi1> to vector<16x8xi32>
    %29 = arith.sitofp %28 : vector<16x8xi32> to vector<16x8xf32>
    %cst = arith.constant 0.000000e+00 : f32
    %30 = vector.broadcast %cst : f32 to vector<8x16xf32>
    %cst_5 = arith.constant 0.000000e+00 : f32
    %31 = vector.broadcast %cst_5 : f32 to vector<8x16xf32>
    %cst_6 = arith.constant 0.000000e+00 : f32
    %32 = vector.broadcast %cst_6 : f32 to vector<8x16xf32>
    %cst_7 = arith.constant 0.000000e+00 : f32
    %33 = vector.broadcast %cst_7 : f32 to vector<8x16xf32>
    %cst_8 = arith.constant 0.000000e+00 : f32
    %34 = vector.broadcast %cst_8 : f32 to vector<8x16xf32>
    %cst_9 = arith.constant 0.000000e+00 : f32
    %35 = vector.broadcast %cst_9 : f32 to vector<8x16xf32>
    %cst_10 = arith.constant 0.000000e+00 : f32
    %36 = vector.broadcast %cst_10 : f32 to vector<8x16xf32>
    %cst_11 = arith.constant 0.000000e+00 : f32
    %37 = vector.broadcast %cst_11 : f32 to vector<8x16xf32>
    %c0 = arith.constant 0 : index
    %c0_12 = arith.constant 0 : index
    %c0_13 = arith.constant 0 : index
    %c0_14 = arith.constant 0 : index
    %38 = vector.load %arg2[%c0, %c0_12, %c0_13, %c0_14] : memref<1x4x8x16xf32, #tpu.memory_space<vmem>>, vector<1x1x8x16xf32>
    %39 = vector.shape_cast %38 : vector<1x1x8x16xf32> to vector<8x16xf32>
    %40 = vector.extract_strided_slice %39 {offsets = [0, 0], sizes = [1, 16], strides = [1, 1]} : vector<8x16xf32> to vector<1x16xf32>
    %c0_15 = arith.constant 0 : index
    %c0_16 = arith.constant 0 : index
    %c7 = arith.constant 7 : index
    %c0_17 = arith.constant 0 : index
    %41 = vector.load %arg3[%c0_15, %c0_16, %c7, %c0_17] : memref<1x4x8x16xf32, #tpu.memory_space<vmem>>, vector<1x1x1x16xf32>
    %42 = vector.shape_cast %41 : vector<1x1x1x16xf32> to vector<1x16xf32>
    %43 = arith.select %0, %40, %42 : vector<1x16xf32>
    %44 = vector.extract_strided_slice %39 {offsets = [7, 0], sizes = [1, 16], strides = [1, 1]} : vector<8x16xf32> to vector<1x16xf32>
    %c0_18 = arith.constant 0 : index
    %c0_19 = arith.constant 0 : index
    %c0_20 = arith.constant 0 : index
    %c0_21 = arith.constant 0 : index
    %45 = vector.load %arg4[%c0_18, %c0_19, %c0_20, %c0_21] : memref<1x4x8x16xf32, #tpu.memory_space<vmem>>, vector<1x1x1x16xf32>
    %46 = vector.shape_cast %45 : vector<1x1x1x16xf32> to vector<1x16xf32>
    %47 = arith.select %1, %44, %46 : vector<1x16xf32>
    %48 = vector.extract_strided_slice %39 {offsets = [0, 0], sizes = [7, 16], strides = [1, 1]} : vector<8x16xf32> to vector<7x16xf32>
    %49 = tpu.concatenate %43, %48 in 0 : vector<1x16xf32>, vector<7x16xf32> -> vector<8x16xf32>
    %50 = vector.extract_strided_slice %39 {offsets = [1, 0], sizes = [7, 16], strides = [1, 1]} : vector<8x16xf32> to vector<7x16xf32>
    %51 = tpu.concatenate %50, %47 in 0 : vector<7x16xf32>, vector<1x16xf32> -> vector<8x16xf32>
    %52 = vector.extract_strided_slice %49 {offsets = [0, 0], sizes = [8, 1], strides = [1, 1]} : vector<8x16xf32> to vector<8x1xf32>
    %53 = vector.extract_strided_slice %49 {offsets = [0, 0], sizes = [8, 15], strides = [1, 1]} : vector<8x16xf32> to vector<8x15xf32>
    %54 = tpu.concatenate %52, %53 in 1 : vector<8x1xf32>, vector<8x15xf32> -> vector<8x16xf32>
    %55 = vector.extract_strided_slice %49 {offsets = [0, 1], sizes = [8, 15], strides = [1, 1]} : vector<8x16xf32> to vector<8x15xf32>
    %56 = vector.extract_strided_slice %49 {offsets = [0, 15], sizes = [8, 1], strides = [1, 1]} : vector<8x16xf32> to vector<8x1xf32>
    %57 = tpu.concatenate %55, %56 in 1 : vector<8x15xf32>, vector<8x1xf32> -> vector<8x16xf32>
    %58 = vector.extract_strided_slice %39 {offsets = [0, 0], sizes = [8, 1], strides = [1, 1]} : vector<8x16xf32> to vector<8x1xf32>
    %59 = vector.extract_strided_slice %39 {offsets = [0, 0], sizes = [8, 15], strides = [1, 1]} : vector<8x16xf32> to vector<8x15xf32>
    %60 = tpu.concatenate %58, %59 in 1 : vector<8x1xf32>, vector<8x15xf32> -> vector<8x16xf32>
    %61 = vector.extract_strided_slice %39 {offsets = [0, 1], sizes = [8, 15], strides = [1, 1]} : vector<8x16xf32> to vector<8x15xf32>
    %62 = vector.extract_strided_slice %39 {offsets = [0, 15], sizes = [8, 1], strides = [1, 1]} : vector<8x16xf32> to vector<8x1xf32>
    %63 = tpu.concatenate %61, %62 in 1 : vector<8x15xf32>, vector<8x1xf32> -> vector<8x16xf32>
    %64 = vector.extract_strided_slice %51 {offsets = [0, 0], sizes = [8, 1], strides = [1, 1]} : vector<8x16xf32> to vector<8x1xf32>
    %65 = vector.extract_strided_slice %51 {offsets = [0, 0], sizes = [8, 15], strides = [1, 1]} : vector<8x16xf32> to vector<8x15xf32>
    %66 = tpu.concatenate %64, %65 in 1 : vector<8x1xf32>, vector<8x15xf32> -> vector<8x16xf32>
    %67 = vector.extract_strided_slice %51 {offsets = [0, 1], sizes = [8, 15], strides = [1, 1]} : vector<8x16xf32> to vector<8x15xf32>
    %68 = vector.extract_strided_slice %51 {offsets = [0, 15], sizes = [8, 1], strides = [1, 1]} : vector<8x16xf32> to vector<8x1xf32>
    %69 = tpu.concatenate %67, %68 in 1 : vector<8x15xf32>, vector<8x1xf32> -> vector<8x16xf32>
    %c0_22 = arith.constant 0 : index
    %70 = memref.load %arg6[%c0_22] : memref<128xf32, #tpu.memory_space<smem>>
    %71 = vector.broadcast %70 : f32 to vector<8x16xf32>
    %72 = arith.mulf %71, %54 : vector<8x16xf32>
    %73 = arith.addf %30, %72 : vector<8x16xf32>
    %c8 = arith.constant 8 : index
    %74 = memref.load %arg6[%c8] : memref<128xf32, #tpu.memory_space<smem>>
    %75 = vector.broadcast %74 : f32 to vector<8x16xf32>
    %76 = arith.mulf %75, %49 : vector<8x16xf32>
    %77 = arith.addf %73, %76 : vector<8x16xf32>
    %c16 = arith.constant 16 : index
    %78 = memref.load %arg6[%c16] : memref<128xf32, #tpu.memory_space<smem>>
    %79 = vector.broadcast %78 : f32 to vector<8x16xf32>
    %80 = arith.mulf %79, %60 : vector<8x16xf32>
    %81 = arith.addf %77, %80 : vector<8x16xf32>
    %c24 = arith.constant 24 : index
    %82 = memref.load %arg6[%c24] : memref<128xf32, #tpu.memory_space<smem>>
    %83 = vector.broadcast %82 : f32 to vector<8x16xf32>
    %84 = arith.mulf %83, %39 : vector<8x16xf32>
    %85 = arith.addf %81, %84 : vector<8x16xf32>
    %c32 = arith.constant 32 : index
    %86 = memref.load %arg6[%c32] : memref<128xf32, #tpu.memory_space<smem>>
    %87 = vector.broadcast %86 : f32 to vector<8x16xf32>
    %88 = arith.mulf %87, %49 : vector<8x16xf32>
    %89 = arith.addf %31, %88 : vector<8x16xf32>
    %c40 = arith.constant 40 : index
    %90 = memref.load %arg6[%c40] : memref<128xf32, #tpu.memory_space<smem>>
    %91 = vector.broadcast %90 : f32 to vector<8x16xf32>
    %92 = arith.mulf %91, %57 : vector<8x16xf32>
    %93 = arith.addf %89, %92 : vector<8x16xf32>
    %c48 = arith.constant 48 : index
    %94 = memref.load %arg6[%c48] : memref<128xf32, #tpu.memory_space<smem>>
    %95 = vector.broadcast %94 : f32 to vector<8x16xf32>
    %96 = arith.mulf %95, %39 : vector<8x16xf32>
    %97 = arith.addf %93, %96 : vector<8x16xf32>
    %c56 = arith.constant 56 : index
    %98 = memref.load %arg6[%c56] : memref<128xf32, #tpu.memory_space<smem>>
    %99 = vector.broadcast %98 : f32 to vector<8x16xf32>
    %100 = arith.mulf %99, %63 : vector<8x16xf32>
    %101 = arith.addf %97, %100 : vector<8x16xf32>
    %c64 = arith.constant 64 : index
    %102 = memref.load %arg6[%c64] : memref<128xf32, #tpu.memory_space<smem>>
    %103 = vector.broadcast %102 : f32 to vector<8x16xf32>
    %104 = arith.mulf %103, %60 : vector<8x16xf32>
    %105 = arith.addf %32, %104 : vector<8x16xf32>
    %c72 = arith.constant 72 : index
    %106 = memref.load %arg6[%c72] : memref<128xf32, #tpu.memory_space<smem>>
    %107 = vector.broadcast %106 : f32 to vector<8x16xf32>
    %108 = arith.mulf %107, %39 : vector<8x16xf32>
    %109 = arith.addf %105, %108 : vector<8x16xf32>
    %c80 = arith.constant 80 : index
    %110 = memref.load %arg6[%c80] : memref<128xf32, #tpu.memory_space<smem>>
    %111 = vector.broadcast %110 : f32 to vector<8x16xf32>
    %112 = arith.mulf %111, %66 : vector<8x16xf32>
    %113 = arith.addf %109, %112 : vector<8x16xf32>
    %c88 = arith.constant 88 : index
    %114 = memref.load %arg6[%c88] : memref<128xf32, #tpu.memory_space<smem>>
    %115 = vector.broadcast %114 : f32 to vector<8x16xf32>
    %116 = arith.mulf %115, %51 : vector<8x16xf32>
    %117 = arith.addf %113, %116 : vector<8x16xf32>
    %c96 = arith.constant 96 : index
    %118 = memref.load %arg6[%c96] : memref<128xf32, #tpu.memory_space<smem>>
    %119 = vector.broadcast %118 : f32 to vector<8x16xf32>
    %120 = arith.mulf %119, %39 : vector<8x16xf32>
    %121 = arith.addf %33, %120 : vector<8x16xf32>
    %c104 = arith.constant 104 : index
    %122 = memref.load %arg6[%c104] : memref<128xf32, #tpu.memory_space<smem>>
    %123 = vector.broadcast %122 : f32 to vector<8x16xf32>
    %124 = arith.mulf %123, %63 : vector<8x16xf32>
    %125 = arith.addf %121, %124 : vector<8x16xf32>
    %c112 = arith.constant 112 : index
    %126 = memref.load %arg6[%c112] : memref<128xf32, #tpu.memory_space<smem>>
    %127 = vector.broadcast %126 : f32 to vector<8x16xf32>
    %128 = arith.mulf %127, %51 : vector<8x16xf32>
    %129 = arith.addf %125, %128 : vector<8x16xf32>
    %c120 = arith.constant 120 : index
    %130 = memref.load %arg6[%c120] : memref<128xf32, #tpu.memory_space<smem>>
    %131 = vector.broadcast %130 : f32 to vector<8x16xf32>
    %132 = arith.mulf %131, %69 : vector<8x16xf32>
    %133 = arith.addf %129, %132 : vector<8x16xf32>
    %c4 = arith.constant 4 : index
    %134 = memref.load %arg6[%c4] : memref<128xf32, #tpu.memory_space<smem>>
    %135 = vector.broadcast %134 : f32 to vector<8x16xf32>
    %136 = arith.mulf %135, %54 : vector<8x16xf32>
    %137 = arith.addf %34, %136 : vector<8x16xf32>
    %c12 = arith.constant 12 : index
    %138 = memref.load %arg6[%c12] : memref<128xf32, #tpu.memory_space<smem>>
    %139 = vector.broadcast %138 : f32 to vector<8x16xf32>
    %140 = arith.mulf %139, %49 : vector<8x16xf32>
    %141 = arith.addf %137, %140 : vector<8x16xf32>
    %c20 = arith.constant 20 : index
    %142 = memref.load %arg6[%c20] : memref<128xf32, #tpu.memory_space<smem>>
    %143 = vector.broadcast %142 : f32 to vector<8x16xf32>
    %144 = arith.mulf %143, %60 : vector<8x16xf32>
    %145 = arith.addf %141, %144 : vector<8x16xf32>
    %c28 = arith.constant 28 : index
    %146 = memref.load %arg6[%c28] : memref<128xf32, #tpu.memory_space<smem>>
    %147 = vector.broadcast %146 : f32 to vector<8x16xf32>
    %148 = arith.mulf %147, %39 : vector<8x16xf32>
    %149 = arith.addf %145, %148 : vector<8x16xf32>
    %c36 = arith.constant 36 : index
    %150 = memref.load %arg6[%c36] : memref<128xf32, #tpu.memory_space<smem>>
    %151 = vector.broadcast %150 : f32 to vector<8x16xf32>
    %152 = arith.mulf %151, %49 : vector<8x16xf32>
    %153 = arith.addf %35, %152 : vector<8x16xf32>
    %c44 = arith.constant 44 : index
    %154 = memref.load %arg6[%c44] : memref<128xf32, #tpu.memory_space<smem>>
    %155 = vector.broadcast %154 : f32 to vector<8x16xf32>
    %156 = arith.mulf %155, %57 : vector<8x16xf32>
    %157 = arith.addf %153, %156 : vector<8x16xf32>
    %c52 = arith.constant 52 : index
    %158 = memref.load %arg6[%c52] : memref<128xf32, #tpu.memory_space<smem>>
    %159 = vector.broadcast %158 : f32 to vector<8x16xf32>
    %160 = arith.mulf %159, %39 : vector<8x16xf32>
    %161 = arith.addf %157, %160 : vector<8x16xf32>
    %c60 = arith.constant 60 : index
    %162 = memref.load %arg6[%c60] : memref<128xf32, #tpu.memory_space<smem>>
    %163 = vector.broadcast %162 : f32 to vector<8x16xf32>
    %164 = arith.mulf %163, %63 : vector<8x16xf32>
    %165 = arith.addf %161, %164 : vector<8x16xf32>
    %c68 = arith.constant 68 : index
    %166 = memref.load %arg6[%c68] : memref<128xf32, #tpu.memory_space<smem>>
    %167 = vector.broadcast %166 : f32 to vector<8x16xf32>
    %168 = arith.mulf %167, %60 : vector<8x16xf32>
    %169 = arith.addf %36, %168 : vector<8x16xf32>
    %c76 = arith.constant 76 : index
    %170 = memref.load %arg6[%c76] : memref<128xf32, #tpu.memory_space<smem>>
    %171 = vector.broadcast %170 : f32 to vector<8x16xf32>
    %172 = arith.mulf %171, %39 : vector<8x16xf32>
    %173 = arith.addf %169, %172 : vector<8x16xf32>
    %c84 = arith.constant 84 : index
    %174 = memref.load %arg6[%c84] : memref<128xf32, #tpu.memory_space<smem>>
    %175 = vector.broadcast %174 : f32 to vector<8x16xf32>
    %176 = arith.mulf %175, %66 : vector<8x16xf32>
    %177 = arith.addf %173, %176 : vector<8x16xf32>
    %c92 = arith.constant 92 : index
    %178 = memref.load %arg6[%c92] : memref<128xf32, #tpu.memory_space<smem>>
    %179 = vector.broadcast %178 : f32 to vector<8x16xf32>
    %180 = arith.mulf %179, %51 : vector<8x16xf32>
    %181 = arith.addf %177, %180 : vector<8x16xf32>
    %c100 = arith.constant 100 : index
    %182 = memref.load %arg6[%c100] : memref<128xf32, #tpu.memory_space<smem>>
    %183 = vector.broadcast %182 : f32 to vector<8x16xf32>
    %184 = arith.mulf %183, %39 : vector<8x16xf32>
    %185 = arith.addf %37, %184 : vector<8x16xf32>
    %c108 = arith.constant 108 : index
    %186 = memref.load %arg6[%c108] : memref<128xf32, #tpu.memory_space<smem>>
    %187 = vector.broadcast %186 : f32 to vector<8x16xf32>
    %188 = arith.mulf %187, %63 : vector<8x16xf32>
    %189 = arith.addf %185, %188 : vector<8x16xf32>
    %c116 = arith.constant 116 : index
    %190 = memref.load %arg6[%c116] : memref<128xf32, #tpu.memory_space<smem>>
    %191 = vector.broadcast %190 : f32 to vector<8x16xf32>
    %192 = arith.mulf %191, %51 : vector<8x16xf32>
    %193 = arith.addf %189, %192 : vector<8x16xf32>
    %c124 = arith.constant 124 : index
    %194 = memref.load %arg6[%c124] : memref<128xf32, #tpu.memory_space<smem>>
    %195 = vector.broadcast %194 : f32 to vector<8x16xf32>
    %196 = arith.mulf %195, %69 : vector<8x16xf32>
    %197 = arith.addf %193, %196 : vector<8x16xf32>
    %c0_23 = arith.constant 0 : index
    %c1 = arith.constant 1 : index
    %c0_24 = arith.constant 0 : index
    %c0_25 = arith.constant 0 : index
    %198 = vector.load %arg2[%c0_23, %c1, %c0_24, %c0_25] : memref<1x4x8x16xf32, #tpu.memory_space<vmem>>, vector<1x1x8x16xf32>
    %199 = vector.shape_cast %198 : vector<1x1x8x16xf32> to vector<8x16xf32>
    %200 = vector.extract_strided_slice %199 {offsets = [0, 0], sizes = [1, 16], strides = [1, 1]} : vector<8x16xf32> to vector<1x16xf32>
    %c0_26 = arith.constant 0 : index
    %c1_27 = arith.constant 1 : index
    %c7_28 = arith.constant 7 : index
    %c0_29 = arith.constant 0 : index
    %201 = vector.load %arg3[%c0_26, %c1_27, %c7_28, %c0_29] : memref<1x4x8x16xf32, #tpu.memory_space<vmem>>, vector<1x1x1x16xf32>
    %202 = vector.shape_cast %201 : vector<1x1x1x16xf32> to vector<1x16xf32>
    %203 = arith.select %0, %200, %202 : vector<1x16xf32>
    %204 = vector.extract_strided_slice %199 {offsets = [7, 0], sizes = [1, 16], strides = [1, 1]} : vector<8x16xf32> to vector<1x16xf32>
    %c0_30 = arith.constant 0 : index
    %c1_31 = arith.constant 1 : index
    %c0_32 = arith.constant 0 : index
    %c0_33 = arith.constant 0 : index
    %205 = vector.load %arg4[%c0_30, %c1_31, %c0_32, %c0_33] : memref<1x4x8x16xf32, #tpu.memory_space<vmem>>, vector<1x1x1x16xf32>
    %206 = vector.shape_cast %205 : vector<1x1x1x16xf32> to vector<1x16xf32>
    %207 = arith.select %1, %204, %206 : vector<1x16xf32>
    %208 = vector.extract_strided_slice %199 {offsets = [0, 0], sizes = [7, 16], strides = [1, 1]} : vector<8x16xf32> to vector<7x16xf32>
    %209 = tpu.concatenate %203, %208 in 0 : vector<1x16xf32>, vector<7x16xf32> -> vector<8x16xf32>
    %210 = vector.extract_strided_slice %199 {offsets = [1, 0], sizes = [7, 16], strides = [1, 1]} : vector<8x16xf32> to vector<7x16xf32>
    %211 = tpu.concatenate %210, %207 in 0 : vector<7x16xf32>, vector<1x16xf32> -> vector<8x16xf32>
    %212 = vector.extract_strided_slice %209 {offsets = [0, 0], sizes = [8, 1], strides = [1, 1]} : vector<8x16xf32> to vector<8x1xf32>
    %213 = vector.extract_strided_slice %209 {offsets = [0, 0], sizes = [8, 15], strides = [1, 1]} : vector<8x16xf32> to vector<8x15xf32>
    %214 = tpu.concatenate %212, %213 in 1 : vector<8x1xf32>, vector<8x15xf32> -> vector<8x16xf32>
    %215 = vector.extract_strided_slice %209 {offsets = [0, 1], sizes = [8, 15], strides = [1, 1]} : vector<8x16xf32> to vector<8x15xf32>
    %216 = vector.extract_strided_slice %209 {offsets = [0, 15], sizes = [8, 1], strides = [1, 1]} : vector<8x16xf32> to vector<8x1xf32>
    %217 = tpu.concatenate %215, %216 in 1 : vector<8x15xf32>, vector<8x1xf32> -> vector<8x16xf32>
    %218 = vector.extract_strided_slice %199 {offsets = [0, 0], sizes = [8, 1], strides = [1, 1]} : vector<8x16xf32> to vector<8x1xf32>
    %219 = vector.extract_strided_slice %199 {offsets = [0, 0], sizes = [8, 15], strides = [1, 1]} : vector<8x16xf32> to vector<8x15xf32>
    %220 = tpu.concatenate %218, %219 in 1 : vector<8x1xf32>, vector<8x15xf32> -> vector<8x16xf32>
    %221 = vector.extract_strided_slice %199 {offsets = [0, 1], sizes = [8, 15], strides = [1, 1]} : vector<8x16xf32> to vector<8x15xf32>
    %222 = vector.extract_strided_slice %199 {offsets = [0, 15], sizes = [8, 1], strides = [1, 1]} : vector<8x16xf32> to vector<8x1xf32>
    %223 = tpu.concatenate %221, %222 in 1 : vector<8x15xf32>, vector<8x1xf32> -> vector<8x16xf32>
    %224 = vector.extract_strided_slice %211 {offsets = [0, 0], sizes = [8, 1], strides = [1, 1]} : vector<8x16xf32> to vector<8x1xf32>
    %225 = vector.extract_strided_slice %211 {offsets = [0, 0], sizes = [8, 15], strides = [1, 1]} : vector<8x16xf32> to vector<8x15xf32>
    %226 = tpu.concatenate %224, %225 in 1 : vector<8x1xf32>, vector<8x15xf32> -> vector<8x16xf32>
    %227 = vector.extract_strided_slice %211 {offsets = [0, 1], sizes = [8, 15], strides = [1, 1]} : vector<8x16xf32> to vector<8x15xf32>
    %228 = vector.extract_strided_slice %211 {offsets = [0, 15], sizes = [8, 1], strides = [1, 1]} : vector<8x16xf32> to vector<8x1xf32>
    %229 = tpu.concatenate %227, %228 in 1 : vector<8x15xf32>, vector<8x1xf32> -> vector<8x16xf32>
    %c1_34 = arith.constant 1 : index
    %230 = memref.load %arg6[%c1_34] : memref<128xf32, #tpu.memory_space<smem>>
    %231 = vector.broadcast %230 : f32 to vector<8x16xf32>
    %232 = arith.mulf %231, %214 : vector<8x16xf32>
    %233 = arith.addf %85, %232 : vector<8x16xf32>
    %c9 = arith.constant 9 : index
    %234 = memref.load %arg6[%c9] : memref<128xf32, #tpu.memory_space<smem>>
    %235 = vector.broadcast %234 : f32 to vector<8x16xf32>
    %236 = arith.mulf %235, %209 : vector<8x16xf32>
    %237 = arith.addf %233, %236 : vector<8x16xf32>
    %c17 = arith.constant 17 : index
    %238 = memref.load %arg6[%c17] : memref<128xf32, #tpu.memory_space<smem>>
    %239 = vector.broadcast %238 : f32 to vector<8x16xf32>
    %240 = arith.mulf %239, %220 : vector<8x16xf32>
    %241 = arith.addf %237, %240 : vector<8x16xf32>
    %c25 = arith.constant 25 : index
    %242 = memref.load %arg6[%c25] : memref<128xf32, #tpu.memory_space<smem>>
    %243 = vector.broadcast %242 : f32 to vector<8x16xf32>
    %244 = arith.mulf %243, %199 : vector<8x16xf32>
    %245 = arith.addf %241, %244 : vector<8x16xf32>
    %c33 = arith.constant 33 : index
    %246 = memref.load %arg6[%c33] : memref<128xf32, #tpu.memory_space<smem>>
    %247 = vector.broadcast %246 : f32 to vector<8x16xf32>
    %248 = arith.mulf %247, %209 : vector<8x16xf32>
    %249 = arith.addf %101, %248 : vector<8x16xf32>
    %c41 = arith.constant 41 : index
    %250 = memref.load %arg6[%c41] : memref<128xf32, #tpu.memory_space<smem>>
    %251 = vector.broadcast %250 : f32 to vector<8x16xf32>
    %252 = arith.mulf %251, %217 : vector<8x16xf32>
    %253 = arith.addf %249, %252 : vector<8x16xf32>
    %c49 = arith.constant 49 : index
    %254 = memref.load %arg6[%c49] : memref<128xf32, #tpu.memory_space<smem>>
    %255 = vector.broadcast %254 : f32 to vector<8x16xf32>
    %256 = arith.mulf %255, %199 : vector<8x16xf32>
    %257 = arith.addf %253, %256 : vector<8x16xf32>
    %c57 = arith.constant 57 : index
    %258 = memref.load %arg6[%c57] : memref<128xf32, #tpu.memory_space<smem>>
    %259 = vector.broadcast %258 : f32 to vector<8x16xf32>
    %260 = arith.mulf %259, %223 : vector<8x16xf32>
    %261 = arith.addf %257, %260 : vector<8x16xf32>
    %c65 = arith.constant 65 : index
    %262 = memref.load %arg6[%c65] : memref<128xf32, #tpu.memory_space<smem>>
    %263 = vector.broadcast %262 : f32 to vector<8x16xf32>
    %264 = arith.mulf %263, %220 : vector<8x16xf32>
    %265 = arith.addf %117, %264 : vector<8x16xf32>
    %c73 = arith.constant 73 : index
    %266 = memref.load %arg6[%c73] : memref<128xf32, #tpu.memory_space<smem>>
    %267 = vector.broadcast %266 : f32 to vector<8x16xf32>
    %268 = arith.mulf %267, %199 : vector<8x16xf32>
    %269 = arith.addf %265, %268 : vector<8x16xf32>
    %c81 = arith.constant 81 : index
    %270 = memref.load %arg6[%c81] : memref<128xf32, #tpu.memory_space<smem>>
    %271 = vector.broadcast %270 : f32 to vector<8x16xf32>
    %272 = arith.mulf %271, %226 : vector<8x16xf32>
    %273 = arith.addf %269, %272 : vector<8x16xf32>
    %c89 = arith.constant 89 : index
    %274 = memref.load %arg6[%c89] : memref<128xf32, #tpu.memory_space<smem>>
    %275 = vector.broadcast %274 : f32 to vector<8x16xf32>
    %276 = arith.mulf %275, %211 : vector<8x16xf32>
    %277 = arith.addf %273, %276 : vector<8x16xf32>
    %c97 = arith.constant 97 : index
    %278 = memref.load %arg6[%c97] : memref<128xf32, #tpu.memory_space<smem>>
    %279 = vector.broadcast %278 : f32 to vector<8x16xf32>
    %280 = arith.mulf %279, %199 : vector<8x16xf32>
    %281 = arith.addf %133, %280 : vector<8x16xf32>
    %c105 = arith.constant 105 : index
    %282 = memref.load %arg6[%c105] : memref<128xf32, #tpu.memory_space<smem>>
    %283 = vector.broadcast %282 : f32 to vector<8x16xf32>
    %284 = arith.mulf %283, %223 : vector<8x16xf32>
    %285 = arith.addf %281, %284 : vector<8x16xf32>
    %c113 = arith.constant 113 : index
    %286 = memref.load %arg6[%c113] : memref<128xf32, #tpu.memory_space<smem>>
    %287 = vector.broadcast %286 : f32 to vector<8x16xf32>
    %288 = arith.mulf %287, %211 : vector<8x16xf32>
    %289 = arith.addf %285, %288 : vector<8x16xf32>
    %c121 = arith.constant 121 : index
    %290 = memref.load %arg6[%c121] : memref<128xf32, #tpu.memory_space<smem>>
    %291 = vector.broadcast %290 : f32 to vector<8x16xf32>
    %292 = arith.mulf %291, %229 : vector<8x16xf32>
    %293 = arith.addf %289, %292 : vector<8x16xf32>
    %c5 = arith.constant 5 : index
    %294 = memref.load %arg6[%c5] : memref<128xf32, #tpu.memory_space<smem>>
    %295 = vector.broadcast %294 : f32 to vector<8x16xf32>
    %296 = arith.mulf %295, %214 : vector<8x16xf32>
    %297 = arith.addf %149, %296 : vector<8x16xf32>
    %c13 = arith.constant 13 : index
    %298 = memref.load %arg6[%c13] : memref<128xf32, #tpu.memory_space<smem>>
    %299 = vector.broadcast %298 : f32 to vector<8x16xf32>
    %300 = arith.mulf %299, %209 : vector<8x16xf32>
    %301 = arith.addf %297, %300 : vector<8x16xf32>
    %c21 = arith.constant 21 : index
    %302 = memref.load %arg6[%c21] : memref<128xf32, #tpu.memory_space<smem>>
    %303 = vector.broadcast %302 : f32 to vector<8x16xf32>
    %304 = arith.mulf %303, %220 : vector<8x16xf32>
    %305 = arith.addf %301, %304 : vector<8x16xf32>
    %c29 = arith.constant 29 : index
    %306 = memref.load %arg6[%c29] : memref<128xf32, #tpu.memory_space<smem>>
    %307 = vector.broadcast %306 : f32 to vector<8x16xf32>
    %308 = arith.mulf %307, %199 : vector<8x16xf32>
    %309 = arith.addf %305, %308 : vector<8x16xf32>
    %c37 = arith.constant 37 : index
    %310 = memref.load %arg6[%c37] : memref<128xf32, #tpu.memory_space<smem>>
    %311 = vector.broadcast %310 : f32 to vector<8x16xf32>
    %312 = arith.mulf %311, %209 : vector<8x16xf32>
    %313 = arith.addf %165, %312 : vector<8x16xf32>
    %c45 = arith.constant 45 : index
    %314 = memref.load %arg6[%c45] : memref<128xf32, #tpu.memory_space<smem>>
    %315 = vector.broadcast %314 : f32 to vector<8x16xf32>
    %316 = arith.mulf %315, %217 : vector<8x16xf32>
    %317 = arith.addf %313, %316 : vector<8x16xf32>
    %c53 = arith.constant 53 : index
    %318 = memref.load %arg6[%c53] : memref<128xf32, #tpu.memory_space<smem>>
    %319 = vector.broadcast %318 : f32 to vector<8x16xf32>
    %320 = arith.mulf %319, %199 : vector<8x16xf32>
    %321 = arith.addf %317, %320 : vector<8x16xf32>
    %c61 = arith.constant 61 : index
    %322 = memref.load %arg6[%c61] : memref<128xf32, #tpu.memory_space<smem>>
    %323 = vector.broadcast %322 : f32 to vector<8x16xf32>
    %324 = arith.mulf %323, %223 : vector<8x16xf32>
    %325 = arith.addf %321, %324 : vector<8x16xf32>
    %c69 = arith.constant 69 : index
    %326 = memref.load %arg6[%c69] : memref<128xf32, #tpu.memory_space<smem>>
    %327 = vector.broadcast %326 : f32 to vector<8x16xf32>
    %328 = arith.mulf %327, %220 : vector<8x16xf32>
    %329 = arith.addf %181, %328 : vector<8x16xf32>
    %c77 = arith.constant 77 : index
    %330 = memref.load %arg6[%c77] : memref<128xf32, #tpu.memory_space<smem>>
    %331 = vector.broadcast %330 : f32 to vector<8x16xf32>
    %332 = arith.mulf %331, %199 : vector<8x16xf32>
    %333 = arith.addf %329, %332 : vector<8x16xf32>
    %c85 = arith.constant 85 : index
    %334 = memref.load %arg6[%c85] : memref<128xf32, #tpu.memory_space<smem>>
    %335 = vector.broadcast %334 : f32 to vector<8x16xf32>
    %336 = arith.mulf %335, %226 : vector<8x16xf32>
    %337 = arith.addf %333, %336 : vector<8x16xf32>
    %c93 = arith.constant 93 : index
    %338 = memref.load %arg6[%c93] : memref<128xf32, #tpu.memory_space<smem>>
    %339 = vector.broadcast %338 : f32 to vector<8x16xf32>
    %340 = arith.mulf %339, %211 : vector<8x16xf32>
    %341 = arith.addf %337, %340 : vector<8x16xf32>
    %c101 = arith.constant 101 : index
    %342 = memref.load %arg6[%c101] : memref<128xf32, #tpu.memory_space<smem>>
    %343 = vector.broadcast %342 : f32 to vector<8x16xf32>
    %344 = arith.mulf %343, %199 : vector<8x16xf32>
    %345 = arith.addf %197, %344 : vector<8x16xf32>
    %c109 = arith.constant 109 : index
    %346 = memref.load %arg6[%c109] : memref<128xf32, #tpu.memory_space<smem>>
    %347 = vector.broadcast %346 : f32 to vector<8x16xf32>
    %348 = arith.mulf %347, %223 : vector<8x16xf32>
    %349 = arith.addf %345, %348 : vector<8x16xf32>
    %c117 = arith.constant 117 : index
    %350 = memref.load %arg6[%c117] : memref<128xf32, #tpu.memory_space<smem>>
    %351 = vector.broadcast %350 : f32 to vector<8x16xf32>
    %352 = arith.mulf %351, %211 : vector<8x16xf32>
    %353 = arith.addf %349, %352 : vector<8x16xf32>
    %c125 = arith.constant 125 : index
    %354 = memref.load %arg6[%c125] : memref<128xf32, #tpu.memory_space<smem>>
    %355 = vector.broadcast %354 : f32 to vector<8x16xf32>
    %356 = arith.mulf %355, %229 : vector<8x16xf32>
    %357 = arith.addf %353, %356 : vector<8x16xf32>
    %c0_35 = arith.constant 0 : index
    %c2 = arith.constant 2 : index
    %c0_36 = arith.constant 0 : index
    %c0_37 = arith.constant 0 : index
    %358 = vector.load %arg2[%c0_35, %c2, %c0_36, %c0_37] : memref<1x4x8x16xf32, #tpu.memory_space<vmem>>, vector<1x1x8x16xf32>
    %359 = vector.shape_cast %358 : vector<1x1x8x16xf32> to vector<8x16xf32>
    %360 = vector.extract_strided_slice %359 {offsets = [0, 0], sizes = [1, 16], strides = [1, 1]} : vector<8x16xf32> to vector<1x16xf32>
    %c0_38 = arith.constant 0 : index
    %c2_39 = arith.constant 2 : index
    %c7_40 = arith.constant 7 : index
    %c0_41 = arith.constant 0 : index
    %361 = vector.load %arg3[%c0_38, %c2_39, %c7_40, %c0_41] : memref<1x4x8x16xf32, #tpu.memory_space<vmem>>, vector<1x1x1x16xf32>
    %362 = vector.shape_cast %361 : vector<1x1x1x16xf32> to vector<1x16xf32>
    %363 = arith.select %0, %360, %362 : vector<1x16xf32>
    %364 = vector.extract_strided_slice %359 {offsets = [7, 0], sizes = [1, 16], strides = [1, 1]} : vector<8x16xf32> to vector<1x16xf32>
    %c0_42 = arith.constant 0 : index
    %c2_43 = arith.constant 2 : index
    %c0_44 = arith.constant 0 : index
    %c0_45 = arith.constant 0 : index
    %365 = vector.load %arg4[%c0_42, %c2_43, %c0_44, %c0_45] : memref<1x4x8x16xf32, #tpu.memory_space<vmem>>, vector<1x1x1x16xf32>
    %366 = vector.shape_cast %365 : vector<1x1x1x16xf32> to vector<1x16xf32>
    %367 = arith.select %1, %364, %366 : vector<1x16xf32>
    %368 = vector.extract_strided_slice %359 {offsets = [0, 0], sizes = [7, 16], strides = [1, 1]} : vector<8x16xf32> to vector<7x16xf32>
    %369 = tpu.concatenate %363, %368 in 0 : vector<1x16xf32>, vector<7x16xf32> -> vector<8x16xf32>
    %370 = vector.extract_strided_slice %359 {offsets = [1, 0], sizes = [7, 16], strides = [1, 1]} : vector<8x16xf32> to vector<7x16xf32>
    %371 = tpu.concatenate %370, %367 in 0 : vector<7x16xf32>, vector<1x16xf32> -> vector<8x16xf32>
    %372 = vector.extract_strided_slice %369 {offsets = [0, 0], sizes = [8, 1], strides = [1, 1]} : vector<8x16xf32> to vector<8x1xf32>
    %373 = vector.extract_strided_slice %369 {offsets = [0, 0], sizes = [8, 15], strides = [1, 1]} : vector<8x16xf32> to vector<8x15xf32>
    %374 = tpu.concatenate %372, %373 in 1 : vector<8x1xf32>, vector<8x15xf32> -> vector<8x16xf32>
    %375 = vector.extract_strided_slice %369 {offsets = [0, 1], sizes = [8, 15], strides = [1, 1]} : vector<8x16xf32> to vector<8x15xf32>
    %376 = vector.extract_strided_slice %369 {offsets = [0, 15], sizes = [8, 1], strides = [1, 1]} : vector<8x16xf32> to vector<8x1xf32>
    %377 = tpu.concatenate %375, %376 in 1 : vector<8x15xf32>, vector<8x1xf32> -> vector<8x16xf32>
    %378 = vector.extract_strided_slice %359 {offsets = [0, 0], sizes = [8, 1], strides = [1, 1]} : vector<8x16xf32> to vector<8x1xf32>
    %379 = vector.extract_strided_slice %359 {offsets = [0, 0], sizes = [8, 15], strides = [1, 1]} : vector<8x16xf32> to vector<8x15xf32>
    %380 = tpu.concatenate %378, %379 in 1 : vector<8x1xf32>, vector<8x15xf32> -> vector<8x16xf32>
    %381 = vector.extract_strided_slice %359 {offsets = [0, 1], sizes = [8, 15], strides = [1, 1]} : vector<8x16xf32> to vector<8x15xf32>
    %382 = vector.extract_strided_slice %359 {offsets = [0, 15], sizes = [8, 1], strides = [1, 1]} : vector<8x16xf32> to vector<8x1xf32>
    %383 = tpu.concatenate %381, %382 in 1 : vector<8x15xf32>, vector<8x1xf32> -> vector<8x16xf32>
    %384 = vector.extract_strided_slice %371 {offsets = [0, 0], sizes = [8, 1], strides = [1, 1]} : vector<8x16xf32> to vector<8x1xf32>
    %385 = vector.extract_strided_slice %371 {offsets = [0, 0], sizes = [8, 15], strides = [1, 1]} : vector<8x16xf32> to vector<8x15xf32>
    %386 = tpu.concatenate %384, %385 in 1 : vector<8x1xf32>, vector<8x15xf32> -> vector<8x16xf32>
    %387 = vector.extract_strided_slice %371 {offsets = [0, 1], sizes = [8, 15], strides = [1, 1]} : vector<8x16xf32> to vector<8x15xf32>
    %388 = vector.extract_strided_slice %371 {offsets = [0, 15], sizes = [8, 1], strides = [1, 1]} : vector<8x16xf32> to vector<8x1xf32>
    %389 = tpu.concatenate %387, %388 in 1 : vector<8x15xf32>, vector<8x1xf32> -> vector<8x16xf32>
    %c2_46 = arith.constant 2 : index
    %390 = memref.load %arg6[%c2_46] : memref<128xf32, #tpu.memory_space<smem>>
    %391 = vector.broadcast %390 : f32 to vector<8x16xf32>
    %392 = arith.mulf %391, %374 : vector<8x16xf32>
    %393 = arith.addf %245, %392 : vector<8x16xf32>
    %c10 = arith.constant 10 : index
    %394 = memref.load %arg6[%c10] : memref<128xf32, #tpu.memory_space<smem>>
    %395 = vector.broadcast %394 : f32 to vector<8x16xf32>
    %396 = arith.mulf %395, %369 : vector<8x16xf32>
    %397 = arith.addf %393, %396 : vector<8x16xf32>
    %c18 = arith.constant 18 : index
    %398 = memref.load %arg6[%c18] : memref<128xf32, #tpu.memory_space<smem>>
    %399 = vector.broadcast %398 : f32 to vector<8x16xf32>
    %400 = arith.mulf %399, %380 : vector<8x16xf32>
    %401 = arith.addf %397, %400 : vector<8x16xf32>
    %c26 = arith.constant 26 : index
    %402 = memref.load %arg6[%c26] : memref<128xf32, #tpu.memory_space<smem>>
    %403 = vector.broadcast %402 : f32 to vector<8x16xf32>
    %404 = arith.mulf %403, %359 : vector<8x16xf32>
    %405 = arith.addf %401, %404 : vector<8x16xf32>
    %c34 = arith.constant 34 : index
    %406 = memref.load %arg6[%c34] : memref<128xf32, #tpu.memory_space<smem>>
    %407 = vector.broadcast %406 : f32 to vector<8x16xf32>
    %408 = arith.mulf %407, %369 : vector<8x16xf32>
    %409 = arith.addf %261, %408 : vector<8x16xf32>
    %c42 = arith.constant 42 : index
    %410 = memref.load %arg6[%c42] : memref<128xf32, #tpu.memory_space<smem>>
    %411 = vector.broadcast %410 : f32 to vector<8x16xf32>
    %412 = arith.mulf %411, %377 : vector<8x16xf32>
    %413 = arith.addf %409, %412 : vector<8x16xf32>
    %c50 = arith.constant 50 : index
    %414 = memref.load %arg6[%c50] : memref<128xf32, #tpu.memory_space<smem>>
    %415 = vector.broadcast %414 : f32 to vector<8x16xf32>
    %416 = arith.mulf %415, %359 : vector<8x16xf32>
    %417 = arith.addf %413, %416 : vector<8x16xf32>
    %c58 = arith.constant 58 : index
    %418 = memref.load %arg6[%c58] : memref<128xf32, #tpu.memory_space<smem>>
    %419 = vector.broadcast %418 : f32 to vector<8x16xf32>
    %420 = arith.mulf %419, %383 : vector<8x16xf32>
    %421 = arith.addf %417, %420 : vector<8x16xf32>
    %c66 = arith.constant 66 : index
    %422 = memref.load %arg6[%c66] : memref<128xf32, #tpu.memory_space<smem>>
    %423 = vector.broadcast %422 : f32 to vector<8x16xf32>
    %424 = arith.mulf %423, %380 : vector<8x16xf32>
    %425 = arith.addf %277, %424 : vector<8x16xf32>
    %c74 = arith.constant 74 : index
    %426 = memref.load %arg6[%c74] : memref<128xf32, #tpu.memory_space<smem>>
    %427 = vector.broadcast %426 : f32 to vector<8x16xf32>
    %428 = arith.mulf %427, %359 : vector<8x16xf32>
    %429 = arith.addf %425, %428 : vector<8x16xf32>
    %c82 = arith.constant 82 : index
    %430 = memref.load %arg6[%c82] : memref<128xf32, #tpu.memory_space<smem>>
    %431 = vector.broadcast %430 : f32 to vector<8x16xf32>
    %432 = arith.mulf %431, %386 : vector<8x16xf32>
    %433 = arith.addf %429, %432 : vector<8x16xf32>
    %c90 = arith.constant 90 : index
    %434 = memref.load %arg6[%c90] : memref<128xf32, #tpu.memory_space<smem>>
    %435 = vector.broadcast %434 : f32 to vector<8x16xf32>
    %436 = arith.mulf %435, %371 : vector<8x16xf32>
    %437 = arith.addf %433, %436 : vector<8x16xf32>
    %c98 = arith.constant 98 : index
    %438 = memref.load %arg6[%c98] : memref<128xf32, #tpu.memory_space<smem>>
    %439 = vector.broadcast %438 : f32 to vector<8x16xf32>
    %440 = arith.mulf %439, %359 : vector<8x16xf32>
    %441 = arith.addf %293, %440 : vector<8x16xf32>
    %c106 = arith.constant 106 : index
    %442 = memref.load %arg6[%c106] : memref<128xf32, #tpu.memory_space<smem>>
    %443 = vector.broadcast %442 : f32 to vector<8x16xf32>
    %444 = arith.mulf %443, %383 : vector<8x16xf32>
    %445 = arith.addf %441, %444 : vector<8x16xf32>
    %c114 = arith.constant 114 : index
    %446 = memref.load %arg6[%c114] : memref<128xf32, #tpu.memory_space<smem>>
    %447 = vector.broadcast %446 : f32 to vector<8x16xf32>
    %448 = arith.mulf %447, %371 : vector<8x16xf32>
    %449 = arith.addf %445, %448 : vector<8x16xf32>
    %c122 = arith.constant 122 : index
    %450 = memref.load %arg6[%c122] : memref<128xf32, #tpu.memory_space<smem>>
    %451 = vector.broadcast %450 : f32 to vector<8x16xf32>
    %452 = arith.mulf %451, %389 : vector<8x16xf32>
    %453 = arith.addf %449, %452 : vector<8x16xf32>
    %c6 = arith.constant 6 : index
    %454 = memref.load %arg6[%c6] : memref<128xf32, #tpu.memory_space<smem>>
    %455 = vector.broadcast %454 : f32 to vector<8x16xf32>
    %456 = arith.mulf %455, %374 : vector<8x16xf32>
    %457 = arith.addf %309, %456 : vector<8x16xf32>
    %c14 = arith.constant 14 : index
    %458 = memref.load %arg6[%c14] : memref<128xf32, #tpu.memory_space<smem>>
    %459 = vector.broadcast %458 : f32 to vector<8x16xf32>
    %460 = arith.mulf %459, %369 : vector<8x16xf32>
    %461 = arith.addf %457, %460 : vector<8x16xf32>
    %c22 = arith.constant 22 : index
    %462 = memref.load %arg6[%c22] : memref<128xf32, #tpu.memory_space<smem>>
    %463 = vector.broadcast %462 : f32 to vector<8x16xf32>
    %464 = arith.mulf %463, %380 : vector<8x16xf32>
    %465 = arith.addf %461, %464 : vector<8x16xf32>
    %c30 = arith.constant 30 : index
    %466 = memref.load %arg6[%c30] : memref<128xf32, #tpu.memory_space<smem>>
    %467 = vector.broadcast %466 : f32 to vector<8x16xf32>
    %468 = arith.mulf %467, %359 : vector<8x16xf32>
    %469 = arith.addf %465, %468 : vector<8x16xf32>
    %c38 = arith.constant 38 : index
    %470 = memref.load %arg6[%c38] : memref<128xf32, #tpu.memory_space<smem>>
    %471 = vector.broadcast %470 : f32 to vector<8x16xf32>
    %472 = arith.mulf %471, %369 : vector<8x16xf32>
    %473 = arith.addf %325, %472 : vector<8x16xf32>
    %c46 = arith.constant 46 : index
    %474 = memref.load %arg6[%c46] : memref<128xf32, #tpu.memory_space<smem>>
    %475 = vector.broadcast %474 : f32 to vector<8x16xf32>
    %476 = arith.mulf %475, %377 : vector<8x16xf32>
    %477 = arith.addf %473, %476 : vector<8x16xf32>
    %c54 = arith.constant 54 : index
    %478 = memref.load %arg6[%c54] : memref<128xf32, #tpu.memory_space<smem>>
    %479 = vector.broadcast %478 : f32 to vector<8x16xf32>
    %480 = arith.mulf %479, %359 : vector<8x16xf32>
    %481 = arith.addf %477, %480 : vector<8x16xf32>
    %c62 = arith.constant 62 : index
    %482 = memref.load %arg6[%c62] : memref<128xf32, #tpu.memory_space<smem>>
    %483 = vector.broadcast %482 : f32 to vector<8x16xf32>
    %484 = arith.mulf %483, %383 : vector<8x16xf32>
    %485 = arith.addf %481, %484 : vector<8x16xf32>
    %c70 = arith.constant 70 : index
    %486 = memref.load %arg6[%c70] : memref<128xf32, #tpu.memory_space<smem>>
    %487 = vector.broadcast %486 : f32 to vector<8x16xf32>
    %488 = arith.mulf %487, %380 : vector<8x16xf32>
    %489 = arith.addf %341, %488 : vector<8x16xf32>
    %c78 = arith.constant 78 : index
    %490 = memref.load %arg6[%c78] : memref<128xf32, #tpu.memory_space<smem>>
    %491 = vector.broadcast %490 : f32 to vector<8x16xf32>
    %492 = arith.mulf %491, %359 : vector<8x16xf32>
    %493 = arith.addf %489, %492 : vector<8x16xf32>
    %c86 = arith.constant 86 : index
    %494 = memref.load %arg6[%c86] : memref<128xf32, #tpu.memory_space<smem>>
    %495 = vector.broadcast %494 : f32 to vector<8x16xf32>
    %496 = arith.mulf %495, %386 : vector<8x16xf32>
    %497 = arith.addf %493, %496 : vector<8x16xf32>
    %c94 = arith.constant 94 : index
    %498 = memref.load %arg6[%c94] : memref<128xf32, #tpu.memory_space<smem>>
    %499 = vector.broadcast %498 : f32 to vector<8x16xf32>
    %500 = arith.mulf %499, %371 : vector<8x16xf32>
    %501 = arith.addf %497, %500 : vector<8x16xf32>
    %c102 = arith.constant 102 : index
    %502 = memref.load %arg6[%c102] : memref<128xf32, #tpu.memory_space<smem>>
    %503 = vector.broadcast %502 : f32 to vector<8x16xf32>
    %504 = arith.mulf %503, %359 : vector<8x16xf32>
    %505 = arith.addf %357, %504 : vector<8x16xf32>
    %c110 = arith.constant 110 : index
    %506 = memref.load %arg6[%c110] : memref<128xf32, #tpu.memory_space<smem>>
    %507 = vector.broadcast %506 : f32 to vector<8x16xf32>
    %508 = arith.mulf %507, %383 : vector<8x16xf32>
    %509 = arith.addf %505, %508 : vector<8x16xf32>
    %c118 = arith.constant 118 : index
    %510 = memref.load %arg6[%c118] : memref<128xf32, #tpu.memory_space<smem>>
    %511 = vector.broadcast %510 : f32 to vector<8x16xf32>
    %512 = arith.mulf %511, %371 : vector<8x16xf32>
    %513 = arith.addf %509, %512 : vector<8x16xf32>
    %c126 = arith.constant 126 : index
    %514 = memref.load %arg6[%c126] : memref<128xf32, #tpu.memory_space<smem>>
    %515 = vector.broadcast %514 : f32 to vector<8x16xf32>
    %516 = arith.mulf %515, %389 : vector<8x16xf32>
    %517 = arith.addf %513, %516 : vector<8x16xf32>
    %c0_47 = arith.constant 0 : index
    %c3 = arith.constant 3 : index
    %c0_48 = arith.constant 0 : index
    %c0_49 = arith.constant 0 : index
    %518 = vector.load %arg2[%c0_47, %c3, %c0_48, %c0_49] : memref<1x4x8x16xf32, #tpu.memory_space<vmem>>, vector<1x1x8x16xf32>
    %519 = vector.shape_cast %518 : vector<1x1x8x16xf32> to vector<8x16xf32>
    %520 = vector.extract_strided_slice %519 {offsets = [0, 0], sizes = [1, 16], strides = [1, 1]} : vector<8x16xf32> to vector<1x16xf32>
    %c0_50 = arith.constant 0 : index
    %c3_51 = arith.constant 3 : index
    %c7_52 = arith.constant 7 : index
    %c0_53 = arith.constant 0 : index
    %521 = vector.load %arg3[%c0_50, %c3_51, %c7_52, %c0_53] : memref<1x4x8x16xf32, #tpu.memory_space<vmem>>, vector<1x1x1x16xf32>
    %522 = vector.shape_cast %521 : vector<1x1x1x16xf32> to vector<1x16xf32>
    %523 = arith.select %0, %520, %522 : vector<1x16xf32>
    %524 = vector.extract_strided_slice %519 {offsets = [7, 0], sizes = [1, 16], strides = [1, 1]} : vector<8x16xf32> to vector<1x16xf32>
    %c0_54 = arith.constant 0 : index
    %c3_55 = arith.constant 3 : index
    %c0_56 = arith.constant 0 : index
    %c0_57 = arith.constant 0 : index
    %525 = vector.load %arg4[%c0_54, %c3_55, %c0_56, %c0_57] : memref<1x4x8x16xf32, #tpu.memory_space<vmem>>, vector<1x1x1x16xf32>
    %526 = vector.shape_cast %525 : vector<1x1x1x16xf32> to vector<1x16xf32>
    %527 = arith.select %1, %524, %526 : vector<1x16xf32>
    %528 = vector.extract_strided_slice %519 {offsets = [0, 0], sizes = [7, 16], strides = [1, 1]} : vector<8x16xf32> to vector<7x16xf32>
    %529 = tpu.concatenate %523, %528 in 0 : vector<1x16xf32>, vector<7x16xf32> -> vector<8x16xf32>
    %530 = vector.extract_strided_slice %519 {offsets = [1, 0], sizes = [7, 16], strides = [1, 1]} : vector<8x16xf32> to vector<7x16xf32>
    %531 = tpu.concatenate %530, %527 in 0 : vector<7x16xf32>, vector<1x16xf32> -> vector<8x16xf32>
    %532 = vector.extract_strided_slice %529 {offsets = [0, 0], sizes = [8, 1], strides = [1, 1]} : vector<8x16xf32> to vector<8x1xf32>
    %533 = vector.extract_strided_slice %529 {offsets = [0, 0], sizes = [8, 15], strides = [1, 1]} : vector<8x16xf32> to vector<8x15xf32>
    %534 = tpu.concatenate %532, %533 in 1 : vector<8x1xf32>, vector<8x15xf32> -> vector<8x16xf32>
    %535 = vector.extract_strided_slice %529 {offsets = [0, 1], sizes = [8, 15], strides = [1, 1]} : vector<8x16xf32> to vector<8x15xf32>
    %536 = vector.extract_strided_slice %529 {offsets = [0, 15], sizes = [8, 1], strides = [1, 1]} : vector<8x16xf32> to vector<8x1xf32>
    %537 = tpu.concatenate %535, %536 in 1 : vector<8x15xf32>, vector<8x1xf32> -> vector<8x16xf32>
    %538 = vector.extract_strided_slice %519 {offsets = [0, 0], sizes = [8, 1], strides = [1, 1]} : vector<8x16xf32> to vector<8x1xf32>
    %539 = vector.extract_strided_slice %519 {offsets = [0, 0], sizes = [8, 15], strides = [1, 1]} : vector<8x16xf32> to vector<8x15xf32>
    %540 = tpu.concatenate %538, %539 in 1 : vector<8x1xf32>, vector<8x15xf32> -> vector<8x16xf32>
    %541 = vector.extract_strided_slice %519 {offsets = [0, 1], sizes = [8, 15], strides = [1, 1]} : vector<8x16xf32> to vector<8x15xf32>
    %542 = vector.extract_strided_slice %519 {offsets = [0, 15], sizes = [8, 1], strides = [1, 1]} : vector<8x16xf32> to vector<8x1xf32>
    %543 = tpu.concatenate %541, %542 in 1 : vector<8x15xf32>, vector<8x1xf32> -> vector<8x16xf32>
    %544 = vector.extract_strided_slice %531 {offsets = [0, 0], sizes = [8, 1], strides = [1, 1]} : vector<8x16xf32> to vector<8x1xf32>
    %545 = vector.extract_strided_slice %531 {offsets = [0, 0], sizes = [8, 15], strides = [1, 1]} : vector<8x16xf32> to vector<8x15xf32>
    %546 = tpu.concatenate %544, %545 in 1 : vector<8x1xf32>, vector<8x15xf32> -> vector<8x16xf32>
    %547 = vector.extract_strided_slice %531 {offsets = [0, 1], sizes = [8, 15], strides = [1, 1]} : vector<8x16xf32> to vector<8x15xf32>
    %548 = vector.extract_strided_slice %531 {offsets = [0, 15], sizes = [8, 1], strides = [1, 1]} : vector<8x16xf32> to vector<8x1xf32>
    %549 = tpu.concatenate %547, %548 in 1 : vector<8x15xf32>, vector<8x1xf32> -> vector<8x16xf32>
    %c3_58 = arith.constant 3 : index
    %550 = memref.load %arg6[%c3_58] : memref<128xf32, #tpu.memory_space<smem>>
    %551 = vector.broadcast %550 : f32 to vector<8x16xf32>
    %552 = arith.mulf %551, %534 : vector<8x16xf32>
    %553 = arith.addf %405, %552 : vector<8x16xf32>
    %c11 = arith.constant 11 : index
    %554 = memref.load %arg6[%c11] : memref<128xf32, #tpu.memory_space<smem>>
    %555 = vector.broadcast %554 : f32 to vector<8x16xf32>
    %556 = arith.mulf %555, %529 : vector<8x16xf32>
    %557 = arith.addf %553, %556 : vector<8x16xf32>
    %c19 = arith.constant 19 : index
    %558 = memref.load %arg6[%c19] : memref<128xf32, #tpu.memory_space<smem>>
    %559 = vector.broadcast %558 : f32 to vector<8x16xf32>
    %560 = arith.mulf %559, %540 : vector<8x16xf32>
    %561 = arith.addf %557, %560 : vector<8x16xf32>
    %c27 = arith.constant 27 : index
    %562 = memref.load %arg6[%c27] : memref<128xf32, #tpu.memory_space<smem>>
    %563 = vector.broadcast %562 : f32 to vector<8x16xf32>
    %564 = arith.mulf %563, %519 : vector<8x16xf32>
    %565 = arith.addf %561, %564 : vector<8x16xf32>
    %c35 = arith.constant 35 : index
    %566 = memref.load %arg6[%c35] : memref<128xf32, #tpu.memory_space<smem>>
    %567 = vector.broadcast %566 : f32 to vector<8x16xf32>
    %568 = arith.mulf %567, %529 : vector<8x16xf32>
    %569 = arith.addf %421, %568 : vector<8x16xf32>
    %c43 = arith.constant 43 : index
    %570 = memref.load %arg6[%c43] : memref<128xf32, #tpu.memory_space<smem>>
    %571 = vector.broadcast %570 : f32 to vector<8x16xf32>
    %572 = arith.mulf %571, %537 : vector<8x16xf32>
    %573 = arith.addf %569, %572 : vector<8x16xf32>
    %c51 = arith.constant 51 : index
    %574 = memref.load %arg6[%c51] : memref<128xf32, #tpu.memory_space<smem>>
    %575 = vector.broadcast %574 : f32 to vector<8x16xf32>
    %576 = arith.mulf %575, %519 : vector<8x16xf32>
    %577 = arith.addf %573, %576 : vector<8x16xf32>
    %c59 = arith.constant 59 : index
    %578 = memref.load %arg6[%c59] : memref<128xf32, #tpu.memory_space<smem>>
    %579 = vector.broadcast %578 : f32 to vector<8x16xf32>
    %580 = arith.mulf %579, %543 : vector<8x16xf32>
    %581 = arith.addf %577, %580 : vector<8x16xf32>
    %c67 = arith.constant 67 : index
    %582 = memref.load %arg6[%c67] : memref<128xf32, #tpu.memory_space<smem>>
    %583 = vector.broadcast %582 : f32 to vector<8x16xf32>
    %584 = arith.mulf %583, %540 : vector<8x16xf32>
    %585 = arith.addf %437, %584 : vector<8x16xf32>
    %c75 = arith.constant 75 : index
    %586 = memref.load %arg6[%c75] : memref<128xf32, #tpu.memory_space<smem>>
    %587 = vector.broadcast %586 : f32 to vector<8x16xf32>
    %588 = arith.mulf %587, %519 : vector<8x16xf32>
    %589 = arith.addf %585, %588 : vector<8x16xf32>
    %c83 = arith.constant 83 : index
    %590 = memref.load %arg6[%c83] : memref<128xf32, #tpu.memory_space<smem>>
    %591 = vector.broadcast %590 : f32 to vector<8x16xf32>
    %592 = arith.mulf %591, %546 : vector<8x16xf32>
    %593 = arith.addf %589, %592 : vector<8x16xf32>
    %c91 = arith.constant 91 : index
    %594 = memref.load %arg6[%c91] : memref<128xf32, #tpu.memory_space<smem>>
    %595 = vector.broadcast %594 : f32 to vector<8x16xf32>
    %596 = arith.mulf %595, %531 : vector<8x16xf32>
    %597 = arith.addf %593, %596 : vector<8x16xf32>
    %c99 = arith.constant 99 : index
    %598 = memref.load %arg6[%c99] : memref<128xf32, #tpu.memory_space<smem>>
    %599 = vector.broadcast %598 : f32 to vector<8x16xf32>
    %600 = arith.mulf %599, %519 : vector<8x16xf32>
    %601 = arith.addf %453, %600 : vector<8x16xf32>
    %c107 = arith.constant 107 : index
    %602 = memref.load %arg6[%c107] : memref<128xf32, #tpu.memory_space<smem>>
    %603 = vector.broadcast %602 : f32 to vector<8x16xf32>
    %604 = arith.mulf %603, %543 : vector<8x16xf32>
    %605 = arith.addf %601, %604 : vector<8x16xf32>
    %c115 = arith.constant 115 : index
    %606 = memref.load %arg6[%c115] : memref<128xf32, #tpu.memory_space<smem>>
    %607 = vector.broadcast %606 : f32 to vector<8x16xf32>
    %608 = arith.mulf %607, %531 : vector<8x16xf32>
    %609 = arith.addf %605, %608 : vector<8x16xf32>
    %c123 = arith.constant 123 : index
    %610 = memref.load %arg6[%c123] : memref<128xf32, #tpu.memory_space<smem>>
    %611 = vector.broadcast %610 : f32 to vector<8x16xf32>
    %612 = arith.mulf %611, %549 : vector<8x16xf32>
    %613 = arith.addf %609, %612 : vector<8x16xf32>
    %c7_59 = arith.constant 7 : index
    %614 = memref.load %arg6[%c7_59] : memref<128xf32, #tpu.memory_space<smem>>
    %615 = vector.broadcast %614 : f32 to vector<8x16xf32>
    %616 = arith.mulf %615, %534 : vector<8x16xf32>
    %617 = arith.addf %469, %616 : vector<8x16xf32>
    %c15 = arith.constant 15 : index
    %618 = memref.load %arg6[%c15] : memref<128xf32, #tpu.memory_space<smem>>
    %619 = vector.broadcast %618 : f32 to vector<8x16xf32>
    %620 = arith.mulf %619, %529 : vector<8x16xf32>
    %621 = arith.addf %617, %620 : vector<8x16xf32>
    %c23 = arith.constant 23 : index
    %622 = memref.load %arg6[%c23] : memref<128xf32, #tpu.memory_space<smem>>
    %623 = vector.broadcast %622 : f32 to vector<8x16xf32>
    %624 = arith.mulf %623, %540 : vector<8x16xf32>
    %625 = arith.addf %621, %624 : vector<8x16xf32>
    %c31 = arith.constant 31 : index
    %626 = memref.load %arg6[%c31] : memref<128xf32, #tpu.memory_space<smem>>
    %627 = vector.broadcast %626 : f32 to vector<8x16xf32>
    %628 = arith.mulf %627, %519 : vector<8x16xf32>
    %629 = arith.addf %625, %628 : vector<8x16xf32>
    %c39 = arith.constant 39 : index
    %630 = memref.load %arg6[%c39] : memref<128xf32, #tpu.memory_space<smem>>
    %631 = vector.broadcast %630 : f32 to vector<8x16xf32>
    %632 = arith.mulf %631, %529 : vector<8x16xf32>
    %633 = arith.addf %485, %632 : vector<8x16xf32>
    %c47 = arith.constant 47 : index
    %634 = memref.load %arg6[%c47] : memref<128xf32, #tpu.memory_space<smem>>
    %635 = vector.broadcast %634 : f32 to vector<8x16xf32>
    %636 = arith.mulf %635, %537 : vector<8x16xf32>
    %637 = arith.addf %633, %636 : vector<8x16xf32>
    %c55 = arith.constant 55 : index
    %638 = memref.load %arg6[%c55] : memref<128xf32, #tpu.memory_space<smem>>
    %639 = vector.broadcast %638 : f32 to vector<8x16xf32>
    %640 = arith.mulf %639, %519 : vector<8x16xf32>
    %641 = arith.addf %637, %640 : vector<8x16xf32>
    %c63 = arith.constant 63 : index
    %642 = memref.load %arg6[%c63] : memref<128xf32, #tpu.memory_space<smem>>
    %643 = vector.broadcast %642 : f32 to vector<8x16xf32>
    %644 = arith.mulf %643, %543 : vector<8x16xf32>
    %645 = arith.addf %641, %644 : vector<8x16xf32>
    %c71 = arith.constant 71 : index
    %646 = memref.load %arg6[%c71] : memref<128xf32, #tpu.memory_space<smem>>
    %647 = vector.broadcast %646 : f32 to vector<8x16xf32>
    %648 = arith.mulf %647, %540 : vector<8x16xf32>
    %649 = arith.addf %501, %648 : vector<8x16xf32>
    %c79 = arith.constant 79 : index
    %650 = memref.load %arg6[%c79] : memref<128xf32, #tpu.memory_space<smem>>
    %651 = vector.broadcast %650 : f32 to vector<8x16xf32>
    %652 = arith.mulf %651, %519 : vector<8x16xf32>
    %653 = arith.addf %649, %652 : vector<8x16xf32>
    %c87 = arith.constant 87 : index
    %654 = memref.load %arg6[%c87] : memref<128xf32, #tpu.memory_space<smem>>
    %655 = vector.broadcast %654 : f32 to vector<8x16xf32>
    %656 = arith.mulf %655, %546 : vector<8x16xf32>
    %657 = arith.addf %653, %656 : vector<8x16xf32>
    %c95 = arith.constant 95 : index
    %658 = memref.load %arg6[%c95] : memref<128xf32, #tpu.memory_space<smem>>
    %659 = vector.broadcast %658 : f32 to vector<8x16xf32>
    %660 = arith.mulf %659, %531 : vector<8x16xf32>
    %661 = arith.addf %657, %660 : vector<8x16xf32>
    %c103 = arith.constant 103 : index
    %662 = memref.load %arg6[%c103] : memref<128xf32, #tpu.memory_space<smem>>
    %663 = vector.broadcast %662 : f32 to vector<8x16xf32>
    %664 = arith.mulf %663, %519 : vector<8x16xf32>
    %665 = arith.addf %517, %664 : vector<8x16xf32>
    %c111 = arith.constant 111 : index
    %666 = memref.load %arg6[%c111] : memref<128xf32, #tpu.memory_space<smem>>
    %667 = vector.broadcast %666 : f32 to vector<8x16xf32>
    %668 = arith.mulf %667, %543 : vector<8x16xf32>
    %669 = arith.addf %665, %668 : vector<8x16xf32>
    %c119 = arith.constant 119 : index
    %670 = memref.load %arg6[%c119] : memref<128xf32, #tpu.memory_space<smem>>
    %671 = vector.broadcast %670 : f32 to vector<8x16xf32>
    %672 = arith.mulf %671, %531 : vector<8x16xf32>
    %673 = arith.addf %669, %672 : vector<8x16xf32>
    %c127 = arith.constant 127 : index
    %674 = memref.load %arg6[%c127] : memref<128xf32, #tpu.memory_space<smem>>
    %675 = vector.broadcast %674 : f32 to vector<8x16xf32>
    %676 = arith.mulf %675, %549 : vector<8x16xf32>
    %677 = arith.addf %673, %676 : vector<8x16xf32>
    %cst_60 = arith.constant dense<0.000000e+00> : vector<8x32xf32>
    %678 = tpu.matmul %565, %8, %cst_60 {dimension_numbers = #tpu.dot_dimension_numbers<[1], [0], [0], [1], [0, 0, 1, 1], [], []>} : vector<8x16xf32>, vector<16x32xf32>, vector<8x32xf32> -> vector<8x32xf32>
    %cst_61 = arith.constant dense<0.000000e+00> : vector<8x32xf32>
    %679 = tpu.matmul %581, %15, %cst_61 {dimension_numbers = #tpu.dot_dimension_numbers<[1], [0], [0], [1], [0, 0, 1, 1], [], []>} : vector<8x16xf32>, vector<16x32xf32>, vector<8x32xf32> -> vector<8x32xf32>
    %680 = arith.addf %678, %679 : vector<8x32xf32>
    %cst_62 = arith.constant dense<0.000000e+00> : vector<8x32xf32>
    %681 = tpu.matmul %597, %8, %cst_62 {dimension_numbers = #tpu.dot_dimension_numbers<[1], [0], [0], [1], [0, 0, 1, 1], [], []>} : vector<8x16xf32>, vector<16x32xf32>, vector<8x32xf32> -> vector<8x32xf32>
    %cst_63 = arith.constant dense<0.000000e+00> : vector<8x32xf32>
    %682 = tpu.matmul %613, %15, %cst_63 {dimension_numbers = #tpu.dot_dimension_numbers<[1], [0], [0], [1], [0, 0, 1, 1], [], []>} : vector<8x16xf32>, vector<16x32xf32>, vector<8x32xf32> -> vector<8x32xf32>
    %683 = arith.addf %681, %682 : vector<8x32xf32>
    %cst_64 = arith.constant dense<0.000000e+00> : vector<16x32xf32>
    %684 = tpu.matmul %22, %680, %cst_64 {dimension_numbers = #tpu.dot_dimension_numbers<[1], [0], [0], [1], [0, 0, 1, 1], [], []>} : vector<16x8xf32>, vector<8x32xf32>, vector<16x32xf32> -> vector<16x32xf32>
    %cst_65 = arith.constant dense<0.000000e+00> : vector<16x32xf32>
    %685 = tpu.matmul %29, %683, %cst_65 {dimension_numbers = #tpu.dot_dimension_numbers<[1], [0], [0], [1], [0, 0, 1, 1], [], []>} : vector<16x8xf32>, vector<8x32xf32>, vector<16x32xf32> -> vector<16x32xf32>
    %686 = arith.addf %684, %685 : vector<16x32xf32>
    %c0_66 = arith.constant 0 : index
    %687 = memref.load %arg7[%c0_66] : memref<2xf32, #tpu.memory_space<smem>>
    %688 = vector.broadcast %687 : f32 to vector<16x32xf32>
    %689 = arith.addf %686, %688 : vector<16x32xf32>
    %cst_67 = arith.constant 0.000000e+00 : f32
    %690 = vector.broadcast %cst_67 : f32 to vector<16x32xf32>
    %691 = arith.cmpf oge, %689, %690 : vector<16x32xf32>
    %cst_68 = arith.constant 0.00999999977 : f32
    %692 = vector.broadcast %cst_68 : f32 to vector<16x32xf32>
    %693 = arith.mulf %692, %689 : vector<16x32xf32>
    %694 = arith.select %691, %689, %693 : vector<16x32xi1>, vector<16x32xf32>
    %c0_69 = arith.constant 0 : index
    %c0_70 = arith.constant 0 : index
    %c0_71 = arith.constant 0 : index
    %c0_72 = arith.constant 0 : index
    %695 = vector.load %arg8[%c0_69, %c0_70, %c0_71, %c0_72] : memref<1x4x16x32xf32, #tpu.memory_space<vmem>>, vector<1x1x16x32xf32>
    %696 = vector.shape_cast %695 : vector<1x1x16x32xf32> to vector<16x32xf32>
    %697 = vector.shape_cast %694 : vector<16x32xf32> to vector<1x1x16x32xf32>
    tpu.vector_store %arg8[%c0_69, %c0_70, %c0_71, %c0_72], %697 {strides = array<i32>} : memref<1x4x16x32xf32, #tpu.memory_space<vmem>>, vector<1x1x16x32xf32>,
    %cst_73 = arith.constant dense<0.000000e+00> : vector<8x32xf32>
    %698 = tpu.matmul %629, %8, %cst_73 {dimension_numbers = #tpu.dot_dimension_numbers<[1], [0], [0], [1], [0, 0, 1, 1], [], []>} : vector<8x16xf32>, vector<16x32xf32>, vector<8x32xf32> -> vector<8x32xf32>
    %cst_74 = arith.constant dense<0.000000e+00> : vector<8x32xf32>
    %699 = tpu.matmul %645, %15, %cst_74 {dimension_numbers = #tpu.dot_dimension_numbers<[1], [0], [0], [1], [0, 0, 1, 1], [], []>} : vector<8x16xf32>, vector<16x32xf32>, vector<8x32xf32> -> vector<8x32xf32>
    %700 = arith.addf %698, %699 : vector<8x32xf32>
    %cst_75 = arith.constant dense<0.000000e+00> : vector<8x32xf32>
    %701 = tpu.matmul %661, %8, %cst_75 {dimension_numbers = #tpu.dot_dimension_numbers<[1], [0], [0], [1], [0, 0, 1, 1], [], []>} : vector<8x16xf32>, vector<16x32xf32>, vector<8x32xf32> -> vector<8x32xf32>
    %cst_76 = arith.constant dense<0.000000e+00> : vector<8x32xf32>
    %702 = tpu.matmul %677, %15, %cst_76 {dimension_numbers = #tpu.dot_dimension_numbers<[1], [0], [0], [1], [0, 0, 1, 1], [], []>} : vector<8x16xf32>, vector<16x32xf32>, vector<8x32xf32> -> vector<8x32xf32>
    %703 = arith.addf %701, %702 : vector<8x32xf32>
    %cst_77 = arith.constant dense<0.000000e+00> : vector<16x32xf32>
    %704 = tpu.matmul %22, %700, %cst_77 {dimension_numbers = #tpu.dot_dimension_numbers<[1], [0], [0], [1], [0, 0, 1, 1], [], []>} : vector<16x8xf32>, vector<8x32xf32>, vector<16x32xf32> -> vector<16x32xf32>
    %cst_78 = arith.constant dense<0.000000e+00> : vector<16x32xf32>
    %705 = tpu.matmul %29, %703, %cst_78 {dimension_numbers = #tpu.dot_dimension_numbers<[1], [0], [0], [1], [0, 0, 1, 1], [], []>} : vector<16x8xf32>, vector<8x32xf32>, vector<16x32xf32> -> vector<16x32xf32>
    %706 = arith.addf %704, %705 : vector<16x32xf32>
    %c1_79 = arith.constant 1 : index
    %707 = memref.load %arg7[%c1_79] : memref<2xf32, #tpu.memory_space<smem>>
    %708 = vector.broadcast %707 : f32 to vector<16x32xf32>
    %709 = arith.addf %706, %708 : vector<16x32xf32>
    %cst_80 = arith.constant 0.000000e+00 : f32
    %710 = vector.broadcast %cst_80 : f32 to vector<16x32xf32>
    %711 = arith.cmpf oge, %709, %710 : vector<16x32xf32>
    %cst_81 = arith.constant 0.00999999977 : f32
    %712 = vector.broadcast %cst_81 : f32 to vector<16x32xf32>
    %713 = arith.mulf %712, %709 : vector<16x32xf32>
    %714 = arith.select %711, %709, %713 : vector<16x32xi1>, vector<16x32xf32>
    %c0_82 = arith.constant 0 : index
    %c1_83 = arith.constant 1 : index
    %c0_84 = arith.constant 0 : index
    %c0_85 = arith.constant 0 : index
    %715 = vector.load %arg8[%c0_82, %c1_83, %c0_84, %c0_85] : memref<1x4x16x32xf32, #tpu.memory_space<vmem>>, vector<1x1x16x32xf32>
    %716 = vector.shape_cast %715 : vector<1x1x16x32xf32> to vector<16x32xf32>
    %717 = vector.shape_cast %714 : vector<16x32xf32> to vector<1x1x16x32xf32>
    tpu.vector_store %arg8[%c0_82, %c1_83, %c0_84, %c0_85], %717 {strides = array<i32>} : memref<1x4x16x32xf32, #tpu.memory_space<vmem>>, vector<1x1x16x32xf32>,
    %c0_86 = arith.constant 0 : index
    %c0_87 = arith.constant 0 : index
    %c0_88 = arith.constant 0 : index
    %c0_89 = arith.constant 0 : index
    %718 = vector.load %arg5[%c0_86, %c0_87, %c0_88, %c0_89] : memref<1x2x16x32xf32, #tpu.memory_space<vmem>>, vector<1x2x16x32xf32>
    %719 = vector.shape_cast %718 : vector<1x2x16x32xf32> to vector<2x16x32xf32>
    %c0_90 = arith.constant 0 : index
    %c2_91 = arith.constant 2 : index
    %c0_92 = arith.constant 0 : index
    %c0_93 = arith.constant 0 : index
    %720 = vector.load %arg8[%c0_90, %c2_91, %c0_92, %c0_93] : memref<1x4x16x32xf32, #tpu.memory_space<vmem>>, vector<1x2x16x32xf32>
    %721 = vector.shape_cast %720 : vector<1x2x16x32xf32> to vector<2x16x32xf32>
    %722 = vector.shape_cast %719 : vector<2x16x32xf32> to vector<1x2x16x32xf32>
    tpu.vector_store %arg8[%c0_90, %c2_91, %c0_92, %c0_93], %722 {strides = array<i32>} : memref<1x4x16x32xf32, #tpu.memory_space<vmem>>, vector<1x2x16x32xf32>,
    return
  }
  func.func @transform_0(%arg0: i32, %arg1: i32) -> (i32, i32, i32, i32) {
    %c0_i32 = arith.constant 0 : i32
    %c0_i32_0 = arith.constant 0 : i32
    %c0_i32_1 = arith.constant 0 : i32
    return %arg0, %c0_i32, %arg1, %c0_i32_0 : i32, i32, i32, i32
  }
  func.func @transform_1(%arg0: i32, %arg1: i32) -> (i32, i32, i32, i32) {
    %c1_i32 = arith.constant 1 : i32
    %0 = arith.subi %arg1, %c1_i32 : i32
    %c0_i32 = arith.constant 0 : i32
    %1 = arith.maxsi %0, %c0_i32 : i32
    %c0_i32_0 = arith.constant 0 : i32
    %c0_i32_1 = arith.constant 0 : i32
    %c0_i32_2 = arith.constant 0 : i32
    return %arg0, %c0_i32_0, %1, %c0_i32_1 : i32, i32, i32, i32
  }
  func.func @transform_2(%arg0: i32, %arg1: i32) -> (i32, i32, i32, i32) {
    %c1_i32 = arith.constant 1 : i32
    %0 = arith.addi %arg1, %c1_i32 : i32
    %c1_i32_0 = arith.constant 1 : i32
    %1 = arith.minsi %0, %c1_i32_0 : i32
    %c0_i32 = arith.constant 0 : i32
    %c0_i32_1 = arith.constant 0 : i32
    %c0_i32_2 = arith.constant 0 : i32
    return %arg0, %c0_i32, %1, %c0_i32_1 : i32, i32, i32, i32
  }
  func.func @transform_3(%arg0: i32, %arg1: i32) -> (i32, i32, i32, i32) {
    %c0_i32 = arith.constant 0 : i32
    %c0_i32_0 = arith.constant 0 : i32
    %c0_i32_1 = arith.constant 0 : i32
    return %arg0, %c0_i32, %arg1, %c0_i32_0 : i32, i32, i32, i32
  }
  func.func @transform_4(%arg0: i32, %arg1: i32) -> i32 {
    %c0_i32 = arith.constant 0 : i32
    %c0_i32_0 = arith.constant 0 : i32
    return %c0_i32 : i32
  }
  func.func @transform_5(%arg0: i32, %arg1: i32) -> i32 {
    %c0_i32 = arith.constant 0 : i32
    %c0_i32_0 = arith.constant 0 : i32
    return %c0_i32 : i32
  }
  func.func @transform_6(%arg0: i32, %arg1: i32) -> (i32, i32, i32, i32) {
    %c0_i32 = arith.constant 0 : i32
    %c0_i32_0 = arith.constant 0 : i32
    %c0_i32_1 = arith.constant 0 : i32
    return %arg0, %c0_i32, %arg1, %c0_i32_0 : i32, i32, i32, i32
  }
}

</mosaic_0001>

<llo_original>
// kernel: upsample_forward.1
$region0: #{upsample_forward.1}
  #allocation0 [shape = 'u32[]', space=smem, size = 0x4, offset = 0x4, fixed_abs, tag = 'smem constant byte address 0x4 - core index']
  #allocation1 [shape = 'u32[144,128]{1,0:T(1,128)}', space=vmem, size = 0x12000, scoped, tag = 'internal scratch']
  #allocation12 [shape = 's32[]', space=sflag, size = 0x4, offset = 0, fixed_abs, tag = 'sflag constant byte address 0x0 - dummy sync flag']
  %s0 = inlined_call_operand.vmem [shape: f32[2,4,16,16], index: 0, kind: input, shape index: {}, may-alias: {0,1,2}]
  %s1 = inlined_call_operand.vmem [shape: f32[2,4,16,16], index: 1, kind: input, shape index: {}, may-alias: {0,1,2}]
  %s2 = inlined_call_operand.vmem [shape: f32[2,4,16,16], index: 2, kind: input, shape index: {}, may-alias: {0,1,2}]
  %s3 = inlined_call_operand.vmem [shape: f32[2,2,32,32], index: 3, kind: input, shape index: {}]
  %s4 = inlined_call_operand.vmem [shape: f32[128], index: 4, kind: input, shape index: {}]
  %s5 = inlined_call_operand.vmem [shape: f32[2], index: 5, kind: input, shape index: {}]
  %s6 = inlined_call_operand.hbm [shape: f32[2,4,32,32], index: 6, kind: output, shape index: {}]
  %s7 = sld [smem:[#allocation0]]
  $region217: #{upsample_forward.1} parent=0
    _
  %s9 = ssub.s32 1, %s7
  %s10 = scalar_select 0, %s9, %s7
  $region1: #{upsample_forward.1} parent=0
    #allocation2 [shape = 'u8[32768]{0}', space=vmem, size = 0x8000, scoped, tag = 'input window, operand 0']
    #allocation3 [shape = 'u8[32768]{0}', space=vmem, size = 0x8000, scoped, tag = 'input window, operand 1']
    #allocation4 [shape = 'u8[32768]{0}', space=vmem, size = 0x8000, scoped, tag = 'input window, operand 2']
    #allocation5 [shape = 'u8[32768]{0}', space=vmem, size = 0x8000, scoped, tag = 'input window, operand 3']
    #allocation6 [shape = 'u8[512]{0}', space=smem, size = 0x200, scoped, tag = 'input window, operand 4, single buffered']
    #allocation7 [shape = 's32[2]{0}', space=sflag, size = 0x8, scoped, tag = 'scoped memory for upsample_forward.1']
    #allocation8 [shape = 's32[2]{0}', space=sflag, size = 0x8, scoped, tag = 'scoped memory for upsample_forward.1']
    #allocation9 [shape = 'u8[512]{0}', space=smem, size = 0x200, scoped, tag = 'input window, operand 5, single buffered']
    #allocation10 [shape = 's32[1]{0}', space=sflag, size = 0x4, scoped, tag = 'scoped memory for upsample_forward.1']
    #allocation11 [shape = 'u8[65536]{0}', space=vmem, size = 0x10000, scoped, tag = 'output window, operand 0']
    %11 = vsyncpa [#allocation8], 0
    %12 = vsyncpa [#allocation10], 0
    %13 = vsyncpa [#allocation7], 0
    %s14 = scalar_lea.sflag [#allocation7], 1
    %15 = vsyncpa %s14, 0
    loop: start=0, step=1, limit=6
    $region2: #{upsample_forward.1} parent=1 // loop_pre_header
      _
    $region3: #{upsample_forward.1} parent=1 // loop_header
      %s17 = sphi 0, %s21
      %p18 = scmp.ge.s32.totalorder %s17, 6
      %s24 = sphi 0, %s36
      %s25 = sphi 0, %s32
      %s26 = sphi 0, %s24
      %s27 = sphi 0, %s25
      %s28 = sphi 0, %s26
      %s29 = sphi 0, %s27
      %s41 = sphi 0, %s43
      %s44 = sphi 0, %s41
      %s45 = sphi 0, %s44
      %s61 = sphi 0, %s45
      %s75 = sphi 0, %s77
      %s78 = sphi 0, %s75
      %s79 = sphi 0, %s78
      %s95 = sphi 0, %s79
      %s109 = sphi 0, %s111
      %s112 = sphi 0, %s109
      %s113 = sphi 0, %s112
      %s129 = sphi 0, %s113
      %s137 = sphi 0, %s139
      %s140 = sphi 0, %s137
      %s141 = sphi 0, %s140
      %s157 = sphi 0, %s141
      %s161 = sphi 0, %s161
      %s163 = sphi 0, %s161
      %s164 = sphi 0, %s163
      %s178 = sphi 0, %s164
      %s182 = sphi 0, %s182
      %s184 = sphi 0, %s182
      %s185 = sphi 0, %s184
      %s199 = sphi 0, %s185
      %s207 = sphi 0, %s209
      %s210 = sphi 0, %s207
      %s211 = sphi 0, %s210
      %s227 = sphi 0, %s211
    $region4: #{upsample_forward.1} parent=1 // loop_header_branch
      %20 = sbr.rel (%p18) target = $region8
    $region5: #{upsample_forward.1} parent=1 // loop_body
      %s22 = ssub.s32 %s17, 1
      %s23 = ssub.s32 %s17, 2
      %s30 = sadd.s32 1, %s25
      %p31 = scmp.ge.s32.totalorder %s30, 2
      %s32 = scalar_select %p31, 0, %s30
      %s33 = sadd.s32 1, %s24
      %s34 = scalar_select %p31, %s33, %s24
      %p35 = scmp.ge.s32.totalorder %s34, 2
      %s36 = scalar_select %p35, 0, %s34
      %s37 = ssub.s32 %s24, %s36
      %s38 = ssub.s32 %s25, %s32
      %s39 = sor.u32 %s37, %s38
      %p40 = scmp.eq.s32.totalorder %s39, 0
      %s42 = sadd.s32 %s41, 1
      %s43 = scalar_select %p40, %s41, %s42
      %p46 = pneg %p40
      %p47 = scmp.eq.s32.totalorder %s17, 3
      %p48 = por %p46, %p47
      %p49 = scmp.ne.s32.totalorder %s41, %s44
      %p50 = scmp.eq.s32.totalorder %s17, 0
      %p51 = por %p49, %p50
      %p52 = scmp.ne.s32.totalorder %s41, %s44
      %p53 = scmp.eq.s32.totalorder %s22, 3
      %p54 = por %p52, %p53
      %p55 = scmp.ne.s32.totalorder %s44, %s45
      %p56 = scmp.eq.s32.totalorder %s22, 0
      %p57 = por %p55, %p56
      %p58 = scmp.ne.s32.totalorder %s44, %s45
      %p59 = scmp.eq.s32.totalorder %s23, 3
      %p60 = por %p58, %p59
      %p62 = scmp.ne.s32.totalorder %s45, %s61
      %p63 = scmp.eq.s32.totalorder %s23, 0
      %p64 = por %p62, %p63
      %s65 = ssub.s32 %s25, 1
      %p66 = scmp.gt.s32.totalorder %s65, 0
      %s67 = scalar_select %p66, %s65, 0
      %s68 = ssub.s32 %s32, 1
      %p69 = scmp.gt.s32.totalorder %s68, 0
      %s70 = scalar_select %p69, %s68, 0
      %s71 = ssub.s32 %s24, %s36
      %s72 = ssub.s32 %s67, %s70
      %s73 = sor.u32 %s71, %s72
      %p74 = scmp.eq.s32.totalorder %s73, 0
      %s76 = sadd.s32 %s75, 1
      %s77 = scalar_select %p74, %s75, %s76
      %p80 = pneg %p74
      %p81 = scmp.eq.s32.totalorder %s17, 3
      %p82 = por %p80, %p81
      %p83 = scmp.ne.s32.totalorder %s75, %s78
      %p84 = scmp.eq.s32.totalorder %s17, 0
      %p85 = por %p83, %p84
      %p86 = scmp.ne.s32.totalorder %s75, %s78
      %p87 = scmp.eq.s32.totalorder %s22, 3
      %p88 = por %p86, %p87
      %p89 = scmp.ne.s32.totalorder %s78, %s79
      %p90 = scmp.eq.s32.totalorder %s22, 0
      %p91 = por %p89, %p90
      %p92 = scmp.ne.s32.totalorder %s78, %s79
      %p93 = scmp.eq.s32.totalorder %s23, 3
      %p94 = por %p92, %p93
      %p96 = scmp.ne.s32.totalorder %s79, %s95
      %p97 = scmp.eq.s32.totalorder %s23, 0
      %p98 = por %p96, %p97
      %s99 = sadd.s32 %s25, 1
      %p100 = scmp.lt.s32.totalorder %s99, 1
      %s101 = scalar_select %p100, %s99, 1
      %s102 = sadd.s32 %s32, 1
      %p103 = scmp.lt.s32.totalorder %s102, 1
      %s104 = scalar_select %p103, %s102, 1
      %s105 = ssub.s32 %s24, %s36
      %s106 = ssub.s32 %s101, %s104
      %s107 = sor.u32 %s105, %s106
      %p108 = scmp.eq.s32.totalorder %s107, 0
      %s110 = sadd.s32 %s109, 1
      %s111 = scalar_select %p108, %s109, %s110
      %p114 = pneg %p108
      %p115 = scmp.eq.s32.totalorder %s17, 3
      %p116 = por %p114, %p115
      %p117 = scmp.ne.s32.totalorder %s109, %s112
      %p118 = scmp.eq.s32.totalorder %s17, 0
      %p119 = por %p117, %p118
      %p120 = scmp.ne.s32.totalorder %s109, %s112
      %p121 = scmp.eq.s32.totalorder %s22, 3
      %p122 = por %p120, %p121
      %p123 = scmp.ne.s32.totalorder %s112, %s113
      %p124 = scmp.eq.s32.totalorder %s22, 0
      %p125 = por %p123, %p124
      %p126 = scmp.ne.s32.totalorder %s112, %s113
      %p127 = scmp.eq.s32.totalorder %s23, 3
      %p128 = por %p126, %p127
      %p130 = scmp.ne.s32.totalorder %s113, %s129
      %p131 = scmp.eq.s32.totalorder %s23, 0
      %p132 = por %p130, %p131
      %s133 = ssub.s32 %s24, %s36
      %s134 = ssub.s32 %s25, %s32
      %s135 = sor.u32 %s133, %s134
      %p136 = scmp.eq.s32.totalorder %s135, 0
      %s138 = sadd.s32 %s137, 1
      %s139 = scalar_select %p136, %s137, %s138
      %p142 = pneg %p136
      %p143 = scmp.eq.s32.totalorder %s17, 3
      %p144 = por %p142, %p143
      %p145 = scmp.ne.s32.totalorder %s137, %s140
      %p146 = scmp.eq.s32.totalorder %s17, 0
      %p147 = por %p145, %p146
      %p148 = scmp.ne.s32.totalorder %s137, %s140
      %p149 = scmp.eq.s32.totalorder %s22, 3
      %p150 = por %p148, %p149
      %p151 = scmp.ne.s32.totalorder %s140, %s141
      %p152 = scmp.eq.s32.totalorder %s22, 0
      %p153 = por %p151, %p152
      %p154 = scmp.ne.s32.totalorder %s140, %s141
      %p155 = scmp.eq.s32.totalorder %s23, 3
      %p156 = por %p154, %p155
      %p158 = scmp.ne.s32.totalorder %s141, %s157
      %p159 = scmp.eq.s32.totalorder %s23, 0
      %p160 = por %p158, %p159
      %s162 = sadd.s32 %s161, 1
      %p165 = scmp.eq.s32.totalorder %s17, 3
      %p166 = scmp.ne.s32.totalorder %s161, %s163
      %p167 = scmp.eq.s32.totalorder %s17, 0
      %p168 = por %p166, %p167
      %p169 = scmp.ne.s32.totalorder %s161, %s163
      %p170 = scmp.eq.s32.totalorder %s22, 3
      %p171 = por %p169, %p170
      %p172 = scmp.ne.s32.totalorder %s163, %s164
      %p173 = scmp.eq.s32.totalorder %s22, 0
      %p174 = por %p172, %p173
      %p175 = scmp.ne.s32.totalorder %s163, %s164
      %p176 = scmp.eq.s32.totalorder %s23, 3
      %p177 = por %p175, %p176
      %p179 = scmp.ne.s32.totalorder %s164, %s178
      %p180 = scmp.eq.s32.totalorder %s23, 0
      %p181 = por %p179, %p180
      %s183 = sadd.s32 %s182, 1
      %p186 = scmp.eq.s32.totalorder %s17, 3
      %p187 = scmp.ne.s32.totalorder %s182, %s184
      %p188 = scmp.eq.s32.totalorder %s17, 0
      %p189 = por %p187, %p188
      %p190 = scmp.ne.s32.totalorder %s182, %s184
      %p191 = scmp.eq.s32.totalorder %s22, 3
      %p192 = por %p190, %p191
      %p193 = scmp.ne.s32.totalorder %s184, %s185
      %p194 = scmp.eq.s32.totalorder %s22, 0
      %p195 = por %p193, %p194
      %p196 = scmp.ne.s32.totalorder %s184, %s185
      %p197 = scmp.eq.s32.totalorder %s23, 3
      %p198 = por %p196, %p197
      %p200 = scmp.ne.s32.totalorder %s185, %s199
      %p201 = scmp.eq.s32.totalorder %s23, 0
      %p202 = por %p200, %p201
      %s203 = ssub.s32 %s24, %s36
      %s204 = ssub.s32 %s25, %s32
      %s205 = sor.u32 %s203, %s204
      %p206 = scmp.eq.s32.totalorder %s205, 0
      %s208 = sadd.s32 %s207, 1
      %s209 = scalar_select %p206, %s207, %s208
      %p212 = pneg %p206
      %p213 = scmp.eq.s32.totalorder %s17, 3
      %p214 = por %p212, %p213
      %p215 = scmp.ne.s32.totalorder %s207, %s210
      %p216 = scmp.eq.s32.totalorder %s17, 0
      %p217 = por %p215, %p216
      %p218 = scmp.ne.s32.totalorder %s207, %s210
      %p219 = scmp.eq.s32.totalorder %s22, 3
      %p220 = por %p218, %p219
      %p221 = scmp.ne.s32.totalorder %s210, %s211
      %p222 = scmp.eq.s32.totalorder %s22, 0
      %p223 = por %p221, %p222
      %p224 = scmp.ne.s32.totalorder %s210, %s211
      %p225 = scmp.eq.s32.totalorder %s23, 3
      %p226 = por %p224, %p225
      %p228 = scmp.ne.s32.totalorder %s211, %s227
      %p229 = scmp.eq.s32.totalorder %s23, 0
      %p230 = por %p228, %p229
      %p231 = scmp.le.s32.totalorder 1, %s17
      %p232 = scmp.lt.s32.totalorder %s17, 5
      %p233 = pnand %p231, %p232
      %p234 = pneg %p233
      // Predicated region
      $region9: #{upsample_forward.1} parent=5 // pred_check
        _
      $region10: #{upsample_forward.1} parent=5 // pred_check_branch
        %236 = sbr.rel (%p233) target = $region12
      $region11: #{upsample_forward.1} parent=5 // pred_region
        %s237 = ssub.s32 %s17, 1
        // Predicated region
        $region13: #{upsample_forward.1} parent=11 // pred_check
          %p238 = pneg %p174
        $region14: #{upsample_forward.1} parent=11 // pred_check_branch
          %240 = sbr.rel (%p238) target = $region16
        $region15: #{upsample_forward.1} parent=11 // pred_region
          %s242 = ssub.s32 16, 16
          %243 = vsyncadd [#allocation8], %s242
          %s245 = sshll.u32 %s4, 4
          %s246 = int_to_ptr.vmem [resolvable:$true] %s245
          %248 = dma.vmem_to_smem %s246, 16, [#allocation6], [#allocation8]
        $region16: #{upsample_forward.1} parent=11 // pred_fallthru
          _
        // Predicated region
        $region17: #{upsample_forward.1} parent=11 // pred_check
          %p249 = pneg %p195
        $region18: #{upsample_forward.1} parent=11 // pred_check_branch
          %251 = sbr.rel (%p249) target = $region20
        $region19: #{upsample_forward.1} parent=11 // pred_region
          %s253 = ssub.s32 16, 16
          %254 = vsyncadd [#allocation10], %s253
          %s256 = sshll.u32 %s5, 4
          %s257 = int_to_ptr.vmem [resolvable:$true] %s256
          %259 = dma.vmem_to_smem %s257, 16, [#allocation9], [#allocation10]
        $region20: #{upsample_forward.1} parent=11 // pred_fallthru
          _
      $region12: #{upsample_forward.1} parent=5 // pred_fallthru
        _
      %p260 = scmp.lt.s32.totalorder %s17, 4
      // Predicated region
      $region21: #{upsample_forward.1} parent=5 // pred_check
        %p261 = pneg %p260
      $region22: #{upsample_forward.1} parent=5 // pred_check_branch
        %263 = sbr.rel (%p261) target = $region24
      $region23: #{upsample_forward.1} parent=5 // pred_region
        // Predicated region
        $region25: #{upsample_forward.1} parent=23 // pred_check
          %p264 = pneg %p51
        $region26: #{upsample_forward.1} parent=23 // pred_check_branch
          %266 = sbr.rel (%p264) target = $region28
        $region27: #{upsample_forward.1} parent=23 // pred_region
          %s267 = sand.u32 %s41, 1
          %s268 = sand.u32 %s41, 1
          %s269 = smul.addr %s268, 32
          %s270 = scalar_lea.vmem [#allocation2], %s269
          %s271 = smul.addr %s24, 8
          %s272 = sadd.s32 %s25, %s271
          %s273 = smul.addr %s272, 8
          %s274 = scalar_lea.vmem %s0, %s273
          // Predicated region
          $region29: #{upsample_forward.1} parent=27 // pred_check
            _
          $region30: #{upsample_forward.1} parent=27 // pred_check_branch
            %276 = sbr.rel (0) target = $region32
          $region31: #{upsample_forward.1} parent=27 // pred_region
            // Predicated region
            $region33: #{upsample_forward.1} parent=31 // pred_check
              _
            $region34: #{upsample_forward.1} parent=31 // pred_check_branch
              %278 = sbr.rel (0) target = $region36
            $region35: #{upsample_forward.1} parent=31 // pred_region
              // Predicated region
              $region48: #{upsample_forward.1} parent=35 // pred_check
                _
              $region49: #{upsample_forward.1} parent=35 // pred_check_branch
                %300 = sbr.rel (0) target = $region51
              $region50: #{upsample_forward.1} parent=35 // pred_region
                loop: start=0, step=1, limit=1
                $region52: #{upsample_forward.1} parent=50 // loop_pre_header
                  _
                $region53: #{upsample_forward.1} parent=50 // loop_header
                  %s302 = sphi 0, %s306
                  %p303 = scmp.ge.s32.totalorder %s302, 1
                  %s307 = sphi %s274, %s274
                  %s308 = sphi %s270, %s270
                $region54: #{upsample_forward.1} parent=50 // loop_header_branch
                  %305 = sbr.rel (%p303) target = $region58
                $region55: #{upsample_forward.1} parent=50 // loop_body
                  %v309 = vld [vmem:[%s307] sm:$0xff]
                  %310 = vst [vmem:[%s308] sm:$0xff] %v309
                  %v311 = vld [vmem:[%s307 + $0x10] sm:$0xff]
                  %312 = vst [vmem:[%s308 + $0x8] sm:$0xff] %v311
                  %v313 = vld [vmem:[%s307 + $0x20] sm:$0xff]
                  %314 = vst [vmem:[%s308 + $0x10] sm:$0xff] %v313
                  %v315 = vld [vmem:[%s307 + $0x30] sm:$0xff]
                  %316 = vst [vmem:[%s308 + $0x18] sm:$0xff] %v315
                $region56: #{upsample_forward.1} parent=50 // loop_footer
                  %s306 = sadd.s32 1, %s302
                $region57: #{upsample_forward.1} parent=50 // loop_footer_branch
                  %301 = sbr.rel target = $region53
                $region58: #{upsample_forward.1} parent=50 // loop_exit
                  _
              $region51: #{upsample_forward.1} parent=35 // pred_fallthru
                _
              // Predicated region
              $region59: #{upsample_forward.1} parent=35 // pred_check
                _
              $region60: #{upsample_forward.1} parent=35 // pred_check_branch
                %318 = sbr.rel target = $region62
              $region61: #{upsample_forward.1} parent=35 // pred_region
                _
              $region62: #{upsample_forward.1} parent=35 // pred_fallthru
                _
            $region36: #{upsample_forward.1} parent=31 // pred_fallthru
              _
            // Predicated region
            $region37: #{upsample_forward.1} parent=31 // pred_check
              _
            $region38: #{upsample_forward.1} parent=31 // pred_check_branch
              %280 = sbr.rel target = $region40
            $region39: #{upsample_forward.1} parent=31 // pred_region
              %s282 = ssub.s32 256, 1
              loop: start=0, step=1, limit=1
              $region41: #{upsample_forward.1} parent=39 // loop_pre_header
                _
              $region42: #{upsample_forward.1} parent=39 // loop_header
                %s284 = sphi 0, %s288
                %p285 = scmp.ge.s32.totalorder %s284, 1
                %s289 = sphi %s274, %s274
                %s290 = sphi %s270, %s270
              $region43: #{upsample_forward.1} parent=39 // loop_header_branch
                %287 = sbr.rel (%p285) target = $region47
              $region44: #{upsample_forward.1} parent=39 // loop_body
                %v291 = vld [vmem:[%s289] sm:%s282]
                %292 = vst [vmem:[%s290] sm:%s282] %v291
                %v293 = vld [vmem:[%s289 + $0x10] sm:%s282]
                %294 = vst [vmem:[%s290 + $0x8] sm:%s282] %v293
                %v295 = vld [vmem:[%s289 + $0x20] sm:%s282]
                %296 = vst [vmem:[%s290 + $0x10] sm:%s282] %v295
                %v297 = vld [vmem:[%s289 + $0x30] sm:%s282]
                %298 = vst [vmem:[%s290 + $0x18] sm:%s282] %v297
              $region45: #{upsample_forward.1} parent=39 // loop_footer
                %s288 = sadd.s32 1, %s284
              $region46: #{upsample_forward.1} parent=39 // loop_footer_branch
                %283 = sbr.rel target = $region42
              $region47: #{upsample_forward.1} parent=39 // loop_exit
                _
            $region40: #{upsample_forward.1} parent=31 // pred_fallthru
              _
          $region32: #{upsample_forward.1} parent=27 // pred_fallthru
            _
          %319 = vnop
        $region28: #{upsample_forward.1} parent=23 // pred_fallthru
          _
        // Predicated region
        $region63: #{upsample_forward.1} parent=23 // pred_check
          %p320 = pneg %p85
        $region64: #{upsample_forward.1} parent=23 // pred_check_branch
          %322 = sbr.rel (%p320) target = $region66
        $region65: #{upsample_forward.1} parent=23 // pred_region
          %s323 = sand.u32 %s75, 1
          %s324 = sand.u32 %s75, 1
          %s325 = smul.addr %s324, 32
          %s326 = scalar_lea.vmem [#allocation3], %s325
          %s327 = ssub.s32 %s25, 1
          %p328 = scmp.gt.s32.totalorder %s327, 0
          %s329 = scalar_select %p328, %s327, 0
          %s330 = smul.addr %s24, 8
          %s331 = sadd.s32 %s329, %s330
          %s332 = smul.addr %s331, 8
          %s333 = scalar_lea.vmem %s1, %s332
          // Predicated region
          $region67: #{upsample_forward.1} parent=65 // pred_check
            _
          $region68: #{upsample_forward.1} parent=65 // pred_check_branch
            %335 = sbr.rel (0) target = $region70
          $region69: #{upsample_forward.1} parent=65 // pred_region
            // Predicated region
            $region71: #{upsample_forward.1} parent=69 // pred_check
              _
            $region72: #{upsample_forward.1} parent=69 // pred_check_branch
              %337 = sbr.rel (0) target = $region74
            $region73: #{upsample_forward.1} parent=69 // pred_region
              // Predicated region
              $region86: #{upsample_forward.1} parent=73 // pred_check
                _
              $region87: #{upsample_forward.1} parent=73 // pred_check_branch
                %359 = sbr.rel (0) target = $region89
              $region88: #{upsample_forward.1} parent=73 // pred_region
                loop: start=0, step=1, limit=1
                $region90: #{upsample_forward.1} parent=88 // loop_pre_header
                  _
                $region91: #{upsample_forward.1} parent=88 // loop_header
                  %s361 = sphi 0, %s365
                  %p362 = scmp.ge.s32.totalorder %s361, 1
                  %s366 = sphi %s333, %s333
                  %s367 = sphi %s326, %s326
                $region92: #{upsample_forward.1} parent=88 // loop_header_branch
                  %364 = sbr.rel (%p362) target = $region96
                $region93: #{upsample_forward.1} parent=88 // loop_body
                  %v368 = vld [vmem:[%s366] sm:$0xff]
                  %369 = vst [vmem:[%s367] sm:$0xff] %v368
                  %v370 = vld [vmem:[%s366 + $0x10] sm:$0xff]
                  %371 = vst [vmem:[%s367 + $0x8] sm:$0xff] %v370
                  %v372 = vld [vmem:[%s366 + $0x20] sm:$0xff]
                  %373 = vst [vmem:[%s367 + $0x10] sm:$0xff] %v372
                  %v374 = vld [vmem:[%s366 + $0x30] sm:$0xff]
                  %375 = vst [vmem:[%s367 + $0x18] sm:$0xff] %v374
                $region94: #{upsample_forward.1} parent=88 // loop_footer
                  %s365 = sadd.s32 1, %s361
                $region95: #{upsample_forward.1} parent=88 // loop_footer_branch
                  %360 = sbr.rel target = $region91
                $region96: #{upsample_forward.1} parent=88 // loop_exit
                  _
              $region89: #{upsample_forward.1} parent=73 // pred_fallthru
                _
              // Predicated region
              $region97: #{upsample_forward.1} parent=73 // pred_check
                _
              $region98: #{upsample_forward.1} parent=73 // pred_check_branch
                %377 = sbr.rel target = $region100
              $region99: #{upsample_forward.1} parent=73 // pred_region
                _
              $region100: #{upsample_forward.1} parent=73 // pred_fallthru
                _
            $region74: #{upsample_forward.1} parent=69 // pred_fallthru
              _
            // Predicated region
            $region75: #{upsample_forward.1} parent=69 // pred_check
              _
            $region76: #{upsample_forward.1} parent=69 // pred_check_branch
              %339 = sbr.rel target = $region78
            $region77: #{upsample_forward.1} parent=69 // pred_region
              %s341 = ssub.s32 256, 1
              loop: start=0, step=1, limit=1
              $region79: #{upsample_forward.1} parent=77 // loop_pre_header
                _
              $region80: #{upsample_forward.1} parent=77 // loop_header
                %s343 = sphi 0, %s347
                %p344 = scmp.ge.s32.totalorder %s343, 1
                %s348 = sphi %s333, %s333
                %s349 = sphi %s326, %s326
              $region81: #{upsample_forward.1} parent=77 // loop_header_branch
                %346 = sbr.rel (%p344) target = $region85
              $region82: #{upsample_forward.1} parent=77 // loop_body
                %v350 = vld [vmem:[%s348] sm:%s341]
                %351 = vst [vmem:[%s349] sm:%s341] %v350
                %v352 = vld [vmem:[%s348 + $0x10] sm:%s341]
                %353 = vst [vmem:[%s349 + $0x8] sm:%s341] %v352
                %v354 = vld [vmem:[%s348 + $0x20] sm:%s341]
                %355 = vst [vmem:[%s349 + $0x10] sm:%s341] %v354
                %v356 = vld [vmem:[%s348 + $0x30] sm:%s341]
                %357 = vst [vmem:[%s349 + $0x18] sm:%s341] %v356
              $region83: #{upsample_forward.1} parent=77 // loop_footer
                %s347 = sadd.s32 1, %s343
              $region84: #{upsample_forward.1} parent=77 // loop_footer_branch
                %342 = sbr.rel target = $region80
              $region85: #{upsample_forward.1} parent=77 // loop_exit
                _
            $region78: #{upsample_forward.1} parent=69 // pred_fallthru
              _
          $region70: #{upsample_forward.1} parent=65 // pred_fallthru
            _
          %378 = vnop
        $region66: #{upsample_forward.1} parent=23 // pred_fallthru
          _
        // Predicated region
        $region101: #{upsample_forward.1} parent=23 // pred_check
          %p379 = pneg %p119
        $region102: #{upsample_forward.1} parent=23 // pred_check_branch
          %381 = sbr.rel (%p379) target = $region104
        $region103: #{upsample_forward.1} parent=23 // pred_region
          %s382 = sand.u32 %s109, 1
          %s383 = sand.u32 %s109, 1
          %s384 = smul.addr %s383, 32
          %s385 = scalar_lea.vmem [#allocation4], %s384
          %s386 = sadd.s32 %s25, 1
          %p387 = scmp.lt.s32.totalorder %s386, 1
          %s388 = scalar_select %p387, %s386, 1
          %s389 = smul.addr %s24, 8
          %s390 = sadd.s32 %s388, %s389
          %s391 = smul.addr %s390, 8
          %s392 = scalar_lea.vmem %s2, %s391
          // Predicated region
          $region105: #{upsample_forward.1} parent=103 // pred_check
            _
          $region106: #{upsample_forward.1} parent=103 // pred_check_branch
            %394 = sbr.rel (0) target = $region108
          $region107: #{upsample_forward.1} parent=103 // pred_region
            // Predicated region
            $region109: #{upsample_forward.1} parent=107 // pred_check
              _
            $region110: #{upsample_forward.1} parent=107 // pred_check_branch
              %396 = sbr.rel (0) target = $region112
            $region111: #{upsample_forward.1} parent=107 // pred_region
              // Predicated region
              $region124: #{upsample_forward.1} parent=111 // pred_check
                _
              $region125: #{upsample_forward.1} parent=111 // pred_check_branch
                %418 = sbr.rel (0) target = $region127
              $region126: #{upsample_forward.1} parent=111 // pred_region
                loop: start=0, step=1, limit=1
                $region128: #{upsample_forward.1} parent=126 // loop_pre_header
                  _
                $region129: #{upsample_forward.1} parent=126 // loop_header
                  %s420 = sphi 0, %s424
                  %p421 = scmp.ge.s32.totalorder %s420, 1
                  %s425 = sphi %s392, %s392
                  %s426 = sphi %s385, %s385
                $region130: #{upsample_forward.1} parent=126 // loop_header_branch
                  %423 = sbr.rel (%p421) target = $region134
                $region131: #{upsample_forward.1} parent=126 // loop_body
                  %v427 = vld [vmem:[%s425] sm:$0xff]
                  %428 = vst [vmem:[%s426] sm:$0xff] %v427
                  %v429 = vld [vmem:[%s425 + $0x10] sm:$0xff]
                  %430 = vst [vmem:[%s426 + $0x8] sm:$0xff] %v429
                  %v431 = vld [vmem:[%s425 + $0x20] sm:$0xff]
                  %432 = vst [vmem:[%s426 + $0x10] sm:$0xff] %v431
                  %v433 = vld [vmem:[%s425 + $0x30] sm:$0xff]
                  %434 = vst [vmem:[%s426 + $0x18] sm:$0xff] %v433
                $region132: #{upsample_forward.1} parent=126 // loop_footer
                  %s424 = sadd.s32 1, %s420
                $region133: #{upsample_forward.1} parent=126 // loop_footer_branch
                  %419 = sbr.rel target = $region129
                $region134: #{upsample_forward.1} parent=126 // loop_exit
                  _
              $region127: #{upsample_forward.1} parent=111 // pred_fallthru
                _
              // Predicated region
              $region135: #{upsample_forward.1} parent=111 // pred_check
                _
              $region136: #{upsample_forward.1} parent=111 // pred_check_branch
                %436 = sbr.rel target = $region138
              $region137: #{upsample_forward.1} parent=111 // pred_region
                _
              $region138: #{upsample_forward.1} parent=111 // pred_fallthru
                _
            $region112: #{upsample_forward.1} parent=107 // pred_fallthru
              _
            // Predicated region
            $region113: #{upsample_forward.1} parent=107 // pred_check
              _
            $region114: #{upsample_forward.1} parent=107 // pred_check_branch
              %398 = sbr.rel target = $region116
            $region115: #{upsample_forward.1} parent=107 // pred_region
              %s400 = ssub.s32 256, 1
              loop: start=0, step=1, limit=1
              $region117: #{upsample_forward.1} parent=115 // loop_pre_header
                _
              $region118: #{upsample_forward.1} parent=115 // loop_header
                %s402 = sphi 0, %s406
                %p403 = scmp.ge.s32.totalorder %s402, 1
                %s407 = sphi %s392, %s392
                %s408 = sphi %s385, %s385
              $region119: #{upsample_forward.1} parent=115 // loop_header_branch
                %405 = sbr.rel (%p403) target = $region123
              $region120: #{upsample_forward.1} parent=115 // loop_body
                %v409 = vld [vmem:[%s407] sm:%s400]
                %410 = vst [vmem:[%s408] sm:%s400] %v409
                %v411 = vld [vmem:[%s407 + $0x10] sm:%s400]
                %412 = vst [vmem:[%s408 + $0x8] sm:%s400] %v411
                %v413 = vld [vmem:[%s407 + $0x20] sm:%s400]
                %414 = vst [vmem:[%s408 + $0x10] sm:%s400] %v413
                %v415 = vld [vmem:[%s407 + $0x30] sm:%s400]
                %416 = vst [vmem:[%s408 + $0x18] sm:%s400] %v415
              $region121: #{upsample_forward.1} parent=115 // loop_footer
                %s406 = sadd.s32 1, %s402
              $region122: #{upsample_forward.1} parent=115 // loop_footer_branch
                %401 = sbr.rel target = $region118
              $region123: #{upsample_forward.1} parent=115 // loop_exit
                _
            $region116: #{upsample_forward.1} parent=107 // pred_fallthru
              _
          $region108: #{upsample_forward.1} parent=103 // pred_fallthru
            _
          %437 = vnop
        $region104: #{upsample_forward.1} parent=23 // pred_fallthru
          _
        // Predicated region
        $region139: #{upsample_forward.1} parent=23 // pred_check
          %p438 = pneg %p147
        $region140: #{upsample_forward.1} parent=23 // pred_check_branch
          %440 = sbr.rel (%p438) target = $region142
        $region141: #{upsample_forward.1} parent=23 // pred_region
          %s441 = sand.u32 %s137, 1
          %s442 = sand.u32 %s137, 1
          %s443 = smul.addr %s442, 32
          %s444 = scalar_lea.vmem [#allocation5], %s443
          %s445 = smul.u32 2, %s25
          %s446 = smul.addr %s24, 8
          %s447 = sadd.s32 %s445, %s446
          %s448 = smul.addr %s447, 8
          %s449 = scalar_lea.vmem %s3, %s448
          // Predicated region
          $region143: #{upsample_forward.1} parent=141 // pred_check
            _
          $region144: #{upsample_forward.1} parent=141 // pred_check_branch
            %451 = sbr.rel (0) target = $region146
          $region145: #{upsample_forward.1} parent=141 // pred_region
            // Predicated region
            $region147: #{upsample_forward.1} parent=145 // pred_check
              _
            $region148: #{upsample_forward.1} parent=145 // pred_check_branch
              %453 = sbr.rel (0) target = $region150
            $region149: #{upsample_forward.1} parent=145 // pred_region
              // Predicated region
              $region162: #{upsample_forward.1} parent=149 // pred_check
                _
              $region163: #{upsample_forward.1} parent=149 // pred_check_branch
                %475 = sbr.rel (0) target = $region165
              $region164: #{upsample_forward.1} parent=149 // pred_region
                loop: start=0, step=1, limit=1
                $region166: #{upsample_forward.1} parent=164 // loop_pre_header
                  _
                $region167: #{upsample_forward.1} parent=164 // loop_header
                  %s477 = sphi 0, %s481
                  %p478 = scmp.ge.s32.totalorder %s477, 1
                  %s482 = sphi %s449, %s449
                  %s483 = sphi %s444, %s444
                $region168: #{upsample_forward.1} parent=164 // loop_header_branch
                  %480 = sbr.rel (%p478) target = $region172
                $region169: #{upsample_forward.1} parent=164 // loop_body
                  %v484 = vld [vmem:[%s482] sm:$0xff]
                  %485 = vst [vmem:[%s483] sm:$0xff] %v484
                  %v486 = vld [vmem:[%s482 + $0x8] sm:$0xff]
                  %487 = vst [vmem:[%s483 + $0x8] sm:$0xff] %v486
                  %v488 = vld [vmem:[%s482 + $0x20] sm:$0xff]
                  %489 = vst [vmem:[%s483 + $0x10] sm:$0xff] %v488
                  %v490 = vld [vmem:[%s482 + $0x28] sm:$0xff]
                  %491 = vst [vmem:[%s483 + $0x18] sm:$0xff] %v490
                $region170: #{upsample_forward.1} parent=164 // loop_footer
                  %s481 = sadd.s32 1, %s477
                $region171: #{upsample_forward.1} parent=164 // loop_footer_branch
                  %476 = sbr.rel target = $region167
                $region172: #{upsample_forward.1} parent=164 // loop_exit
                  _
              $region165: #{upsample_forward.1} parent=149 // pred_fallthru
                _
              // Predicated region
              $region173: #{upsample_forward.1} parent=149 // pred_check
                _
              $region174: #{upsample_forward.1} parent=149 // pred_check_branch
                %493 = sbr.rel target = $region176
              $region175: #{upsample_forward.1} parent=149 // pred_region
                _
              $region176: #{upsample_forward.1} parent=149 // pred_fallthru
                _
            $region150: #{upsample_forward.1} parent=145 // pred_fallthru
              _
            // Predicated region
            $region151: #{upsample_forward.1} parent=145 // pred_check
              _
            $region152: #{upsample_forward.1} parent=145 // pred_check_branch
              %455 = sbr.rel target = $region154
            $region153: #{upsample_forward.1} parent=145 // pred_region
              %s457 = ssub.s32 256, 1
              loop: start=0, step=1, limit=1
              $region155: #{upsample_forward.1} parent=153 // loop_pre_header
                _
              $region156: #{upsample_forward.1} parent=153 // loop_header
                %s459 = sphi 0, %s463
                %p460 = scmp.ge.s32.totalorder %s459, 1
                %s464 = sphi %s449, %s449
                %s465 = sphi %s444, %s444
              $region157: #{upsample_forward.1} parent=153 // loop_header_branch
                %462 = sbr.rel (%p460) target = $region161
              $region158: #{upsample_forward.1} parent=153 // loop_body
                %v466 = vld [vmem:[%s464] sm:%s457]
                %467 = vst [vmem:[%s465] sm:%s457] %v466
                %v468 = vld [vmem:[%s464 + $0x8] sm:%s457]
                %469 = vst [vmem:[%s465 + $0x8] sm:%s457] %v468
                %v470 = vld [vmem:[%s464 + $0x20] sm:%s457]
                %471 = vst [vmem:[%s465 + $0x10] sm:%s457] %v470
                %v472 = vld [vmem:[%s464 + $0x28] sm:%s457]
                %473 = vst [vmem:[%s465 + $0x18] sm:%s457] %v472
              $region159: #{upsample_forward.1} parent=153 // loop_footer
                %s463 = sadd.s32 1, %s459
              $region160: #{upsample_forward.1} parent=153 // loop_footer_branch
                %458 = sbr.rel target = $region156
              $region161: #{upsample_forward.1} parent=153 // loop_exit
                _
            $region154: #{upsample_forward.1} parent=145 // pred_fallthru
              _
          $region146: #{upsample_forward.1} parent=141 // pred_fallthru
            _
          %494 = vnop
        $region142: #{upsample_forward.1} parent=23 // pred_fallthru
          _
      $region24: #{upsample_forward.1} parent=5 // pred_fallthru
        _
      %p495 = scmp.le.s32.totalorder 1, %s17
      %p496 = scmp.lt.s32.totalorder %s17, 5
      %p497 = pnand %p495, %p496
      %p498 = pneg %p497
      // Predicated region
      $region177: #{upsample_forward.1} parent=5 // pred_check
        _
      $region178: #{upsample_forward.1} parent=5 // pred_check_branch
        %500 = sbr.rel (%p497) target = $region180
      $region179: #{upsample_forward.1} parent=5 // pred_region
        %s501 = ssub.s32 %s17, 1
        %s502 = sand.u32 %s44, 1
        %s503 = sand.u32 %s44, 1
        %s504 = smul.addr %s503, 32
        %s505 = scalar_lea.vmem [#allocation2], %s504
        // Predicated region
        $region181: #{upsample_forward.1} parent=179 // pred_check
          %p506 = pneg %p57
        $region182: #{upsample_forward.1} parent=179 // pred_check_branch
          %508 = sbr.rel (%p506) target = $region184
        $region183: #{upsample_forward.1} parent=179 // pred_region
          _
        $region184: #{upsample_forward.1} parent=179 // pred_fallthru
          _
        %s509 = sand.u32 %s78, 1
        %s510 = sand.u32 %s78, 1
        %s511 = smul.addr %s510, 32
        %s512 = scalar_lea.vmem [#allocation3], %s511
        // Predicated region
        $region185: #{upsample_forward.1} parent=179 // pred_check
          %p513 = pneg %p91
        $region186: #{upsample_forward.1} parent=179 // pred_check_branch
          %515 = sbr.rel (%p513) target = $region188
        $region187: #{upsample_forward.1} parent=179 // pred_region
          _
        $region188: #{upsample_forward.1} parent=179 // pred_fallthru
          _
        %s516 = sand.u32 %s112, 1
        %s517 = sand.u32 %s112, 1
        %s518 = smul.addr %s517, 32
        %s519 = scalar_lea.vmem [#allocation4], %s518
        // Predicated region
        $region189: #{upsample_forward.1} parent=179 // pred_check
          %p520 = pneg %p125
        $region190: #{upsample_forward.1} parent=179 // pred_check_branch
          %522 = sbr.rel (%p520) target = $region192
        $region191: #{upsample_forward.1} parent=179 // pred_region
          _
        $region192: #{upsample_forward.1} parent=179 // pred_fallthru
          _
        %s523 = sand.u32 %s140, 1
        %s524 = sand.u32 %s140, 1
        %s525 = smul.addr %s524, 32
        %s526 = scalar_lea.vmem [#allocation5], %s525
        // Predicated region
        $region193: #{upsample_forward.1} parent=179 // pred_check
          %p527 = pneg %p153
        $region194: #{upsample_forward.1} parent=179 // pred_check_branch
          %529 = sbr.rel (%p527) target = $region196
        $region195: #{upsample_forward.1} parent=179 // pred_region
          _
        $region196: #{upsample_forward.1} parent=179 // pred_fallthru
          _
        // Predicated region
        $region197: #{upsample_forward.1} parent=179 // pred_check
          %p530 = pneg %p174
        $region198: #{upsample_forward.1} parent=179 // pred_check_branch
          %532 = sbr.rel (%p530) target = $region200
        $region199: #{upsample_forward.1} parent=179 // pred_region
          %533 = dma.done [#allocation8], 16
        $region200: #{upsample_forward.1} parent=179 // pred_fallthru
          _
        // Predicated region
        $region201: #{upsample_forward.1} parent=179 // pred_check
          %p534 = pneg %p195
        $region202: #{upsample_forward.1} parent=179 // pred_check_branch
          %536 = sbr.rel (%p534) target = $region204
        $region203: #{upsample_forward.1} parent=179 // pred_region
          %537 = dma.done [#allocation10], 16
        $region204: #{upsample_forward.1} parent=179 // pred_fallthru
          _
        %538 = sfence
        %s539 = sand.u32 %s44, 1
        %s540 = sand.u32 %s44, 1
        %s541 = smul.addr %s540, 32
        %s542 = scalar_lea.vmem [#allocation2], %s541
        %p543 = pneg %p57
        %p544 = pneg %p54
        %s545 = sand.u32 %s78, 1
        %s546 = sand.u32 %s78, 1
        %s547 = smul.addr %s546, 32
        %s548 = scalar_lea.vmem [#allocation3], %s547
        %p549 = pneg %p91
        %p550 = pneg %p88
        %s551 = sand.u32 %s112, 1
        %s552 = sand.u32 %s112, 1
        %s553 = smul.addr %s552, 32
        %s554 = scalar_lea.vmem [#allocation4], %s553
        %p555 = pneg %p125
        %p556 = pneg %p122
        %s557 = sand.u32 %s140, 1
        %s558 = sand.u32 %s140, 1
        %s559 = smul.addr %s558, 32
        %s560 = scalar_lea.vmem [#allocation5], %s559
        %p561 = pneg %p153
        %p562 = pneg %p150
        %p563 = pneg %p174
        %p564 = pneg %p171
        %p565 = pneg %p195
        %p566 = pneg %p192
        %p567 = pneg %p223
        %p568 = pneg %p220
        %s569 = sand.u32 %s210, 1
        %s570 = scalar_lea.sflag [#allocation7], %s569
        %s571 = sand.u32 %s210, 1
        %s572 = smul.addr %s571, 64
        %s573 = scalar_lea.vmem [#allocation11], %s572
        %s574 = ssub.s32 %s27, 1
        %p575 = scmp.gt.s32.totalorder %s574, 0
        %s576 = scalar_select %p575, %s574, 0
        %s577 = sadd.s32 %s27, 1
        %p578 = scmp.lt.s32.totalorder %s577, 1
        %s579 = scalar_select %p578, %s577, 1
        %s580 = smul.u32 2, %s27
        %s581 = smul.u32 2, %s27
        %p582 = scmp.eq.s32.totalorder %s27, 0
        %p583 = scmp.eq.s32.totalorder %s27, 1
        %v584 = vlaneseq
        %v585 = vshrl.u32 %v584, 7
        %v586 = vadd.s32 %v585, 8
        %v587 = vlaneseq
        %v588 = vand.u32 %v587, 127
        %v589 = vmul.u32 %v585, 2
        %v590 = vmul.u32 %v586, 2
        %vm591 = vcmp.eq.s32.totalorder %v588, %v589
        %vm592 = vcmp.eq.s32.totalorder %v588, %v590
        %v593 = vsel %vm591, 1, 0
        %v594 = vsel %vm592, 1, 0
        %v595 = vcvt.s32.f32 %v593
        %v596 = vcvt.s32.f32 %v594
        %v597 = vadd.s32 %v589, 1
        %v598 = vadd.s32 %v590, 1
        %vm599 = vcmp.eq.s32.totalorder %v588, %v597
        %vm600 = vcmp.eq.s32.totalorder %v588, %v598
        %v601 = vsel %vm599, 1, 0
        %v602 = vsel %vm600, 1, 0
        %v603 = vcvt.s32.f32 %v601
        %v604 = vcvt.s32.f32 %v602
        %v605 = vmul.u32 %v588, 2
        %vm606 = vcmp.eq.s32.totalorder %v585, %v605
        %vm607 = vcmp.eq.s32.totalorder %v586, %v605
        %v608 = vsel %vm606, 1, 0
        %v609 = vsel %vm607, 1, 0
        %v610 = vcvt.s32.f32 %v608
        %v611 = vcvt.s32.f32 %v609
        %v612 = vadd.s32 %v605, 1
        %vm613 = vcmp.eq.s32.totalorder %v585, %v612
        %vm614 = vcmp.eq.s32.totalorder %v586, %v612
        %v615 = vsel %vm613, 1, 0
        %v616 = vsel %vm614, 1, 0
        %v617 = vcvt.s32.f32 %v615
        %v618 = vcvt.s32.f32 %v616
        %v619 = vld [vmem:[%s505] sm:$0xff]
        %v620 = vld [vmem:[%s512 + $0x7] sm:$0x1]
        %s621 = scalar_select %p582, 1, 0
        %v622 = vstv %s621
        %vm623 = vcmp.eq.s32.totalorder %v622, 1
        %v624 = vsel %vm623, %v619, %v620
        %v625 = vld [vmem:[%s519] sm:$0x1]
        %s626 = scalar_select %p583, 1, 0
        %v627 = vstv %s626
        %vm628 = vcmp.eq.s32.totalorder %v627, 1
        %v630 = vrot.slane %v625, 1
        %v632 = vsel %vm628, %v619, %v630
        %v634 = vrot.slane %v619, 7
        %vm636 = vcmask 1040384
        %v637 = vsel %vm636, %v624, %v634
        %v638 = vrot.slane %v619, 1
        %vm640 = vcmask 1046528
        %v641 = vsel %vm640, %v638, %v632
        %643 = vrot.lane.b32.xlu0 %v637, 1
        %v644 = vpop.permute.xlu0 %643
        %vm646 = vcmask 7168
        %v647 = vsel %vm646, %v637, %v644
        %648 = vrot.lane.b32.xlu0 %v637, 127
        %v649 = vpop.permute.xlu0 %648
        %vm651 = vcmask 121856
        %v652 = vsel %vm651, %v649, %v637
        %653 = vrot.lane.b32.xlu0 %v619, 1
        %v654 = vpop.permute.xlu0 %653
        %v656 = vsel %vm646, %v619, %v654
        %657 = vrot.lane.b32.xlu0 %v619, 127
        %v658 = vpop.permute.xlu0 %657
        %v660 = vsel %vm651, %v658, %v619
        %662 = vrot.lane.b32.xlu0 %v641, 1
        %v663 = vpop.permute.xlu0 %662
        %v665 = vsel %vm646, %v641, %v663
        %666 = vrot.lane.b32.xlu0 %v641, 127
        %v667 = vpop.permute.xlu0 %666
        %v669 = vsel %vm651, %v667, %v641
        %s670 = sld [smem:[#allocation6]]
        %v671 = vstv %s670
        %v672 = vmul.f32 %v671, %v647
        %v673 = vadd.f32 %v672, 0.0
        %s674 = sld [smem:[#allocation6 + $0x8]]
        %v675 = vstv %s674
        %v676 = vmul.f32 %v675, %v637
        %v677 = vadd.f32 %v673, %v676
        %s678 = sld [smem:[#allocation6 + $0x10]]
        %v679 = vstv %s678
        %v680 = vmul.f32 %v679, %v656
        %v681 = vadd.f32 %v677, %v680
        %s682 = sld [smem:[#allocation6 + $0x18]]
        %v683 = vstv %s682
        %v684 = vmul.f32 %v683, %v619
        %v685 = vadd.f32 %v681, %v684
        %s686 = sld [smem:[#allocation6 + $0x20]]
        %v687 = vstv %s686
        %v688 = vmul.f32 %v687, %v637
        %v689 = vadd.f32 %v688, 0.0
        %s690 = sld [smem:[#allocation6 + $0x28]]
        %v691 = vstv %s690
        %v692 = vmul.f32 %v691, %v652
        %v693 = vadd.f32 %v689, %v692
        %s694 = sld [smem:[#allocation6 + $0x30]]
        %v695 = vstv %s694
        %v696 = vmul.f32 %v695, %v619
        %v697 = vadd.f32 %v693, %v696
        %s698 = sld [smem:[#allocation6 + $0x38]]
        %v699 = vstv %s698
        %v700 = vmul.f32 %v699, %v660
        %v701 = vadd.f32 %v697, %v700
        %s702 = sld [smem:[#allocation6 + $0x40]]
        %v703 = vstv %s702
        %v704 = vmul.f32 %v703, %v656
        %v705 = vadd.f32 %v704, 0.0
        %s706 = sld [smem:[#allocation6 + $0x48]]
        %v707 = vstv %s706
        %v708 = vmul.f32 %v707, %v619
        %v709 = vadd.f32 %v705, %v708
        %s710 = sld [smem:[#allocation6 + $0x50]]
        %v711 = vstv %s710
        %v712 = vmul.f32 %v711, %v665
        %v713 = vadd.f32 %v709, %v712
        %s714 = sld [smem:[#allocation6 + $0x58]]
        %v715 = vstv %s714
        %v716 = vmul.f32 %v715, %v641
        %v717 = vadd.f32 %v713, %v716
        %s718 = sld [smem:[#allocation6 + $0x60]]
        %v719 = vstv %s718
        %v720 = vmul.f32 %v719, %v619
        %v721 = vadd.f32 %v720, 0.0
        %s722 = sld [smem:[#allocation6 + $0x68]]
        %v723 = vstv %s722
        %v724 = vmul.f32 %v723, %v660
        %v725 = vadd.f32 %v721, %v724
        %s726 = sld [smem:[#allocation6 + $0x70]]
        %v727 = vstv %s726
        %v728 = vmul.f32 %v727, %v641
        %v729 = vadd.f32 %v725, %v728
        %s730 = sld [smem:[#allocation6 + $0x78]]
        %v731 = vstv %s730
        %v732 = vmul.f32 %v731, %v669
        %v733 = vadd.f32 %v729, %v732
        %s734 = sld [smem:[#allocation6 + $0x4]]
        %v735 = vstv %s734
        %v736 = vmul.f32 %v735, %v647
        %v737 = vadd.f32 %v736, 0.0
        %s738 = sld [smem:[#allocation6 + $0xc]]
        %v739 = vstv %s738
        %v740 = vmul.f32 %v739, %v637
        %v741 = vadd.f32 %v737, %v740
        %s742 = sld [smem:[#allocation6 + $0x14]]
        %v743 = vstv %s742
        %v744 = vmul.f32 %v743, %v656
        %v745 = vadd.f32 %v741, %v744
        %s746 = sld [smem:[#allocation6 + $0x1c]]
        %v747 = vstv %s746
        %v748 = vmul.f32 %v747, %v619
        %v749 = vadd.f32 %v745, %v748
        %s750 = sld [smem:[#allocation6 + $0x24]]
        %v751 = vstv %s750
        %v752 = vmul.f32 %v751, %v637
        %v753 = vadd.f32 %v752, 0.0
        %s754 = sld [smem:[#allocation6 + $0x2c]]
        %v755 = vstv %s754
        %v756 = vmul.f32 %v755, %v652
        %v757 = vadd.f32 %v753, %v756
        %s758 = sld [smem:[#allocation6 + $0x34]]
        %v759 = vstv %s758
        %v760 = vmul.f32 %v759, %v619
        %v761 = vadd.f32 %v757, %v760
        %s762 = sld [smem:[#allocation6 + $0x3c]]
        %v763 = vstv %s762
        %v764 = vmul.f32 %v763, %v660
        %v765 = vadd.f32 %v761, %v764
        %s766 = sld [smem:[#allocation6 + $0x44]]
        %v767 = vstv %s766
        %v768 = vmul.f32 %v767, %v656
        %v769 = vadd.f32 %v768, 0.0
        %s770 = sld [smem:[#allocation6 + $0x4c]]
        %v771 = vstv %s770
        %v772 = vmul.f32 %v771, %v619
        %v773 = vadd.f32 %v769, %v772
        %s774 = sld [smem:[#allocation6 + $0x54]]
        %v775 = vstv %s774
        %v776 = vmul.f32 %v775, %v665
        %v777 = vadd.f32 %v773, %v776
        %s778 = sld [smem:[#allocation6 + $0x5c]]
        %v779 = vstv %s778
        %v780 = vmul.f32 %v779, %v641
        %v781 = vadd.f32 %v777, %v780
        %s782 = sld [smem:[#allocation6 + $0x64]]
        %v783 = vstv %s782
        %v784 = vmul.f32 %v783, %v619
        %v785 = vadd.f32 %v784, 0.0
        %s786 = sld [smem:[#allocation6 + $0x6c]]
        %v787 = vstv %s786
        %v788 = vmul.f32 %v787, %v660
        %v789 = vadd.f32 %v785, %v788
        %s790 = sld [smem:[#allocation6 + $0x74]]
        %v791 = vstv %s790
        %v792 = vmul.f32 %v791, %v641
        %v793 = vadd.f32 %v789, %v792
        %s794 = sld [smem:[#allocation6 + $0x7c]]
        %v795 = vstv %s794
        %v796 = vmul.f32 %v795, %v669
        %v797 = vadd.f32 %v793, %v796
        %s798 = scalar_lea.vmem %s505, 8 [#allocation2]
        %v799 = vld [vmem:[%s798] sm:$0xff]
        %s800 = scalar_lea.vmem %s512, 8 [#allocation3]
        %v801 = vld [vmem:[%s800 + $0x7] sm:$0x1]
        %v802 = vsel %vm623, %v799, %v801
        %s803 = scalar_lea.vmem %s519, 8 [#allocation4]
        %v804 = vld [vmem:[%s803] sm:$0x1]
        %v806 = vrot.slane %v804, 1
        %v808 = vsel %vm628, %v799, %v806
        %v810 = vrot.slane %v799, 7
        %v812 = vsel %vm636, %v802, %v810
        %v813 = vrot.slane %v799, 1
        %v815 = vsel %vm640, %v813, %v808
        %817 = vrot.lane.b32.xlu0 %v812, 1
        %v818 = vpop.permute.xlu0 %817
        %v820 = vsel %vm646, %v812, %v818
        %821 = vrot.lane.b32.xlu0 %v812, 127
        %v822 = vpop.permute.xlu0 %821
        %v824 = vsel %vm651, %v822, %v812
        %825 = vrot.lane.b32.xlu0 %v799, 1
        %v826 = vpop.permute.xlu0 %825
        %v828 = vsel %vm646, %v799, %v826
        %829 = vrot.lane.b32.xlu0 %v799, 127
        %v830 = vpop.permute.xlu0 %829
        %v832 = vsel %vm651, %v830, %v799
        %834 = vrot.lane.b32.xlu0 %v815, 1
        %v835 = vpop.permute.xlu0 %834
        %v837 = vsel %vm646, %v815, %v835
        %838 = vrot.lane.b32.xlu0 %v815, 127
        %v839 = vpop.permute.xlu0 %838
        %v841 = vsel %vm651, %v839, %v815
        %s842 = sld [smem:[#allocation6 + $0x1]]
        %v843 = vstv %s842
        %v844 = vmul.f32 %v843, %v820
        %v845 = vadd.f32 %v685, %v844
        %s846 = sld [smem:[#allocation6 + $0x9]]
        %v847 = vstv %s846
        %v848 = vmul.f32 %v847, %v812
        %v849 = vadd.f32 %v845, %v848
        %s850 = sld [smem:[#allocation6 + $0x11]]
        %v851 = vstv %s850
        %v852 = vmul.f32 %v851, %v828
        %v853 = vadd.f32 %v849, %v852
        %s854 = sld [smem:[#allocation6 + $0x19]]
        %v855 = vstv %s854
        %v856 = vmul.f32 %v855, %v799
        %v857 = vadd.f32 %v853, %v856
        %s858 = sld [smem:[#allocation6 + $0x21]]
        %v859 = vstv %s858
        %v860 = vmul.f32 %v859, %v812
        %v861 = vadd.f32 %v701, %v860
        %s862 = sld [smem:[#allocation6 + $0x29]]
        %v863 = vstv %s862
        %v864 = vmul.f32 %v863, %v824
        %v865 = vadd.f32 %v861, %v864
        %s866 = sld [smem:[#allocation6 + $0x31]]
        %v867 = vstv %s866
        %v868 = vmul.f32 %v867, %v799
        %v869 = vadd.f32 %v865, %v868
        %s870 = sld [smem:[#allocation6 + $0x39]]
        %v871 = vstv %s870
        %v872 = vmul.f32 %v871, %v832
        %v873 = vadd.f32 %v869, %v872
        %s874 = sld [smem:[#allocation6 + $0x41]]
        %v875 = vstv %s874
        %v876 = vmul.f32 %v875, %v828
        %v877 = vadd.f32 %v717, %v876
        %s878 = sld [smem:[#allocation6 + $0x49]]
        %v879 = vstv %s878
        %v880 = vmul.f32 %v879, %v799
        %v881 = vadd.f32 %v877, %v880
        %s882 = sld [smem:[#allocation6 + $0x51]]
        %v883 = vstv %s882
        %v884 = vmul.f32 %v883, %v837
        %v885 = vadd.f32 %v881, %v884
        %s886 = sld [smem:[#allocation6 + $0x59]]
        %v887 = vstv %s886
        %v888 = vmul.f32 %v887, %v815
        %v889 = vadd.f32 %v885, %v888
        %s890 = sld [smem:[#allocation6 + $0x61]]
        %v891 = vstv %s890
        %v892 = vmul.f32 %v891, %v799
        %v893 = vadd.f32 %v733, %v892
        %s894 = sld [smem:[#allocation6 + $0x69]]
        %v895 = vstv %s894
        %v896 = vmul.f32 %v895, %v832
        %v897 = vadd.f32 %v893, %v896
        %s898 = sld [smem:[#allocation6 + $0x71]]
        %v899 = vstv %s898
        %v900 = vmul.f32 %v899, %v815
        %v901 = vadd.f32 %v897, %v900
        %s902 = sld [smem:[#allocation6 + $0x79]]
        %v903 = vstv %s902
        %v904 = vmul.f32 %v903, %v841
        %v905 = vadd.f32 %v901, %v904
        %s906 = sld [smem:[#allocation6 + $0x5]]
        %v907 = vstv %s906
        %v908 = vmul.f32 %v907, %v820
        %v909 = vadd.f32 %v749, %v908
        %s910 = sld [smem:[#allocation6 + $0xd]]
        %v911 = vstv %s910
        %v912 = vmul.f32 %v911, %v812
        %v913 = vadd.f32 %v909, %v912
        %s914 = sld [smem:[#allocation6 + $0x15]]
        %v915 = vstv %s914
        %v916 = vmul.f32 %v915, %v828
        %v917 = vadd.f32 %v913, %v916
        %s918 = sld [smem:[#allocation6 + $0x1d]]
        %v919 = vstv %s918
        %v920 = vmul.f32 %v919, %v799
        %v921 = vadd.f32 %v917, %v920
        %s922 = sld [smem:[#allocation6 + $0x25]]
        %v923 = vstv %s922
        %v924 = vmul.f32 %v923, %v812
        %v925 = vadd.f32 %v765, %v924
        %s926 = sld [smem:[#allocation6 + $0x2d]]
        %v927 = vstv %s926
        %v928 = vmul.f32 %v927, %v824
        %v929 = vadd.f32 %v925, %v928
        %s930 = sld [smem:[#allocation6 + $0x35]]
        %v931 = vstv %s930
        %v932 = vmul.f32 %v931, %v799
        %v933 = vadd.f32 %v929, %v932
        %s934 = sld [smem:[#allocation6 + $0x3d]]
        %v935 = vstv %s934
        %v936 = vmul.f32 %v935, %v832
        %v937 = vadd.f32 %v933, %v936
        %s938 = sld [smem:[#allocation6 + $0x45]]
        %v939 = vstv %s938
        %v940 = vmul.f32 %v939, %v828
        %v941 = vadd.f32 %v781, %v940
        %s942 = sld [smem:[#allocation6 + $0x4d]]
        %v943 = vstv %s942
        %v944 = vmul.f32 %v943, %v799
        %v945 = vadd.f32 %v941, %v944
        %s946 = sld [smem:[#allocation6 + $0x55]]
        %v947 = vstv %s946
        %v948 = vmul.f32 %v947, %v837
        %v949 = vadd.f32 %v945, %v948
        %s950 = sld [smem:[#allocation6 + $0x5d]]
        %v951 = vstv %s950
        %v952 = vmul.f32 %v951, %v815
        %v953 = vadd.f32 %v949, %v952
        %s954 = sld [smem:[#allocation6 + $0x65]]
        %v955 = vstv %s954
        %v956 = vmul.f32 %v955, %v799
        %v957 = vadd.f32 %v797, %v956
        %s958 = sld [smem:[#allocation6 + $0x6d]]
        %v959 = vstv %s958
        %v960 = vmul.f32 %v959, %v832
        %v961 = vadd.f32 %v957, %v960
        %s962 = sld [smem:[#allocation6 + $0x75]]
        %v963 = vstv %s962
        %v964 = vmul.f32 %v963, %v815
        %v965 = vadd.f32 %v961, %v964
        %s966 = sld [smem:[#allocation6 + $0x7d]]
        %v967 = vstv %s966
        %v968 = vmul.f32 %v967, %v841
        %v969 = vadd.f32 %v965, %v968
        %s970 = scalar_lea.vmem %s505, 16 [#allocation2]
        %v971 = vld [vmem:[%s970] sm:$0xff]
        %s972 = scalar_lea.vmem %s512, 16 [#allocation3]
        %v973 = vld [vmem:[%s972 + $0x7] sm:$0x1]
        %v974 = vsel %vm623, %v971, %v973
        %s975 = scalar_lea.vmem %s519, 16 [#allocation4]
        %v976 = vld [vmem:[%s975] sm:$0x1]
        %v978 = vrot.slane %v976, 1
        %v980 = vsel %vm628, %v971, %v978
        %v982 = vrot.slane %v971, 7
        %v984 = vsel %vm636, %v974, %v982
        %v985 = vrot.slane %v971, 1
        %v987 = vsel %vm640, %v985, %v980
        %989 = vrot.lane.b32.xlu0 %v984, 1
        %v990 = vpop.permute.xlu0 %989
        %v992 = vsel %vm646, %v984, %v990
        %993 = vrot.lane.b32.xlu0 %v984, 127
        %v994 = vpop.permute.xlu0 %993
        %v996 = vsel %vm651, %v994, %v984
        %997 = vrot.lane.b32.xlu0 %v971, 1
        %v998 = vpop.permute.xlu0 %997
        %v1000 = vsel %vm646, %v971, %v998
        %1001 = vrot.lane.b32.xlu0 %v971, 127
        %v1002 = vpop.permute.xlu0 %1001
        %v1004 = vsel %vm651, %v1002, %v971
        %1006 = vrot.lane.b32.xlu0 %v987, 1
        %v1007 = vpop.permute.xlu0 %1006
        %v1009 = vsel %vm646, %v987, %v1007
        %1010 = vrot.lane.b32.xlu0 %v987, 127
        %v1011 = vpop.permute.xlu0 %1010
        %v1013 = vsel %vm651, %v1011, %v987
        %s1014 = sld [smem:[#allocation6 + $0x2]]
        %v1015 = vstv %s1014
        %v1016 = vmul.f32 %v1015, %v992
        %v1017 = vadd.f32 %v857, %v1016
        %s1018 = sld [smem:[#allocation6 + $0xa]]
        %v1019 = vstv %s1018
        %v1020 = vmul.f32 %v1019, %v984
        %v1021 = vadd.f32 %v1017, %v1020
        %s1022 = sld [smem:[#allocation6 + $0x12]]
        %v1023 = vstv %s1022
        %v1024 = vmul.f32 %v1023, %v1000
        %v1025 = vadd.f32 %v1021, %v1024
        %s1026 = sld [smem:[#allocation6 + $0x1a]]
        %v1027 = vstv %s1026
        %v1028 = vmul.f32 %v1027, %v971
        %v1029 = vadd.f32 %v1025, %v1028
        %s1030 = sld [smem:[#allocation6 + $0x22]]
        %v1031 = vstv %s1030
        %v1032 = vmul.f32 %v1031, %v984
        %v1033 = vadd.f32 %v873, %v1032
        %s1034 = sld [smem:[#allocation6 + $0x2a]]
        %v1035 = vstv %s1034
        %v1036 = vmul.f32 %v1035, %v996
        %v1037 = vadd.f32 %v1033, %v1036
        %s1038 = sld [smem:[#allocation6 + $0x32]]
        %v1039 = vstv %s1038
        %v1040 = vmul.f32 %v1039, %v971
        %v1041 = vadd.f32 %v1037, %v1040
        %s1042 = sld [smem:[#allocation6 + $0x3a]]
        %v1043 = vstv %s1042
        %v1044 = vmul.f32 %v1043, %v1004
        %v1045 = vadd.f32 %v1041, %v1044
        %s1046 = sld [smem:[#allocation6 + $0x42]]
        %v1047 = vstv %s1046
        %v1048 = vmul.f32 %v1047, %v1000
        %v1049 = vadd.f32 %v889, %v1048
        %s1050 = sld [smem:[#allocation6 + $0x4a]]
        %v1051 = vstv %s1050
        %v1052 = vmul.f32 %v1051, %v971
        %v1053 = vadd.f32 %v1049, %v1052
        %s1054 = sld [smem:[#allocation6 + $0x52]]
        %v1055 = vstv %s1054
        %v1056 = vmul.f32 %v1055, %v1009
        %v1057 = vadd.f32 %v1053, %v1056
        %s1058 = sld [smem:[#allocation6 + $0x5a]]
        %v1059 = vstv %s1058
        %v1060 = vmul.f32 %v1059, %v987
        %v1061 = vadd.f32 %v1057, %v1060
        %s1062 = sld [smem:[#allocation6 + $0x62]]
        %v1063 = vstv %s1062
        %v1064 = vmul.f32 %v1063, %v971
        %v1065 = vadd.f32 %v905, %v1064
        %s1066 = sld [smem:[#allocation6 + $0x6a]]
        %v1067 = vstv %s1066
        %v1068 = vmul.f32 %v1067, %v1004
        %v1069 = vadd.f32 %v1065, %v1068
        %s1070 = sld [smem:[#allocation6 + $0x72]]
        %v1071 = vstv %s1070
        %v1072 = vmul.f32 %v1071, %v987
        %v1073 = vadd.f32 %v1069, %v1072
        %s1074 = sld [smem:[#allocation6 + $0x7a]]
        %v1075 = vstv %s1074
        %v1076 = vmul.f32 %v1075, %v1013
        %v1077 = vadd.f32 %v1073, %v1076
        %s1078 = sld [smem:[#allocation6 + $0x6]]
        %v1079 = vstv %s1078
        %v1080 = vmul.f32 %v1079, %v992
        %v1081 = vadd.f32 %v921, %v1080
        %s1082 = sld [smem:[#allocation6 + $0xe]]
        %v1083 = vstv %s1082
        %v1084 = vmul.f32 %v1083, %v984
        %v1085 = vadd.f32 %v1081, %v1084
        %s1086 = sld [smem:[#allocation6 + $0x16]]
        %v1087 = vstv %s1086
        %v1088 = vmul.f32 %v1087, %v1000
        %v1089 = vadd.f32 %v1085, %v1088
        %s1090 = sld [smem:[#allocation6 + $0x1e]]
        %v1091 = vstv %s1090
        %v1092 = vmul.f32 %v1091, %v971
        %v1093 = vadd.f32 %v1089, %v1092
        %s1094 = sld [smem:[#allocation6 + $0x26]]
        %v1095 = vstv %s1094
        %v1096 = vmul.f32 %v1095, %v984
        %v1097 = vadd.f32 %v937, %v1096
        %s1098 = sld [smem:[#allocation6 + $0x2e]]
        %v1099 = vstv %s1098
        %v1100 = vmul.f32 %v1099, %v996
        %v1101 = vadd.f32 %v1097, %v1100
        %s1102 = sld [smem:[#allocation6 + $0x36]]
        %v1103 = vstv %s1102
        %v1104 = vmul.f32 %v1103, %v971
        %v1105 = vadd.f32 %v1101, %v1104
        %s1106 = sld [smem:[#allocation6 + $0x3e]]
        %v1107 = vstv %s1106
        %v1108 = vmul.f32 %v1107, %v1004
        %v1109 = vadd.f32 %v1105, %v1108
        %s1110 = sld [smem:[#allocation6 + $0x46]]
        %v1111 = vstv %s1110
        %v1112 = vmul.f32 %v1111, %v1000
        %v1113 = vadd.f32 %v953, %v1112
        %s1114 = sld [smem:[#allocation6 + $0x4e]]
        %v1115 = vstv %s1114
        %v1116 = vmul.f32 %v1115, %v971
        %v1117 = vadd.f32 %v1113, %v1116
        %s1118 = sld [smem:[#allocation6 + $0x56]]
        %v1119 = vstv %s1118
        %v1120 = vmul.f32 %v1119, %v1009
        %v1121 = vadd.f32 %v1117, %v1120
        %s1122 = sld [smem:[#allocation6 + $0x5e]]
        %v1123 = vstv %s1122
        %v1124 = vmul.f32 %v1123, %v987
        %v1125 = vadd.f32 %v1121, %v1124
        %s1126 = sld [smem:[#allocation6 + $0x66]]
        %v1127 = vstv %s1126
        %v1128 = vmul.f32 %v1127, %v971
        %v1129 = vadd.f32 %v969, %v1128
        %s1130 = sld [smem:[#allocation6 + $0x6e]]
        %v1131 = vstv %s1130
        %v1132 = vmul.f32 %v1131, %v1004
        %v1133 = vadd.f32 %v1129, %v1132
        %s1134 = sld [smem:[#allocation6 + $0x76]]
        %v1135 = vstv %s1134
        %v1136 = vmul.f32 %v1135, %v987
        %v1137 = vadd.f32 %v1133, %v1136
        %s1138 = sld [smem:[#allocation6 + $0x7e]]
        %v1139 = vstv %s1138
        %v1140 = vmul.f32 %v1139, %v1013
        %v1141 = vadd.f32 %v1137, %v1140
        %s1142 = scalar_lea.vmem %s505, 24 [#allocation2]
        %v1143 = vld [vmem:[%s1142] sm:$0xff]
        %s1144 = scalar_lea.vmem %s512, 24 [#allocation3]
        %v1145 = vld [vmem:[%s1144 + $0x7] sm:$0x1]
        %v1146 = vsel %vm623, %v1143, %v1145
        %s1147 = scalar_lea.vmem %s519, 24 [#allocation4]
        %v1148 = vld [vmem:[%s1147] sm:$0x1]
        %v1150 = vrot.slane %v1148, 1
        %v1152 = vsel %vm628, %v1143, %v1150
        %v1154 = vrot.slane %v1143, 7
        %v1156 = vsel %vm636, %v1146, %v1154
        %v1157 = vrot.slane %v1143, 1
        %v1159 = vsel %vm640, %v1157, %v1152
        %1161 = vrot.lane.b32.xlu0 %v1156, 1
        %v1162 = vpop.permute.xlu0 %1161
        %v1164 = vsel %vm646, %v1156, %v1162
        %1165 = vrot.lane.b32.xlu0 %v1156, 127
        %v1166 = vpop.permute.xlu0 %1165
        %v1168 = vsel %vm651, %v1166, %v1156
        %1169 = vrot.lane.b32.xlu0 %v1143, 1
        %v1170 = vpop.permute.xlu0 %1169
        %v1172 = vsel %vm646, %v1143, %v1170
        %1173 = vrot.lane.b32.xlu0 %v1143, 127
        %v1174 = vpop.permute.xlu0 %1173
        %v1176 = vsel %vm651, %v1174, %v1143
        %1178 = vrot.lane.b32.xlu0 %v1159, 1
        %v1179 = vpop.permute.xlu0 %1178
        %v1181 = vsel %vm646, %v1159, %v1179
        %1182 = vrot.lane.b32.xlu0 %v1159, 127
        %v1183 = vpop.permute.xlu0 %1182
        %v1185 = vsel %vm651, %v1183, %v1159
        %s1186 = sld [smem:[#allocation6 + $0x3]]
        %v1187 = vstv %s1186
        %v1188 = vmul.f32 %v1187, %v1164
        %v1189 = vadd.f32 %v1029, %v1188
        %s1190 = sld [smem:[#allocation6 + $0xb]]
        %v1191 = vstv %s1190
        %v1192 = vmul.f32 %v1191, %v1156
        %v1193 = vadd.f32 %v1189, %v1192
        %s1194 = sld [smem:[#allocation6 + $0x13]]
        %v1195 = vstv %s1194
        %v1196 = vmul.f32 %v1195, %v1172
        %v1197 = vadd.f32 %v1193, %v1196
        %s1198 = sld [smem:[#allocation6 + $0x1b]]
        %v1199 = vstv %s1198
        %v1200 = vmul.f32 %v1199, %v1143
        %v1201 = vadd.f32 %v1197, %v1200
        %s1202 = sld [smem:[#allocation6 + $0x23]]
        %v1203 = vstv %s1202
        %v1204 = vmul.f32 %v1203, %v1156
        %v1205 = vadd.f32 %v1045, %v1204
        %s1206 = sld [smem:[#allocation6 + $0x2b]]
        %v1207 = vstv %s1206
        %v1208 = vmul.f32 %v1207, %v1168
        %v1209 = vadd.f32 %v1205, %v1208
        %s1210 = sld [smem:[#allocation6 + $0x33]]
        %v1211 = vstv %s1210
        %v1212 = vmul.f32 %v1211, %v1143
        %v1213 = vadd.f32 %v1209, %v1212
        %s1214 = sld [smem:[#allocation6 + $0x3b]]
        %v1215 = vstv %s1214
        %v1216 = vmul.f32 %v1215, %v1176
        %v1217 = vadd.f32 %v1213, %v1216
        %s1218 = sld [smem:[#allocation6 + $0x43]]
        %v1219 = vstv %s1218
        %v1220 = vmul.f32 %v1219, %v1172
        %v1221 = vadd.f32 %v1061, %v1220
        %s1222 = sld [smem:[#allocation6 + $0x4b]]
        %v1223 = vstv %s1222
        %v1224 = vmul.f32 %v1223, %v1143
        %v1225 = vadd.f32 %v1221, %v1224
        %s1226 = sld [smem:[#allocation6 + $0x53]]
        %v1227 = vstv %s1226
        %v1228 = vmul.f32 %v1227, %v1181
        %v1229 = vadd.f32 %v1225, %v1228
        %s1230 = sld [smem:[#allocation6 + $0x5b]]
        %v1231 = vstv %s1230
        %v1232 = vmul.f32 %v1231, %v1159
        %v1233 = vadd.f32 %v1229, %v1232
        %s1234 = sld [smem:[#allocation6 + $0x63]]
        %v1235 = vstv %s1234
        %v1236 = vmul.f32 %v1235, %v1143
        %v1237 = vadd.f32 %v1077, %v1236
        %s1238 = sld [smem:[#allocation6 + $0x6b]]
        %v1239 = vstv %s1238
        %v1240 = vmul.f32 %v1239, %v1176
        %v1241 = vadd.f32 %v1237, %v1240
        %s1242 = sld [smem:[#allocation6 + $0x73]]
        %v1243 = vstv %s1242
        %v1244 = vmul.f32 %v1243, %v1159
        %v1245 = vadd.f32 %v1241, %v1244
        %s1246 = sld [smem:[#allocation6 + $0x7b]]
        %v1247 = vstv %s1246
        %v1248 = vmul.f32 %v1247, %v1185
        %v1249 = vadd.f32 %v1245, %v1248
        %s1250 = sld [smem:[#allocation6 + $0x7]]
        %v1251 = vstv %s1250
        %v1252 = vmul.f32 %v1251, %v1164
        %v1253 = vadd.f32 %v1093, %v1252
        %s1254 = sld [smem:[#allocation6 + $0xf]]
        %v1255 = vstv %s1254
        %v1256 = vmul.f32 %v1255, %v1156
        %v1257 = vadd.f32 %v1253, %v1256
        %s1258 = sld [smem:[#allocation6 + $0x17]]
        %v1259 = vstv %s1258
        %v1260 = vmul.f32 %v1259, %v1172
        %v1261 = vadd.f32 %v1257, %v1260
        %s1262 = sld [smem:[#allocation6 + $0x1f]]
        %v1263 = vstv %s1262
        %v1264 = vmul.f32 %v1263, %v1143
        %v1265 = vadd.f32 %v1261, %v1264
        %s1266 = sld [smem:[#allocation6 + $0x27]]
        %v1267 = vstv %s1266
        %v1268 = vmul.f32 %v1267, %v1156
        %v1269 = vadd.f32 %v1109, %v1268
        %s1270 = sld [smem:[#allocation6 + $0x2f]]
        %v1271 = vstv %s1270
        %v1272 = vmul.f32 %v1271, %v1168
        %v1273 = vadd.f32 %v1269, %v1272
        %s1274 = sld [smem:[#allocation6 + $0x37]]
        %v1275 = vstv %s1274
        %v1276 = vmul.f32 %v1275, %v1143
        %v1277 = vadd.f32 %v1273, %v1276
        %s1278 = sld [smem:[#allocation6 + $0x3f]]
        %v1279 = vstv %s1278
        %v1280 = vmul.f32 %v1279, %v1176
        %v1281 = vadd.f32 %v1277, %v1280
        %s1282 = sld [smem:[#allocation6 + $0x47]]
        %v1283 = vstv %s1282
        %v1284 = vmul.f32 %v1283, %v1172
        %v1285 = vadd.f32 %v1125, %v1284
        %s1286 = sld [smem:[#allocation6 + $0x4f]]
        %v1287 = vstv %s1286
        %v1288 = vmul.f32 %v1287, %v1143
        %v1289 = vadd.f32 %v1285, %v1288
        %s1290 = sld [smem:[#allocation6 + $0x57]]
        %v1291 = vstv %s1290
        %v1292 = vmul.f32 %v1291, %v1181
        %v1293 = vadd.f32 %v1289, %v1292
        %s1294 = sld [smem:[#allocation6 + $0x5f]]
        %v1295 = vstv %s1294
        %v1296 = vmul.f32 %v1295, %v1159
        %v1297 = vadd.f32 %v1293, %v1296
        %s1298 = sld [smem:[#allocation6 + $0x67]]
        %v1299 = vstv %s1298
        %v1300 = vmul.f32 %v1299, %v1143
        %v1301 = vadd.f32 %v1141, %v1300
        %s1302 = sld [smem:[#allocation6 + $0x6f]]
        %v1303 = vstv %s1302
        %v1304 = vmul.f32 %v1303, %v1176
        %v1305 = vadd.f32 %v1301, %v1304
        %s1306 = sld [smem:[#allocation6 + $0x77]]
        %v1307 = vstv %s1306
        %v1308 = vmul.f32 %v1307, %v1159
        %v1309 = vadd.f32 %v1305, %v1308
        %s1310 = sld [smem:[#allocation6 + $0x7f]]
        %v1311 = vstv %s1310
        %v1312 = vmul.f32 %v1311, %v1185
        %v1313 = vadd.f32 %v1309, %v1312
        %vm1314 = vcmask 130048
        %v1316 = vsel %vm1314, %v1217, 0
        %1318 = vmatprep.subr.mxu0 0.0
        %1319 = vmatpush1.msra.mxu0 0.0
        %1320 = vmatprep.subr.mxu0 0.0
        %1321 = vmatpush1.msra.mxu0 0.0
        %1322 = vmatprep.subr.mxu0 0.0
        %1323 = vmatpush1.msra.mxu0 0.0
        %1324 = vmatprep.subr.mxu0 0.0
        %1325 = vmatpush1.msra.mxu0 0.0
        %1326 = vmatprep.subr.mxu0 0.0
        %1327 = vmatpush1.msra.mxu0 0.0
        %1328 = vmatprep.subr.mxu0 0.0
        %1329 = vmatpush1.msra.mxu0 0.0
        %1330 = vmatprep.subr.mxu0 0.0
        %1331 = vmatpush1.msra.mxu0 0.0
        %1332 = vmatprep.subr.mxu0 0.0
        %1333 = vmatpush1.msra.mxu0 0.0
        %1334 = vmatprep.subr.mxu0 0.0
        %1335 = vmatpush1.msra.mxu0 0.0
        %1336 = vmatprep.subr.mxu0 0.0
        %1337 = vmatpush1.msra.mxu0 0.0
        %1338 = vmatprep.subr.mxu0 0.0
        %1339 = vmatpush1.msra.mxu0 0.0
        %1340 = vmatprep.subr.mxu0 0.0
        %1341 = vmatpush1.msra.mxu0 0.0
        %1342 = vmatprep.subr.mxu0 0.0
        %1343 = vmatpush1.msra.mxu0 0.0
        %1344 = vmatprep.subr.mxu0 0.0
        %1345 = vmatpush1.msra.mxu0 0.0
        %1346 = vmatprep.subr.mxu0 0.0
        %1347 = vmatpush1.msra.mxu0 %v604
        %1348 = vmatprep.subr.mxu0 0.0
        %1349 = vmatpush1.msra.mxu0 %v603
        %1350 = vmatprep.subr.mxu0 0.0
        %1351 = vmatpush2.msra.mxu0 0.0
        %1352 = vmatprep.subr.mxu0 0.0
        %1353 = vmatpush2.msra.mxu0 0.0
        %1354 = vmatprep.subr.mxu0 0.0
        %1355 = vmatpush2.msra.mxu0 0.0
        %1356 = vmatprep.subr.mxu0 0.0
        %1357 = vmatpush2.msra.mxu0 0.0
        %1358 = vmatprep.subr.mxu0 0.0
        %1359 = vmatpush2.msra.mxu0 0.0
        %1360 = vmatprep.subr.mxu0 0.0
        %1361 = vmatpush2.msra.mxu0 0.0
        %1362 = vmatprep.subr.mxu0 0.0
        %1363 = vmatpush2.msra.mxu0 0.0
        %1364 = vmatprep.subr.mxu0 0.0
        %1365 = vmatpush2.msra.mxu0 0.0
        %1366 = vmatprep.subr.mxu0 0.0
        %1367 = vmatpush2.msra.mxu0 0.0
        %1368 = vmatprep.subr.mxu0 0.0
        %1369 = vmatpush2.msra.mxu0 0.0
        %1370 = vmatprep.subr.mxu0 0.0
        %1371 = vmatpush2.msra.mxu0 0.0
        %1372 = vmatprep.subr.mxu0 0.0
        %1373 = vmatpush2.msra.mxu0 0.0
        %1374 = vmatprep.subr.mxu0 0.0
        %1375 = vmatpush2.msra.mxu0 0.0
        %1376 = vmatprep.subr.mxu0 0.0
        %1377 = vmatpush2.msra.mxu0 0.0
        %1378 = vmatprep.subr.mxu0 0.0
        %1379 = vmatpush2.msra.mxu0 0.0
        %1380 = vmatprep.subr.mxu0 0.0
        %1381 = vmatpush2.msra.mxu0 0.0
        %1382 = vmatprep.mubr.f32.mxu0 0.0
        %1383 = vmatmul.mubr.f32.gmra.mxu0 %v1316
        %v1384 = vpop.f32.mrf.mxu0
        %v1385 = vadd.f32 0.0, %v1384
        %v1386 = vpop.f32.mrf.mxu0
        %1387 = vdwg.mxu0
        %v1389 = vsel %vm1314, %v1201, 0
        %1391 = vmatprep.subr.mxu0 0.0
        %1392 = vmatpush1.msra.mxu0 0.0
        %1393 = vmatprep.subr.mxu0 0.0
        %1394 = vmatpush1.msra.mxu0 0.0
        %1395 = vmatprep.subr.mxu0 0.0
        %1396 = vmatpush1.msra.mxu0 0.0
        %1397 = vmatprep.subr.mxu0 0.0
        %1398 = vmatpush1.msra.mxu0 0.0
        %1399 = vmatprep.subr.mxu0 0.0
        %1400 = vmatpush1.msra.mxu0 0.0
        %1401 = vmatprep.subr.mxu0 0.0
        %1402 = vmatpush1.msra.mxu0 0.0
        %1403 = vmatprep.subr.mxu0 0.0
        %1404 = vmatpush1.msra.mxu0 0.0
        %1405 = vmatprep.subr.mxu0 0.0
        %1406 = vmatpush1.msra.mxu0 0.0
        %1407 = vmatprep.subr.mxu0 0.0
        %1408 = vmatpush1.msra.mxu0 0.0
        %1409 = vmatprep.subr.mxu0 0.0
        %1410 = vmatpush1.msra.mxu0 0.0
        %1411 = vmatprep.subr.mxu0 0.0
        %1412 = vmatpush1.msra.mxu0 0.0
        %1413 = vmatprep.subr.mxu0 0.0
        %1414 = vmatpush1.msra.mxu0 0.0
        %1415 = vmatprep.subr.mxu0 0.0
        %1416 = vmatpush1.msra.mxu0 0.0
        %1417 = vmatprep.subr.mxu0 0.0
        %1418 = vmatpush1.msra.mxu0 0.0
        %1419 = vmatprep.subr.mxu0 0.0
        %1420 = vmatpush1.msra.mxu0 %v596
        %1421 = vmatprep.subr.mxu0 0.0
        %1422 = vmatpush1.msra.mxu0 %v595
        %1423 = vmatprep.subr.mxu0 0.0
        %1424 = vmatpush2.msra.mxu0 0.0
        %1425 = vmatprep.subr.mxu0 0.0
        %1426 = vmatpush2.msra.mxu0 0.0
        %1427 = vmatprep.subr.mxu0 0.0
        %1428 = vmatpush2.msra.mxu0 0.0
        %1429 = vmatprep.subr.mxu0 0.0
        %1430 = vmatpush2.msra.mxu0 0.0
        %1431 = vmatprep.subr.mxu0 0.0
        %1432 = vmatpush2.msra.mxu0 0.0
        %1433 = vmatprep.subr.mxu0 0.0
        %1434 = vmatpush2.msra.mxu0 0.0
        %1435 = vmatprep.subr.mxu0 0.0
        %1436 = vmatpush2.msra.mxu0 0.0
        %1437 = vmatprep.subr.mxu0 0.0
        %1438 = vmatpush2.msra.mxu0 0.0
        %1439 = vmatprep.subr.mxu0 0.0
        %1440 = vmatpush2.msra.mxu0 0.0
        %1441 = vmatprep.subr.mxu0 0.0
        %1442 = vmatpush2.msra.mxu0 0.0
        %1443 = vmatprep.subr.mxu0 0.0
        %1444 = vmatpush2.msra.mxu0 0.0
        %1445 = vmatprep.subr.mxu0 0.0
        %1446 = vmatpush2.msra.mxu0 0.0
        %1447 = vmatprep.subr.mxu0 0.0
        %1448 = vmatpush2.msra.mxu0 0.0
        %1449 = vmatprep.subr.mxu0 0.0
        %1450 = vmatpush2.msra.mxu0 0.0
        %1451 = vmatprep.subr.mxu0 0.0
        %1452 = vmatpush2.msra.mxu0 0.0
        %1453 = vmatprep.subr.mxu0 0.0
        %1454 = vmatpush2.msra.mxu0 0.0
        %1455 = vmatprep.mubr.f32.mxu0 0.0
        %1456 = vmatmul.mubr.f32.gmra.mxu0 %v1389
        %v1457 = vpop.f32.mrf.mxu0
        %v1458 = vadd.f32 %v1385, %v1457
        %v1459 = vpop.f32.mrf.mxu0
        %1460 = vdwg.mxu0
        %v1462 = vsel %vm1314, %v1249, 0
        %1464 = vmatprep.subr.mxu0 0.0
        %1465 = vmatpush1.msra.mxu0 0.0
        %1466 = vmatprep.subr.mxu0 0.0
        %1467 = vmatpush1.msra.mxu0 0.0
        %1468 = vmatprep.subr.mxu0 0.0
        %1469 = vmatpush1.msra.mxu0 0.0
        %1470 = vmatprep.subr.mxu0 0.0
        %1471 = vmatpush1.msra.mxu0 0.0
        %1472 = vmatprep.subr.mxu0 0.0
        %1473 = vmatpush1.msra.mxu0 0.0
        %1474 = vmatprep.subr.mxu0 0.0
        %1475 = vmatpush1.msra.mxu0 0.0
        %1476 = vmatprep.subr.mxu0 0.0
        %1477 = vmatpush1.msra.mxu0 0.0
        %1478 = vmatprep.subr.mxu0 0.0
        %1479 = vmatpush1.msra.mxu0 0.0
        %1480 = vmatprep.subr.mxu0 0.0
        %1481 = vmatpush1.msra.mxu0 0.0
        %1482 = vmatprep.subr.mxu0 0.0
        %1483 = vmatpush1.msra.mxu0 0.0
        %1484 = vmatprep.subr.mxu0 0.0
        %1485 = vmatpush1.msra.mxu0 0.0
        %1486 = vmatprep.subr.mxu0 0.0
        %1487 = vmatpush1.msra.mxu0 0.0
        %1488 = vmatprep.subr.mxu0 0.0
        %1489 = vmatpush1.msra.mxu0 0.0
        %1490 = vmatprep.subr.mxu0 0.0
        %1491 = vmatpush1.msra.mxu0 0.0
        %1492 = vmatprep.subr.mxu0 0.0
        %1493 = vmatpush1.msra.mxu0 %v604
        %1494 = vmatprep.subr.mxu0 0.0
        %1495 = vmatpush1.msra.mxu0 %v603
        %1496 = vmatprep.subr.mxu0 0.0
        %1497 = vmatpush2.msra.mxu0 0.0
        %1498 = vmatprep.subr.mxu0 0.0
        %1499 = vmatpush2.msra.mxu0 0.0
        %1500 = vmatprep.subr.mxu0 0.0
        %1501 = vmatpush2.msra.mxu0 0.0
        %1502 = vmatprep.subr.mxu0 0.0
        %1503 = vmatpush2.msra.mxu0 0.0
        %1504 = vmatprep.subr.mxu0 0.0
        %1505 = vmatpush2.msra.mxu0 0.0
        %1506 = vmatprep.subr.mxu0 0.0
        %1507 = vmatpush2.msra.mxu0 0.0
        %1508 = vmatprep.subr.mxu0 0.0
        %1509 = vmatpush2.msra.mxu0 0.0
        %1510 = vmatprep.subr.mxu0 0.0
        %1511 = vmatpush2.msra.mxu0 0.0
        %1512 = vmatprep.subr.mxu0 0.0
        %1513 = vmatpush2.msra.mxu0 0.0
        %1514 = vmatprep.subr.mxu0 0.0
        %1515 = vmatpush2.msra.mxu0 0.0
        %1516 = vmatprep.subr.mxu0 0.0
        %1517 = vmatpush2.msra.mxu0 0.0
        %1518 = vmatprep.subr.mxu0 0.0
        %1519 = vmatpush2.msra.mxu0 0.0
        %1520 = vmatprep.subr.mxu0 0.0
        %1521 = vmatpush2.msra.mxu0 0.0
        %1522 = vmatprep.subr.mxu0 0.0
        %1523 = vmatpush2.msra.mxu0 0.0
        %1524 = vmatprep.subr.mxu0 0.0
        %1525 = vmatpush2.msra.mxu0 0.0
        %1526 = vmatprep.subr.mxu0 0.0
        %1527 = vmatpush2.msra.mxu0 0.0
        %1528 = vmatprep.mubr.f32.mxu0 0.0
        %1529 = vmatmul.mubr.f32.gmra.mxu0 %v1462
        %v1530 = vpop.f32.mrf.mxu0
        %v1531 = vadd.f32 0.0, %v1530
        %v1532 = vpop.f32.mrf.mxu0
        %1533 = vdwg.mxu0
        %v1535 = vsel %vm1314, %v1233, 0
        %1537 = vmatprep.subr.mxu0 0.0
        %1538 = vmatpush1.msra.mxu0 0.0
        %1539 = vmatprep.subr.mxu0 0.0
        %1540 = vmatpush1.msra.mxu0 0.0
        %1541 = vmatprep.subr.mxu0 0.0
        %1542 = vmatpush1.msra.mxu0 0.0
        %1543 = vmatprep.subr.mxu0 0.0
        %1544 = vmatpush1.msra.mxu0 0.0
        %1545 = vmatprep.subr.mxu0 0.0
        %1546 = vmatpush1.msra.mxu0 0.0
        %1547 = vmatprep.subr.mxu0 0.0
        %1548 = vmatpush1.msra.mxu0 0.0
        %1549 = vmatprep.subr.mxu0 0.0
        %1550 = vmatpush1.msra.mxu0 0.0
        %1551 = vmatprep.subr.mxu0 0.0
        %1552 = vmatpush1.msra.mxu0 0.0
        %1553 = vmatprep.subr.mxu0 0.0
        %1554 = vmatpush1.msra.mxu0 0.0
        %1555 = vmatprep.subr.mxu0 0.0
        %1556 = vmatpush1.msra.mxu0 0.0
        %1557 = vmatprep.subr.mxu0 0.0
        %1558 = vmatpush1.msra.mxu0 0.0
        %1559 = vmatprep.subr.mxu0 0.0
        %1560 = vmatpush1.msra.mxu0 0.0
        %1561 = vmatprep.subr.mxu0 0.0
        %1562 = vmatpush1.msra.mxu0 0.0
        %1563 = vmatprep.subr.mxu0 0.0
        %1564 = vmatpush1.msra.mxu0 0.0
        %1565 = vmatprep.subr.mxu0 0.0
        %1566 = vmatpush1.msra.mxu0 %v596
        %1567 = vmatprep.subr.mxu0 0.0
        %1568 = vmatpush1.msra.mxu0 %v595
        %1569 = vmatprep.subr.mxu0 0.0
        %1570 = vmatpush2.msra.mxu0 0.0
        %1571 = vmatprep.subr.mxu0 0.0
        %1572 = vmatpush2.msra.mxu0 0.0
        %1573 = vmatprep.subr.mxu0 0.0
        %1574 = vmatpush2.msra.mxu0 0.0
        %1575 = vmatprep.subr.mxu0 0.0
        %1576 = vmatpush2.msra.mxu0 0.0
        %1577 = vmatprep.subr.mxu0 0.0
        %1578 = vmatpush2.msra.mxu0 0.0
        %1579 = vmatprep.subr.mxu0 0.0
        %1580 = vmatpush2.msra.mxu0 0.0
        %1581 = vmatprep.subr.mxu0 0.0
        %1582 = vmatpush2.msra.mxu0 0.0
        %1583 = vmatprep.subr.mxu0 0.0
        %1584 = vmatpush2.msra.mxu0 0.0
        %1585 = vmatprep.subr.mxu0 0.0
        %1586 = vmatpush2.msra.mxu0 0.0
        %1587 = vmatprep.subr.mxu0 0.0
        %1588 = vmatpush2.msra.mxu0 0.0
        %1589 = vmatprep.subr.mxu0 0.0
        %1590 = vmatpush2.msra.mxu0 0.0
        %1591 = vmatprep.subr.mxu0 0.0
        %1592 = vmatpush2.msra.mxu0 0.0
        %1593 = vmatprep.subr.mxu0 0.0
        %1594 = vmatpush2.msra.mxu0 0.0
        %1595 = vmatprep.subr.mxu0 0.0
        %1596 = vmatpush2.msra.mxu0 0.0
        %1597 = vmatprep.subr.mxu0 0.0
        %1598 = vmatpush2.msra.mxu0 0.0
        %1599 = vmatprep.subr.mxu0 0.0
        %1600 = vmatpush2.msra.mxu0 0.0
        %1601 = vmatprep.mubr.f32.mxu0 0.0
        %1602 = vmatmul.mubr.f32.gmra.mxu0 %v1535
        %v1603 = vpop.f32.mrf.mxu0
        %v1604 = vadd.f32 %v1531, %v1603
        %v1605 = vpop.f32.mrf.mxu0
        %1606 = vdwg.mxu0
        %vm1607 = vcmask 64512
        %v1609 = vsel %vm1607, %v617, 0
        %v1612 = vsel %vm1607, %v618, 0
        %1614 = vmatprep.subr.mxu0 0.0
        %1615 = vmatpush1.msra.mxu0 0.0
        %1616 = vmatprep.subr.mxu0 0.0
        %1617 = vmatpush1.msra.mxu0 0.0
        %1618 = vmatprep.subr.mxu0 0.0
        %1619 = vmatpush1.msra.mxu0 0.0
        %1620 = vmatprep.subr.mxu0 0.0
        %1621 = vmatpush1.msra.mxu0 0.0
        %1622 = vmatprep.subr.mxu0 0.0
        %1623 = vmatpush1.msra.mxu0 0.0
        %1624 = vmatprep.subr.mxu0 0.0
        %1625 = vmatpush1.msra.mxu0 0.0
        %1626 = vmatprep.subr.mxu0 0.0
        %1627 = vmatpush1.msra.mxu0 0.0
        %1628 = vmatprep.subr.mxu0 0.0
        %1629 = vmatpush1.msra.mxu0 0.0
        %1630 = vmatprep.subr.mxu0 0.0
        %1631 = vmatpush1.msra.mxu0 0.0
        %1632 = vmatprep.subr.mxu0 0.0
        %1633 = vmatpush1.msra.mxu0 0.0
        %1634 = vmatprep.subr.mxu0 0.0
        %1635 = vmatpush1.msra.mxu0 0.0
        %1636 = vmatprep.subr.mxu0 0.0
        %1637 = vmatpush1.msra.mxu0 0.0
        %1638 = vmatprep.subr.mxu0 0.0
        %1639 = vmatpush1.msra.mxu0 0.0
        %1640 = vmatprep.subr.mxu0 0.0
        %1641 = vmatpush1.msra.mxu0 0.0
        %1642 = vmatprep.subr.mxu0 0.0
        %1643 = vmatpush1.msra.mxu0 0.0
        %1644 = vmatprep.subr.mxu0 0.0
        %1645 = vmatpush1.msra.mxu0 %v1604
        %1646 = vmatprep.subr.mxu0 0.0
        %1647 = vmatpush2.msra.mxu0 0.0
        %1648 = vmatprep.subr.mxu0 0.0
        %1649 = vmatpush2.msra.mxu0 0.0
        %1650 = vmatprep.subr.mxu0 0.0
        %1651 = vmatpush2.msra.mxu0 0.0
        %1652 = vmatprep.subr.mxu0 0.0
        %1653 = vmatpush2.msra.mxu0 0.0
        %1654 = vmatprep.subr.mxu0 0.0
        %1655 = vmatpush2.msra.mxu0 0.0
        %1656 = vmatprep.subr.mxu0 0.0
        %1657 = vmatpush2.msra.mxu0 0.0
        %1658 = vmatprep.subr.mxu0 0.0
        %1659 = vmatpush2.msra.mxu0 0.0
        %1660 = vmatprep.subr.mxu0 0.0
        %1661 = vmatpush2.msra.mxu0 0.0
        %1662 = vmatprep.subr.mxu0 0.0
        %1663 = vmatpush2.msra.mxu0 0.0
        %1664 = vmatprep.subr.mxu0 0.0
        %1665 = vmatpush2.msra.mxu0 0.0
        %1666 = vmatprep.subr.mxu0 0.0
        %1667 = vmatpush2.msra.mxu0 0.0
        %1668 = vmatprep.subr.mxu0 0.0
        %1669 = vmatpush2.msra.mxu0 0.0
        %1670 = vmatprep.subr.mxu0 0.0
        %1671 = vmatpush2.msra.mxu0 0.0
        %1672 = vmatprep.subr.mxu0 0.0
        %1673 = vmatpush2.msra.mxu0 0.0
        %1674 = vmatprep.subr.mxu0 0.0
        %1675 = vmatpush2.msra.mxu0 0.0
        %1676 = vmatprep.subr.mxu0 0.0
        %1677 = vmatpush2.msra.mxu0 0.0
        %1678 = vmatprep.mubr.f32.mxu0 0.0
        %1679 = vmatmul.mubr.f32.gmra.mxu0 %v1609
        %v1680 = vpop.f32.mrf.mxu0
        %v1681 = vadd.f32 0.0, %v1680
        %v1682 = vpop.f32.mrf.mxu0
        %1683 = vmatprep.mubr.f32.mxu0 0.0
        %1684 = vmatmul.mubr.f32.gmra.mxu0 %v1612
        %v1685 = vpop.f32.mrf.mxu0
        %v1686 = vadd.f32 0.0, %v1685
        %v1687 = vpop.f32.mrf.mxu0
        %1688 = vdwg.mxu0
        %v1690 = vsel %vm1607, %v610, 0
        %v1693 = vsel %vm1607, %v611, 0
        %1695 = vmatprep.subr.mxu0 0.0
        %1696 = vmatpush1.msra.mxu0 0.0
        %1697 = vmatprep.subr.mxu0 0.0
        %1698 = vmatpush1.msra.mxu0 0.0
        %1699 = vmatprep.subr.mxu0 0.0
        %1700 = vmatpush1.msra.mxu0 0.0
        %1701 = vmatprep.subr.mxu0 0.0
        %1702 = vmatpush1.msra.mxu0 0.0
        %1703 = vmatprep.subr.mxu0 0.0
        %1704 = vmatpush1.msra.mxu0 0.0
        %1705 = vmatprep.subr.mxu0 0.0
        %1706 = vmatpush1.msra.mxu0 0.0
        %1707 = vmatprep.subr.mxu0 0.0
        %1708 = vmatpush1.msra.mxu0 0.0
        %1709 = vmatprep.subr.mxu0 0.0
        %1710 = vmatpush1.msra.mxu0 0.0
        %1711 = vmatprep.subr.mxu0 0.0
        %1712 = vmatpush1.msra.mxu0 0.0
        %1713 = vmatprep.subr.mxu0 0.0
        %1714 = vmatpush1.msra.mxu0 0.0
        %1715 = vmatprep.subr.mxu0 0.0
        %1716 = vmatpush1.msra.mxu0 0.0
        %1717 = vmatprep.subr.mxu0 0.0
        %1718 = vmatpush1.msra.mxu0 0.0
        %1719 = vmatprep.subr.mxu0 0.0
        %1720 = vmatpush1.msra.mxu0 0.0
        %1721 = vmatprep.subr.mxu0 0.0
        %1722 = vmatpush1.msra.mxu0 0.0
        %1723 = vmatprep.subr.mxu0 0.0
        %1724 = vmatpush1.msra.mxu0 0.0
        %1725 = vmatprep.subr.mxu0 0.0
        %1726 = vmatpush1.msra.mxu0 %v1458
        %1727 = vmatprep.subr.mxu0 0.0
        %1728 = vmatpush2.msra.mxu0 0.0
        %1729 = vmatprep.subr.mxu0 0.0
        %1730 = vmatpush2.msra.mxu0 0.0
        %1731 = vmatprep.subr.mxu0 0.0
        %1732 = vmatpush2.msra.mxu0 0.0
        %1733 = vmatprep.subr.mxu0 0.0
        %1734 = vmatpush2.msra.mxu0 0.0
        %1735 = vmatprep.subr.mxu0 0.0
        %1736 = vmatpush2.msra.mxu0 0.0
        %1737 = vmatprep.subr.mxu0 0.0
        %1738 = vmatpush2.msra.mxu0 0.0
        %1739 = vmatprep.subr.mxu0 0.0
        %1740 = vmatpush2.msra.mxu0 0.0
        %1741 = vmatprep.subr.mxu0 0.0
        %1742 = vmatpush2.msra.mxu0 0.0
        %1743 = vmatprep.subr.mxu0 0.0
        %1744 = vmatpush2.msra.mxu0 0.0
        %1745 = vmatprep.subr.mxu0 0.0
        %1746 = vmatpush2.msra.mxu0 0.0
        %1747 = vmatprep.subr.mxu0 0.0
        %1748 = vmatpush2.msra.mxu0 0.0
        %1749 = vmatprep.subr.mxu0 0.0
        %1750 = vmatpush2.msra.mxu0 0.0
        %1751 = vmatprep.subr.mxu0 0.0
        %1752 = vmatpush2.msra.mxu0 0.0
        %1753 = vmatprep.subr.mxu0 0.0
        %1754 = vmatpush2.msra.mxu0 0.0
        %1755 = vmatprep.subr.mxu0 0.0
        %1756 = vmatpush2.msra.mxu0 0.0
        %1757 = vmatprep.subr.mxu0 0.0
        %1758 = vmatpush2.msra.mxu0 0.0
        %1759 = vmatprep.mubr.f32.mxu0 0.0
        %1760 = vmatmul.mubr.f32.gmra.mxu0 %v1690
        %v1761 = vpop.f32.mrf.mxu0
        %v1762 = vadd.f32 %v1681, %v1761
        %v1763 = vpop.f32.mrf.mxu0
        %1764 = vmatprep.mubr.f32.mxu0 0.0
        %1765 = vmatmul.mubr.f32.gmra.mxu0 %v1693
        %v1766 = vpop.f32.mrf.mxu0
        %v1767 = vadd.f32 %v1686, %v1766
        %v1768 = vpop.f32.mrf.mxu0
        %1769 = vdwg.mxu0
        %s1770 = sld [smem:[#allocation9]]
        %v1771 = vstv %s1770
        %v1772 = vadd.f32 %v1762, %v1771
        %v1773 = vadd.f32 %v1767, %v1771
        %vm1774 = vcmp.ge.f32.partialorder %v1772, 0.0
        %vm1775 = vcmp.ge.f32.partialorder %v1773, 0.0
        %v1776 = vmul.f32 %v1772, 0.01
        %v1777 = vmul.f32 %v1773, 0.01
        %v1778 = vsel %vm1774, %v1772, %v1776
        %v1779 = vsel %vm1775, %v1773, %v1777
        %vm1780 = vcmask 261120
        %1781 = vst.msk [vmem:[%s573] sm:$0xff] %vm1780, %v1778
        %1782 = vst.msk [vmem:[%s573 + $0x8] sm:$0xff] %vm1780, %v1779
        %v1784 = vsel %vm1314, %v1281, 0
        %1786 = vmatprep.subr.mxu0 0.0
        %1787 = vmatpush1.msra.mxu0 0.0
        %1788 = vmatprep.subr.mxu0 0.0
        %1789 = vmatpush1.msra.mxu0 0.0
        %1790 = vmatprep.subr.mxu0 0.0
        %1791 = vmatpush1.msra.mxu0 0.0
        %1792 = vmatprep.subr.mxu0 0.0
        %1793 = vmatpush1.msra.mxu0 0.0
        %1794 = vmatprep.subr.mxu0 0.0
        %1795 = vmatpush1.msra.mxu0 0.0
        %1796 = vmatprep.subr.mxu0 0.0
        %1797 = vmatpush1.msra.mxu0 0.0
        %1798 = vmatprep.subr.mxu0 0.0
        %1799 = vmatpush1.msra.mxu0 0.0
        %1800 = vmatprep.subr.mxu0 0.0
        %1801 = vmatpush1.msra.mxu0 0.0
        %1802 = vmatprep.subr.mxu0 0.0
        %1803 = vmatpush1.msra.mxu0 0.0
        %1804 = vmatprep.subr.mxu0 0.0
        %1805 = vmatpush1.msra.mxu0 0.0
        %1806 = vmatprep.subr.mxu0 0.0
        %1807 = vmatpush1.msra.mxu0 0.0
        %1808 = vmatprep.subr.mxu0 0.0
        %1809 = vmatpush1.msra.mxu0 0.0
        %1810 = vmatprep.subr.mxu0 0.0
        %1811 = vmatpush1.msra.mxu0 0.0
        %1812 = vmatprep.subr.mxu0 0.0
        %1813 = vmatpush1.msra.mxu0 0.0
        %1814 = vmatprep.subr.mxu0 0.0
        %1815 = vmatpush1.msra.mxu0 %v604
        %1816 = vmatprep.subr.mxu0 0.0
        %1817 = vmatpush1.msra.mxu0 %v603
        %1818 = vmatprep.subr.mxu0 0.0
        %1819 = vmatpush2.msra.mxu0 0.0
        %1820 = vmatprep.subr.mxu0 0.0
        %1821 = vmatpush2.msra.mxu0 0.0
        %1822 = vmatprep.subr.mxu0 0.0
        %1823 = vmatpush2.msra.mxu0 0.0
        %1824 = vmatprep.subr.mxu0 0.0
        %1825 = vmatpush2.msra.mxu0 0.0
        %1826 = vmatprep.subr.mxu0 0.0
        %1827 = vmatpush2.msra.mxu0 0.0
        %1828 = vmatprep.subr.mxu0 0.0
        %1829 = vmatpush2.msra.mxu0 0.0
        %1830 = vmatprep.subr.mxu0 0.0
        %1831 = vmatpush2.msra.mxu0 0.0
        %1832 = vmatprep.subr.mxu0 0.0
        %1833 = vmatpush2.msra.mxu0 0.0
        %1834 = vmatprep.subr.mxu0 0.0
        %1835 = vmatpush2.msra.mxu0 0.0
        %1836 = vmatprep.subr.mxu0 0.0
        %1837 = vmatpush2.msra.mxu0 0.0
        %1838 = vmatprep.subr.mxu0 0.0
        %1839 = vmatpush2.msra.mxu0 0.0
        %1840 = vmatprep.subr.mxu0 0.0
        %1841 = vmatpush2.msra.mxu0 0.0
        %1842 = vmatprep.subr.mxu0 0.0
        %1843 = vmatpush2.msra.mxu0 0.0
        %1844 = vmatprep.subr.mxu0 0.0
        %1845 = vmatpush2.msra.mxu0 0.0
        %1846 = vmatprep.subr.mxu0 0.0
        %1847 = vmatpush2.msra.mxu0 0.0
        %1848 = vmatprep.subr.mxu0 0.0
        %1849 = vmatpush2.msra.mxu0 0.0
        %1850 = vmatprep.mubr.f32.mxu0 0.0
        %1851 = vmatmul.mubr.f32.gmra.mxu0 %v1784
        %v1852 = vpop.f32.mrf.mxu0
        %v1853 = vadd.f32 0.0, %v1852
        %v1854 = vpop.f32.mrf.mxu0
        %1855 = vdwg.mxu0
        %v1857 = vsel %vm1314, %v1265, 0
        %1859 = vmatprep.subr.mxu0 0.0
        %1860 = vmatpush1.msra.mxu0 0.0
        %1861 = vmatprep.subr.mxu0 0.0
        %1862 = vmatpush1.msra.mxu0 0.0
        %1863 = vmatprep.subr.mxu0 0.0
        %1864 = vmatpush1.msra.mxu0 0.0
        %1865 = vmatprep.subr.mxu0 0.0
        %1866 = vmatpush1.msra.mxu0 0.0
        %1867 = vmatprep.subr.mxu0 0.0
        %1868 = vmatpush1.msra.mxu0 0.0
        %1869 = vmatprep.subr.mxu0 0.0
        %1870 = vmatpush1.msra.mxu0 0.0
        %1871 = vmatprep.subr.mxu0 0.0
        %1872 = vmatpush1.msra.mxu0 0.0
        %1873 = vmatprep.subr.mxu0 0.0
        %1874 = vmatpush1.msra.mxu0 0.0
        %1875 = vmatprep.subr.mxu0 0.0
        %1876 = vmatpush1.msra.mxu0 0.0
        %1877 = vmatprep.subr.mxu0 0.0
        %1878 = vmatpush1.msra.mxu0 0.0
        %1879 = vmatprep.subr.mxu0 0.0
        %1880 = vmatpush1.msra.mxu0 0.0
        %1881 = vmatprep.subr.mxu0 0.0
        %1882 = vmatpush1.msra.mxu0 0.0
        %1883 = vmatprep.subr.mxu0 0.0
        %1884 = vmatpush1.msra.mxu0 0.0
        %1885 = vmatprep.subr.mxu0 0.0
        %1886 = vmatpush1.msra.mxu0 0.0
        %1887 = vmatprep.subr.mxu0 0.0
        %1888 = vmatpush1.msra.mxu0 %v596
        %1889 = vmatprep.subr.mxu0 0.0
        %1890 = vmatpush1.msra.mxu0 %v595
        %1891 = vmatprep.subr.mxu0 0.0
        %1892 = vmatpush2.msra.mxu0 0.0
        %1893 = vmatprep.subr.mxu0 0.0
        %1894 = vmatpush2.msra.mxu0 0.0
        %1895 = vmatprep.subr.mxu0 0.0
        %1896 = vmatpush2.msra.mxu0 0.0
        %1897 = vmatprep.subr.mxu0 0.0
        %1898 = vmatpush2.msra.mxu0 0.0
        %1899 = vmatprep.subr.mxu0 0.0
        %1900 = vmatpush2.msra.mxu0 0.0
        %1901 = vmatprep.subr.mxu0 0.0
        %1902 = vmatpush2.msra.mxu0 0.0
        %1903 = vmatprep.subr.mxu0 0.0
        %1904 = vmatpush2.msra.mxu0 0.0
        %1905 = vmatprep.subr.mxu0 0.0
        %1906 = vmatpush2.msra.mxu0 0.0
        %1907 = vmatprep.subr.mxu0 0.0
        %1908 = vmatpush2.msra.mxu0 0.0
        %1909 = vmatprep.subr.mxu0 0.0
        %1910 = vmatpush2.msra.mxu0 0.0
        %1911 = vmatprep.subr.mxu0 0.0
        %1912 = vmatpush2.msra.mxu0 0.0
        %1913 = vmatprep.subr.mxu0 0.0
        %1914 = vmatpush2.msra.mxu0 0.0
        %1915 = vmatprep.subr.mxu0 0.0
        %1916 = vmatpush2.msra.mxu0 0.0
        %1917 = vmatprep.subr.mxu0 0.0
        %1918 = vmatpush2.msra.mxu0 0.0
        %1919 = vmatprep.subr.mxu0 0.0
        %1920 = vmatpush2.msra.mxu0 0.0
        %1921 = vmatprep.subr.mxu0 0.0
        %1922 = vmatpush2.msra.mxu0 0.0
        %1923 = vmatprep.mubr.f32.mxu0 0.0
        %1924 = vmatmul.mubr.f32.gmra.mxu0 %v1857
        %v1925 = vpop.f32.mrf.mxu0
        %v1926 = vadd.f32 %v1853, %v1925
        %v1927 = vpop.f32.mrf.mxu0
        %1928 = vdwg.mxu0
        %v1930 = vsel %vm1314, %v1313, 0
        %1932 = vmatprep.subr.mxu0 0.0
        %1933 = vmatpush1.msra.mxu0 0.0
        %1934 = vmatprep.subr.mxu0 0.0
        %1935 = vmatpush1.msra.mxu0 0.0
        %1936 = vmatprep.subr.mxu0 0.0
        %1937 = vmatpush1.msra.mxu0 0.0
        %1938 = vmatprep.subr.mxu0 0.0
        %1939 = vmatpush1.msra.mxu0 0.0
        %1940 = vmatprep.subr.mxu0 0.0
        %1941 = vmatpush1.msra.mxu0 0.0
        %1942 = vmatprep.subr.mxu0 0.0
        %1943 = vmatpush1.msra.mxu0 0.0
        %1944 = vmatprep.subr.mxu0 0.0
        %1945 = vmatpush1.msra.mxu0 0.0
        %1946 = vmatprep.subr.mxu0 0.0
        %1947 = vmatpush1.msra.mxu0 0.0
        %1948 = vmatprep.subr.mxu0 0.0
        %1949 = vmatpush1.msra.mxu0 0.0
        %1950 = vmatprep.subr.mxu0 0.0
        %1951 = vmatpush1.msra.mxu0 0.0
        %1952 = vmatprep.subr.mxu0 0.0
        %1953 = vmatpush1.msra.mxu0 0.0
        %1954 = vmatprep.subr.mxu0 0.0
        %1955 = vmatpush1.msra.mxu0 0.0
        %1956 = vmatprep.subr.mxu0 0.0
        %1957 = vmatpush1.msra.mxu0 0.0
        %1958 = vmatprep.subr.mxu0 0.0
        %1959 = vmatpush1.msra.mxu0 0.0
        %1960 = vmatprep.subr.mxu0 0.0
        %1961 = vmatpush1.msra.mxu0 %v604
        %1962 = vmatprep.subr.mxu0 0.0
        %1963 = vmatpush1.msra.mxu0 %v603
        %1964 = vmatprep.subr.mxu0 0.0
        %1965 = vmatpush2.msra.mxu0 0.0
        %1966 = vmatprep.subr.mxu0 0.0
        %1967 = vmatpush2.msra.mxu0 0.0
        %1968 = vmatprep.subr.mxu0 0.0
        %1969 = vmatpush2.msra.mxu0 0.0
        %1970 = vmatprep.subr.mxu0 0.0
        %1971 = vmatpush2.msra.mxu0 0.0
        %1972 = vmatprep.subr.mxu0 0.0
        %1973 = vmatpush2.msra.mxu0 0.0
        %1974 = vmatprep.subr.mxu0 0.0
        %1975 = vmatpush2.msra.mxu0 0.0
        %1976 = vmatprep.subr.mxu0 0.0
        %1977 = vmatpush2.msra.mxu0 0.0
        %1978 = vmatprep.subr.mxu0 0.0
        %1979 = vmatpush2.msra.mxu0 0.0
        %1980 = vmatprep.subr.mxu0 0.0
        %1981 = vmatpush2.msra.mxu0 0.0
        %1982 = vmatprep.subr.mxu0 0.0
        %1983 = vmatpush2.msra.mxu0 0.0
        %1984 = vmatprep.subr.mxu0 0.0
        %1985 = vmatpush2.msra.mxu0 0.0
        %1986 = vmatprep.subr.mxu0 0.0
        %1987 = vmatpush2.msra.mxu0 0.0
        %1988 = vmatprep.subr.mxu0 0.0
        %1989 = vmatpush2.msra.mxu0 0.0
        %1990 = vmatprep.subr.mxu0 0.0
        %1991 = vmatpush2.msra.mxu0 0.0
        %1992 = vmatprep.subr.mxu0 0.0
        %1993 = vmatpush2.msra.mxu0 0.0
        %1994 = vmatprep.subr.mxu0 0.0
        %1995 = vmatpush2.msra.mxu0 0.0
        %1996 = vmatprep.mubr.f32.mxu0 0.0
        %1997 = vmatmul.mubr.f32.gmra.mxu0 %v1930
        %v1998 = vpop.f32.mrf.mxu0
        %v1999 = vadd.f32 0.0, %v1998
        %v2000 = vpop.f32.mrf.mxu0
        %2001 = vdwg.mxu0
        %v2003 = vsel %vm1314, %v1297, 0
        %2005 = vmatprep.subr.mxu0 0.0
        %2006 = vmatpush1.msra.mxu0 0.0
        %2007 = vmatprep.subr.mxu0 0.0
        %2008 = vmatpush1.msra.mxu0 0.0
        %2009 = vmatprep.subr.mxu0 0.0
        %2010 = vmatpush1.msra.mxu0 0.0
        %2011 = vmatprep.subr.mxu0 0.0
        %2012 = vmatpush1.msra.mxu0 0.0
        %2013 = vmatprep.subr.mxu0 0.0
        %2014 = vmatpush1.msra.mxu0 0.0
        %2015 = vmatprep.subr.mxu0 0.0
        %2016 = vmatpush1.msra.mxu0 0.0
        %2017 = vmatprep.subr.mxu0 0.0
        %2018 = vmatpush1.msra.mxu0 0.0
        %2019 = vmatprep.subr.mxu0 0.0
        %2020 = vmatpush1.msra.mxu0 0.0
        %2021 = vmatprep.subr.mxu0 0.0
        %2022 = vmatpush1.msra.mxu0 0.0
        %2023 = vmatprep.subr.mxu0 0.0
        %2024 = vmatpush1.msra.mxu0 0.0
        %2025 = vmatprep.subr.mxu0 0.0
        %2026 = vmatpush1.msra.mxu0 0.0
        %2027 = vmatprep.subr.mxu0 0.0
        %2028 = vmatpush1.msra.mxu0 0.0
        %2029 = vmatprep.subr.mxu0 0.0
        %2030 = vmatpush1.msra.mxu0 0.0
        %2031 = vmatprep.subr.mxu0 0.0
        %2032 = vmatpush1.msra.mxu0 0.0
        %2033 = vmatprep.subr.mxu0 0.0
        %2034 = vmatpush1.msra.mxu0 %v596
        %2035 = vmatprep.subr.mxu0 0.0
        %2036 = vmatpush1.msra.mxu0 %v595
        %2037 = vmatprep.subr.mxu0 0.0
        %2038 = vmatpush2.msra.mxu0 0.0
        %2039 = vmatprep.subr.mxu0 0.0
        %2040 = vmatpush2.msra.mxu0 0.0
        %2041 = vmatprep.subr.mxu0 0.0
        %2042 = vmatpush2.msra.mxu0 0.0
        %2043 = vmatprep.subr.mxu0 0.0
        %2044 = vmatpush2.msra.mxu0 0.0
        %2045 = vmatprep.subr.mxu0 0.0
        %2046 = vmatpush2.msra.mxu0 0.0
        %2047 = vmatprep.subr.mxu0 0.0
        %2048 = vmatpush2.msra.mxu0 0.0
        %2049 = vmatprep.subr.mxu0 0.0
        %2050 = vmatpush2.msra.mxu0 0.0
        %2051 = vmatprep.subr.mxu0 0.0
        %2052 = vmatpush2.msra.mxu0 0.0
        %2053 = vmatprep.subr.mxu0 0.0
        %2054 = vmatpush2.msra.mxu0 0.0
        %2055 = vmatprep.subr.mxu0 0.0
        %2056 = vmatpush2.msra.mxu0 0.0
        %2057 = vmatprep.subr.mxu0 0.0
        %2058 = vmatpush2.msra.mxu0 0.0
        %2059 = vmatprep.subr.mxu0 0.0
        %2060 = vmatpush2.msra.mxu0 0.0
        %2061 = vmatprep.subr.mxu0 0.0
        %2062 = vmatpush2.msra.mxu0 0.0
        %2063 = vmatprep.subr.mxu0 0.0
        %2064 = vmatpush2.msra.mxu0 0.0
        %2065 = vmatprep.subr.mxu0 0.0
        %2066 = vmatpush2.msra.mxu0 0.0
        %2067 = vmatprep.subr.mxu0 0.0
        %2068 = vmatpush2.msra.mxu0 0.0
        %2069 = vmatprep.mubr.f32.mxu0 0.0
        %2070 = vmatmul.mubr.f32.gmra.mxu0 %v2003
        %v2071 = vpop.f32.mrf.mxu0
        %v2072 = vadd.f32 %v1999, %v2071
        %v2073 = vpop.f32.mrf.mxu0
        %2074 = vdwg.mxu0
        %2075 = vmatprep.subr.mxu0 0.0
        %2076 = vmatpush1.msra.mxu0 0.0
        %2077 = vmatprep.subr.mxu0 0.0
        %2078 = vmatpush1.msra.mxu0 0.0
        %2079 = vmatprep.subr.mxu0 0.0
        %2080 = vmatpush1.msra.mxu0 0.0
        %2081 = vmatprep.subr.mxu0 0.0
        %2082 = vmatpush1.msra.mxu0 0.0
        %2083 = vmatprep.subr.mxu0 0.0
        %2084 = vmatpush1.msra.mxu0 0.0
        %2085 = vmatprep.subr.mxu0 0.0
        %2086 = vmatpush1.msra.mxu0 0.0
        %2087 = vmatprep.subr.mxu0 0.0
        %2088 = vmatpush1.msra.mxu0 0.0
        %2089 = vmatprep.subr.mxu0 0.0
        %2090 = vmatpush1.msra.mxu0 0.0
        %2091 = vmatprep.subr.mxu0 0.0
        %2092 = vmatpush1.msra.mxu0 0.0
        %2093 = vmatprep.subr.mxu0 0.0
        %2094 = vmatpush1.msra.mxu0 0.0
        %2095 = vmatprep.subr.mxu0 0.0
        %2096 = vmatpush1.msra.mxu0 0.0
        %2097 = vmatprep.subr.mxu0 0.0
        %2098 = vmatpush1.msra.mxu0 0.0
        %2099 = vmatprep.subr.mxu0 0.0
        %2100 = vmatpush1.msra.mxu0 0.0
        %2101 = vmatprep.subr.mxu0 0.0
        %2102 = vmatpush1.msra.mxu0 0.0
        %2103 = vmatprep.subr.mxu0 0.0
        %2104 = vmatpush1.msra.mxu0 0.0
        %2105 = vmatprep.subr.mxu0 0.0
        %2106 = vmatpush1.msra.mxu0 %v2072
        %2107 = vmatprep.subr.mxu0 0.0
        %2108 = vmatpush2.msra.mxu0 0.0
        %2109 = vmatprep.subr.mxu0 0.0
        %2110 = vmatpush2.msra.mxu0 0.0
        %2111 = vmatprep.subr.mxu0 0.0
        %2112 = vmatpush2.msra.mxu0 0.0
        %2113 = vmatprep.subr.mxu0 0.0
        %2114 = vmatpush2.msra.mxu0 0.0
        %2115 = vmatprep.subr.mxu0 0.0
        %2116 = vmatpush2.msra.mxu0 0.0
        %2117 = vmatprep.subr.mxu0 0.0
        %2118 = vmatpush2.msra.mxu0 0.0
        %2119 = vmatprep.subr.mxu0 0.0
        %2120 = vmatpush2.msra.mxu0 0.0
        %2121 = vmatprep.subr.mxu0 0.0
        %2122 = vmatpush2.msra.mxu0 0.0
        %2123 = vmatprep.subr.mxu0 0.0
        %2124 = vmatpush2.msra.mxu0 0.0
        %2125 = vmatprep.subr.mxu0 0.0
        %2126 = vmatpush2.msra.mxu0 0.0
        %2127 = vmatprep.subr.mxu0 0.0
        %2128 = vmatpush2.msra.mxu0 0.0
        %2129 = vmatprep.subr.mxu0 0.0
        %2130 = vmatpush2.msra.mxu0 0.0
        %2131 = vmatprep.subr.mxu0 0.0
        %2132 = vmatpush2.msra.mxu0 0.0
        %2133 = vmatprep.subr.mxu0 0.0
        %2134 = vmatpush2.msra.mxu0 0.0
        %2135 = vmatprep.subr.mxu0 0.0
        %2136 = vmatpush2.msra.mxu0 0.0
        %2137 = vmatprep.subr.mxu0 0.0
        %2138 = vmatpush2.msra.mxu0 0.0
        %2139 = vmatprep.mubr.f32.mxu0 0.0
        %2140 = vmatmul.mubr.f32.gmra.mxu0 %v1609
        %v2141 = vpop.f32.mrf.mxu0
        %v2142 = vadd.f32 0.0, %v2141
        %v2143 = vpop.f32.mrf.mxu0
        %2144 = vmatprep.mubr.f32.mxu0 0.0
        %2145 = vmatmul.mubr.f32.gmra.mxu0 %v1612
        %v2146 = vpop.f32.mrf.mxu0
        %v2147 = vadd.f32 0.0, %v2146
        %v2148 = vpop.f32.mrf.mxu0
        %2149 = vdwg.mxu0
        %2150 = vmatprep.subr.mxu0 0.0
        %2151 = vmatpush1.msra.mxu0 0.0
        %2152 = vmatprep.subr.mxu0 0.0
        %2153 = vmatpush1.msra.mxu0 0.0
        %2154 = vmatprep.subr.mxu0 0.0
        %2155 = vmatpush1.msra.mxu0 0.0
        %2156 = vmatprep.subr.mxu0 0.0
        %2157 = vmatpush1.msra.mxu0 0.0
        %2158 = vmatprep.subr.mxu0 0.0
        %2159 = vmatpush1.msra.mxu0 0.0
        %2160 = vmatprep.subr.mxu0 0.0
        %2161 = vmatpush1.msra.mxu0 0.0
        %2162 = vmatprep.subr.mxu0 0.0
        %2163 = vmatpush1.msra.mxu0 0.0
        %2164 = vmatprep.subr.mxu0 0.0
        %2165 = vmatpush1.msra.mxu0 0.0
        %2166 = vmatprep.subr.mxu0 0.0
        %2167 = vmatpush1.msra.mxu0 0.0
        %2168 = vmatprep.subr.mxu0 0.0
        %2169 = vmatpush1.msra.mxu0 0.0
        %2170 = vmatprep.subr.mxu0 0.0
        %2171 = vmatpush1.msra.mxu0 0.0
        %2172 = vmatprep.subr.mxu0 0.0
        %2173 = vmatpush1.msra.mxu0 0.0
        %2174 = vmatprep.subr.mxu0 0.0
        %2175 = vmatpush1.msra.mxu0 0.0
        %2176 = vmatprep.subr.mxu0 0.0
        %2177 = vmatpush1.msra.mxu0 0.0
        %2178 = vmatprep.subr.mxu0 0.0
        %2179 = vmatpush1.msra.mxu0 0.0
        %2180 = vmatprep.subr.mxu0 0.0
        %2181 = vmatpush1.msra.mxu0 %v1926
        %2182 = vmatprep.subr.mxu0 0.0
        %2183 = vmatpush2.msra.mxu0 0.0
        %2184 = vmatprep.subr.mxu0 0.0
        %2185 = vmatpush2.msra.mxu0 0.0
        %2186 = vmatprep.subr.mxu0 0.0
        %2187 = vmatpush2.msra.mxu0 0.0
        %2188 = vmatprep.subr.mxu0 0.0
        %2189 = vmatpush2.msra.mxu0 0.0
        %2190 = vmatprep.subr.mxu0 0.0
        %2191 = vmatpush2.msra.mxu0 0.0
        %2192 = vmatprep.subr.mxu0 0.0
        %2193 = vmatpush2.msra.mxu0 0.0
        %2194 = vmatprep.subr.mxu0 0.0
        %2195 = vmatpush2.msra.mxu0 0.0
        %2196 = vmatprep.subr.mxu0 0.0
        %2197 = vmatpush2.msra.mxu0 0.0
        %2198 = vmatprep.subr.mxu0 0.0
        %2199 = vmatpush2.msra.mxu0 0.0
        %2200 = vmatprep.subr.mxu0 0.0
        %2201 = vmatpush2.msra.mxu0 0.0
        %2202 = vmatprep.subr.mxu0 0.0
        %2203 = vmatpush2.msra.mxu0 0.0
        %2204 = vmatprep.subr.mxu0 0.0
        %2205 = vmatpush2.msra.mxu0 0.0
        %2206 = vmatprep.subr.mxu0 0.0
        %2207 = vmatpush2.msra.mxu0 0.0
        %2208 = vmatprep.subr.mxu0 0.0
        %2209 = vmatpush2.msra.mxu0 0.0
        %2210 = vmatprep.subr.mxu0 0.0
        %2211 = vmatpush2.msra.mxu0 0.0
        %2212 = vmatprep.subr.mxu0 0.0
        %2213 = vmatpush2.msra.mxu0 0.0
        %2214 = vmatprep.mubr.f32.mxu0 0.0
        %2215 = vmatmul.mubr.f32.gmra.mxu0 %v1690
        %v2216 = vpop.f32.mrf.mxu0
        %v2217 = vadd.f32 %v2142, %v2216
        %v2218 = vpop.f32.mrf.mxu0
        %2219 = vmatprep.mubr.f32.mxu0 0.0
        %2220 = vmatmul.mubr.f32.gmra.mxu0 %v1693
        %v2221 = vpop.f32.mrf.mxu0
        %v2222 = vadd.f32 %v2147, %v2221
        %v2223 = vpop.f32.mrf.mxu0
        %2224 = vdwg.mxu0
        %s2225 = sld [smem:[#allocation9 + $0x1]]
        %v2226 = vstv %s2225
        %v2227 = vadd.f32 %v2217, %v2226
        %v2228 = vadd.f32 %v2222, %v2226
        %vm2229 = vcmp.ge.f32.partialorder %v2227, 0.0
        %vm2230 = vcmp.ge.f32.partialorder %v2228, 0.0
        %v2231 = vmul.f32 %v2227, 0.01
        %v2232 = vmul.f32 %v2228, 0.01
        %v2233 = vsel %vm2229, %v2227, %v2231
        %v2234 = vsel %vm2230, %v2228, %v2232
        %s2235 = scalar_lea.vmem %s573, 16 [#allocation11]
        %2236 = vst.msk [vmem:[%s2235] sm:$0xff] %vm1780, %v2233
        %2237 = vst.msk [vmem:[%s2235 + $0x8] sm:$0xff] %vm1780, %v2234
        %v2238 = vld [vmem:[%s526] sm:$0xff]
        %v2239 = vld [vmem:[%s526 + $0x8] sm:$0xff]
        %v2240 = vld [vmem:[%s526 + $0x10] sm:$0xff]
        %v2241 = vld [vmem:[%s526 + $0x18] sm:$0xff]
        %s2242 = scalar_lea.vmem %s573, 32 [#allocation11]
        %2243 = vst.msk [vmem:[%s2242] sm:$0xff] %vm1780, %v2238
        %2244 = vst.msk [vmem:[%s2242 + $0x8] sm:$0xff] %vm1780, %v2239
        %2245 = vst.msk [vmem:[%s2242 + $0x10] sm:$0xff] %vm1780, %v2240
        %2246 = vst.msk [vmem:[%s2242 + $0x18] sm:$0xff] %vm1780, %v2241
        %s2247 = sand.u32 %s210, 1
        %s2248 = scalar_lea.sflag [#allocation7], %s2247
        %s2249 = sand.u32 %s210, 1
        %s2250 = smul.addr %s2249, 64
        %s2251 = scalar_lea.vmem [#allocation11], %s2250
        // Predicated region
        $region205: #{upsample_forward.1} parent=179 // pred_check
          %p2252 = pneg %p220
        $region206: #{upsample_forward.1} parent=179 // pred_check_branch
          %2254 = sbr.rel (%p2252) target = $region208
        $region207: #{upsample_forward.1} parent=179 // pred_region
          #allocation13 [shape = 'u32[6]{0}', space=smem, size = 0x18, scoped, tag = 'DMA stride descriptor']
          %s2255 = smul.u32 2, %s27
          %s2257 = ssub.s32 1024, 1024
          %2258 = vsyncadd %s2248, %s2257
          %s2259 = smul.addr %s26, 16
          %s2260 = sadd.s32 %s2255, %s2259
          %s2261 = smul.addr %s2260, 128
          %s2262 = scalar_lea.hbm %s6, %s2261
          %s2264 = sshll.u32 1, 14
          %s2265 = sxor.u32 4294967295, %s2264
          %s2268 = sshll.u32 7, 18
          %s2269 = sxor.u32 4294967295, %s2268
          %s2270 = sand.u32 0, %s2269
          %s2272 = sor.u32 %s2270, 0
          %s2273 = sshll.u32 %s2251, 4
          %s2274 = int_to_ptr.vmem [resolvable:$true] %s2273
          %2280 = sst [smem:[#allocation13]] 256
          %s2281 = scalar_lea.smem [#allocation13], 1
          %2282 = sst [smem:[%s2281]] 512
          %s2283 = scalar_lea.smem [#allocation13], 2
          %2284 = sst [smem:[%s2283]] 2
          %s2285 = scalar_lea.smem [#allocation13], 3
          %2286 = sst [smem:[%s2285]] 128
          %s2287 = scalar_lea.smem [#allocation13], 4
          %2288 = sst [smem:[%s2287]] 128
          %s2289 = scalar_lea.smem [#allocation13], 5
          %2290 = sst [smem:[%s2289]] 8
          %2292 = dma.general %s2274, 1024, %s2262, %s2248, 131072, [#allocation13], %s2272, 0
        $region208: #{upsample_forward.1} parent=179 // pred_fallthru
          _
      $region180: #{upsample_forward.1} parent=5 // pred_fallthru
        _
      %p2293 = scmp.le.s32.totalorder 2, %s17
      // Predicated region
      $region209: #{upsample_forward.1} parent=5 // pred_check
        %p2294 = pneg %p2293
      $region210: #{upsample_forward.1} parent=5 // pred_check_branch
        %2296 = sbr.rel (%p2294) target = $region212
      $region211: #{upsample_forward.1} parent=5 // pred_region
        %s2297 = ssub.s32 %s17, 2
        // Predicated region
        $region213: #{upsample_forward.1} parent=211 // pred_check
          %p2298 = pneg %p226
        $region214: #{upsample_forward.1} parent=211 // pred_check_branch
          %2300 = sbr.rel (%p2298) target = $region216
        $region215: #{upsample_forward.1} parent=211 // pred_region
          %s2301 = sand.u32 %s211, 1
          %s2302 = scalar_lea.sflag [#allocation7], %s2301
          %s2303 = sand.u32 %s211, 1
          %s2304 = smul.addr %s2303, 64
          %s2305 = scalar_lea.vmem [#allocation11], %s2304
          %2306 = dma.done %s2302, 1024
        $region216: #{upsample_forward.1} parent=211 // pred_fallthru
          _
      $region212: #{upsample_forward.1} parent=5 // pred_fallthru
        _
    $region6: #{upsample_forward.1} parent=1 // loop_footer
      %s21 = sadd.s32 1, %s17
    $region7: #{upsample_forward.1} parent=1 // loop_footer_branch
      %16 = sbr.rel target = $region3
    $region8: #{upsample_forward.1} parent=1 // loop_exit
      _
    %2307 = vsyncpa [#allocation7], 1
    %s2308 = scalar_lea.sflag [#allocation7], 1
    %2309 = vsyncpa %s2308, 1
    %2310 = vsyncpa [#allocation8], 1
    %s2311 = scalar_lea.sflag [#allocation8], 1
    %2312 = vsyncpa %s2311, 1
    %2313 = vsyncpa [#allocation10], 1

</llo_original>
